<compile_context>
chip_gen: v7x
topology: tpu7x:2x2x1
jax: 0.10.0
libtpu: 0.0.40
codegen_flags: <defaults>
</compile_context>

<pallas_src>
import math
import numpy as np
import jax
import jax.numpy as jnp
from jax import lax
from jax.experimental import pallas as pl
from jax.experimental.pallas import tpu as pltpu

KS = 5  # conv kernel size (stride=1, padding=0 -> VALID)


def _gelu(x):
    # exact erf-based GELU, matching torch.nn.functional.gelu default
    return 0.5 * x * (1.0 + lax.erf(x * 0.7071067811865476))


# ---------------------------------------------------------------------------
# Weight packing helpers (pure weight/layout transforms, run OUTSIDE the kernel)
# ---------------------------------------------------------------------------
def _band_weights(w_oihw, W):
    """(Cout,Cin,KS,KS) -> (KS, W*Cin, OW1*Cout) width-banded matmul weights.

    Band[kh][(ow+kw)*Cin + ci, ow*Cout + co] = w[co, ci, kh, kw]; zeros elsewhere.
    """
    Cout, Cin = w_oihw.shape[0], w_oihw.shape[1]
    OW1 = W - KS + 1
    wt = jnp.transpose(w_oihw, (2, 3, 1, 0)).astype(jnp.float32)    # (KH,KW,Cin,Cout)
    bands = []
    for kh in range(KS):
        wk = wt[kh].reshape(KS * Cin, Cout)                         # rows = (kw, ci)
        cols = []
        for ow in range(OW1):
            top = ow * Cin
            bot = W * Cin - top - KS * Cin
            cols.append(jnp.pad(wk, ((top, bot), (0, 0))))
        bands.append(jnp.concatenate(cols, axis=1))                 # (W*Cin, OW1*Cout)
    return jnp.stack(bands, axis=0)


def _wsum_weights(w_oihw, OW1, OW2):
    """(Cout,Cin,KS,KS) -> (KS, OW1*Cin, Cout) width-window-summed weights.

    B[kh][ow*Cin + ci, co] = sum_{kw : 0 <= ow-kw < OW2} w[co, ci, kh, kw]
    so that mean-pooled conv2 becomes KS matmuls + row-window sums.
    """
    Cout, Cin = w_oihw.shape[0], w_oihw.shape[1]
    wt = jnp.transpose(w_oihw, (2, 3, 1, 0)).astype(jnp.float32)    # (KH,KW,Cin,Cout)
    mats = []
    for kh in range(KS):
        rows = []
        for ow in range(OW1):
            lo = max(0, ow - (OW2 - 1))
            hi = min(KS - 1, ow)
            rows.append(jnp.sum(wt[kh, lo:hi + 1], axis=0))         # (Cin, Cout)
        mats.append(jnp.concatenate(rows, axis=0))                  # (OW1*Cin, Cout)
    return jnp.stack(mats, axis=0)


# ---------------------------------------------------------------------------
# Fused forward kernel
# ---------------------------------------------------------------------------
def _make_kernel(Bblk, H, W, C, NO):
    OH1, OW1 = H - KS + 1, W - KS + 1
    OH2, OW2 = OH1 - KS + 1, OW1 - KS + 1
    LW = OW1 * C
    inv_area = 1.0 / float(OH2 * OW2)

    # row offsets inside the packed small-weights array
    r_bb1, r_b1, r_w1o = 0, 1, 2
    r_bb2 = 2 + C
    r_b2 = 3 + C
    r_d1w = 4 + C
    r_d1b = 4 + 2 * C
    r_d3w = 5 + 2 * C
    r_d3b = 5 + 3 * C

    def kernel(x_ref, obj_ref, wband_ref, wsum_ref, small_ref, out_ref, hpad_ref):
        # unpack the small constants (static slices of one packed array)
        SW = small_ref[...]
        bb1t = SW[r_bb1:r_bb1 + 1, 0:LW]        # (1, LW)  convbox1 bias, width-tiled
        b1t = SW[r_b1:r_b1 + 1, 0:LW]           # (1, LW)  conv1 bias, width-tiled
        w1ot = SW[r_w1o:r_w1o + C, 0:LW]        # (C, LW)  summed conv1 obj-weights, tiled
        bb2 = SW[r_bb2:r_bb2 + 1, 0:C]          # (1, C)
        b2 = SW[r_b2:r_b2 + 1, 0:C]             # (1, C)
        d1w = SW[r_d1w:r_d1w + C, 0:C]          # (C, C)
        d1b = SW[r_d1b:r_d1b + 1, 0:C]          # (1, C)
        d3w = SW[r_d3w:r_d3w + C, 0:NO]         # (C, NO)
        d3b = SW[r_d3b:r_d3b + 1, 0:NO]         # (1, NO)

        # zero the padded-activation scratch (rows OH1..H-1 stay zero all step)
        hpad_ref[...] = jnp.zeros((Bblk, H, LW), jnp.float32)

        def conv_band(x2d, base):
            # 5 banded matmuls + row shifts -> conv pre-activation (Bblk, OH1, LW)
            acc = jnp.zeros((Bblk, OH1, LW), jnp.float32)
            for kh in range(KS):
                p = jnp.dot(x2d, wband_ref[base + kh],
                            preferred_element_type=jnp.float32)      # (Bblk*H, LW)
                p3 = p.reshape(Bblk, H, LW)
                acc = acc + p3[:, kh:kh + OH1, :]
            return acc

        def conv_sum(h2d, base):
            # sum over the OH2 x OW2 valid-conv outputs of the second conv
            s = jnp.zeros((Bblk, C), jnp.float32)
            for kh in range(KS):
                r = jnp.dot(h2d, wsum_ref[base + kh],
                            preferred_element_type=jnp.float32)      # (Bblk*H, C)
                r3 = r.reshape(Bblk, H, C)
                s = s + jnp.sum(r3[:, kh:kh + OH2, :], axis=1)
            return s

        # ---------------- object-embedding branch ----------------
        obj2d = obj_ref[...].reshape(Bblk * H, W * C)
        hb = _gelu(conv_band(obj2d, 0) + bb1t)                        # gelu(convbox1)
        hpad_ref[:, 0:OH1, :] = hb
        hb2d = hpad_ref[...].reshape(Bblk * H, LW)
        obj_mean = conv_sum(hb2d, 0) * inv_area + bb2                 # mean(convbox2)

        # ---------------- main branch ----------------
        # conv1(cat(x, broadcast(obj_mean))) == conv1_x(x) + obj_mean @ sumW1_obj + b1
        x2d = x_ref[...].reshape(Bblk * H, W * C)
        cst = jnp.dot(obj_mean, w1ot,
                      preferred_element_type=jnp.float32) + b1t       # (Bblk, LW)
        h1 = _gelu(conv_band(x2d, KS) + cst[:, None, :])              # gelu(conv1)
        hpad_ref[:, 0:OH1, :] = h1
        h2d = hpad_ref[...].reshape(Bblk * H, LW)
        feat = conv_sum(h2d, KS) * inv_area + b2                      # mean(conv2)

        # ---------------- dense head ----------------
        hd = _gelu(jnp.dot(feat, d1w, preferred_element_type=jnp.float32) + d1b)
        logits = jnp.dot(hd, d3w, preferred_element_type=jnp.float32) + d3b
        out_ref[...] = jax.nn.sigmoid(logits)

    return kernel


def box_mlp_model_conv(x_nchw, obj_nchw, params):
    B, C, H, W = x_nchw.shape
    NO = params['d3w'].shape[0]
    OH1, OW1 = H - KS + 1, W - KS + 1
    OH2, OW2 = OH1 - KS + 1, OW1 - KS + 1
    LW = OW1 * C
    SMW = max(LW, NO, C)

    # NCHW -> (B, H, W*C): (b, h) on sublanes, (w, c) fused on lanes
    def to_rows(a):
        return jnp.transpose(a, (0, 2, 3, 1)).reshape(B, H, W * C).astype(jnp.float32)

    x = to_rows(x_nchw)
    obj = to_rows(obj_nchw)

    # conv1 split: part acting on x, and spatially-summed part acting on obj_mean
    w1 = params['w1']
    w1x, w1o = w1[:, :C], w1[:, C:]

    wband = jnp.concatenate([_band_weights(params['wb1'], W),        # convbox1
                             _band_weights(w1x, W)], axis=0)          # conv1 (x part)
    wsum = jnp.concatenate([_wsum_weights(params['wb2'], OW1, OW2),   # convbox2 + mean
                            _wsum_weights(params['w2'], OW1, OW2)],   # conv2 + mean
                           axis=0)

    w1o_sum = jnp.transpose(jnp.sum(w1o, axis=(2, 3)))                # (Cin, Cout)
    w1o_t = jnp.tile(w1o_sum, (1, OW1)).astype(jnp.float32)           # (C, LW)

    def padw(a):
        a = jnp.asarray(a, jnp.float32)
        return jnp.pad(a, ((0, 0), (0, SMW - a.shape[-1])))

    smallw = jnp.concatenate([
        padw(jnp.tile(params['bb1'], OW1).reshape(1, LW)),
        padw(jnp.tile(params['b1'], OW1).reshape(1, LW)),
        padw(w1o_t),
        padw(params['bb2'].reshape(1, C)),
        padw(params['b2'].reshape(1, C)),
        padw(params['d1w'].T),
        padw(params['d1b'].reshape(1, C)),
        padw(params['d3w'].T),
        padw(params['d3b'].reshape(1, NO)),
    ], axis=0)                                                        # (6 + 3C, SMW)

    # batch blocking: whole batch per step when small, else blocks of 16
    BBLK = B if B <= 16 else 16
    Bpad = ((B + BBLK - 1) // BBLK) * BBLK
    if Bpad != B:
        pad = Bpad - B
        x = jnp.concatenate([x, jnp.zeros((pad, H, W * C), jnp.float32)], axis=0)
        obj = jnp.concatenate([obj, jnp.zeros((pad, H, W * C), jnp.float32)], axis=0)

    kernel = _make_kernel(BBLK, H, W, C, NO)

    def const_spec(arr):
        nd = arr.ndim
        return pl.BlockSpec(arr.shape, lambda g, nd=nd: (0,) * nd)

    out = pl.pallas_call(
        kernel,
        out_shape=jax.ShapeDtypeStruct((Bpad, NO), jnp.float32),
        grid_spec=pltpu.PrefetchScalarGridSpec(
            num_scalar_prefetch=0,
            grid=(Bpad // BBLK,),
            in_specs=[
                pl.BlockSpec((BBLK, H, W * C), lambda g: (g, 0, 0)),   # x
                pl.BlockSpec((BBLK, H, W * C), lambda g: (g, 0, 0)),   # objemb
                const_spec(wband),                                     # banded conv weights
                const_spec(wsum),                                      # window-summed weights
                const_spec(smallw),                                    # packed small weights
            ],
            out_specs=pl.BlockSpec((BBLK, NO), lambda g: (g, 0)),
            scratch_shapes=[pltpu.VMEM((BBLK, H, LW), jnp.float32)],   # padded activations
        ),
        compiler_params=pltpu.CompilerParams(
            dimension_semantics=("parallel",)),
    )(x, obj, wband, wsum, smallw)
    return out[:B]


# ---------------------------------------------------------------------------
# Deterministic init + pure-JAX reference (for verification)
# ---------------------------------------------------------------------------
def init_params(key, c, num_outputs):
    def uconv(k, cout, cin):
        k1, k2 = jax.random.split(k)
        bound = 1.0 / math.sqrt(cin * KS * KS)
        w = jax.random.uniform(k1, (cout, cin, KS, KS), jnp.float32, -bound, bound)
        b = jax.random.uniform(k2, (cout,), jnp.float32, -bound, bound)
        return w, b

    def ulin(k, cout, cin):
        k1, k2 = jax.random.split(k)
        bound = 1.0 / math.sqrt(cin)
        w = jax.random.uniform(k1, (cout, cin), jnp.float32, -bound, bound)
        b = jax.random.uniform(k2, (cout,), jnp.float32, -bound, bound)
        return w, b

    keys = jax.random.split(key, 6)
    p = {}
    p['w1'], p['b1'] = uconv(keys[0], c, 2 * c)
    p['w2'], p['b2'] = uconv(keys[1], c, c)
    p['wb1'], p['bb1'] = uconv(keys[2], c, c)
    p['wb2'], p['bb2'] = uconv(keys[3], c, c)
    p['d1w'], p['d1b'] = ulin(keys[4], c, c)
    p['d3w'], p['d3b'] = ulin(keys[5], num_outputs, c)
    return p


def reference_forward(x, obj, p):
    def conv(inp, w, b):
        y = lax.conv_general_dilated(inp, w, (1, 1), 'VALID',
                                     dimension_numbers=('NCHW', 'OIHW', 'NCHW'))
        return y + b[None, :, None, None]

    o = jax.nn.gelu(conv(obj, p['wb1'], p['bb1']), approximate=False)
    o = conv(o, p['wb2'], p['bb2'])
    o = jnp.mean(o, axis=(2, 3))
    ob = jnp.broadcast_to(o[:, :, None, None],
                          (x.shape[0], o.shape[1], x.shape[2], x.shape[3]))
    h = jnp.concatenate([x, ob], axis=1)
    h = jax.nn.gelu(conv(h, p['w1'], p['b1']), approximate=False)
    h = conv(h, p['w2'], p['b2'])
    h = jnp.mean(h, axis=(2, 3))
    h = jax.nn.gelu(h @ p['d1w'].T + p['d1b'], approximate=False)
    h = h @ p['d3w'].T + p['d3b']
    return jax.nn.sigmoid(h)


if __name__ == "__main__":
    B, C, H, W, NO = 2, 4, 16, 16, 4
    key = jax.random.PRNGKey(0)
    kx, ko, kp = jax.random.split(key, 3)
    x = jax.random.normal(kx, (B, C, H, W), jnp.float32)       # PyTorch NCHW input
    objemb = jax.random.normal(ko, (B, C, H, W), jnp.float32)  # PyTorch NCHW input
    params = init_params(kp, C, NO)

    out = jax.block_until_ready(box_mlp_model_conv(x, objemb, params))
    ref = jax.block_until_ready(reference_forward(x, objemb, params))
    assert out.shape == (B, NO)
    np.testing.assert_allclose(np.asarray(out), np.asarray(ref), atol=1e-4, rtol=1e-4)
    print("KERNEL_OK")
</pallas_src>

<mosaic_0001>
module attributes {stable_mosaic.version = 11 : i64} {
  func.func @kernel(%arg0: i32, %arg1: memref<2x16x64xf32, #tpu.memory_space<vmem>>, %arg2: memref<2x16x64xf32, #tpu.memory_space<vmem>>, %arg3: memref<10x64x48xf32, #tpu.memory_space<vmem>>, %arg4: memref<10x48x4xf32, #tpu.memory_space<vmem>>, %arg5: memref<18x48xf32, #tpu.memory_space<vmem>>, %arg6: memref<2x4xf32, #tpu.memory_space<vmem>>, %arg7: memref<2x16x48xf32, #tpu.memory_space<vmem>>) attributes {dimension_semantics = [#tpu.dimension_semantics<parallel>], iteration_bounds = array<i64: 1>, scalar_prefetch = 0 : i64, scratch_operands = 1 : i64, tpu.core_type = #tpu.core_type<tc>, window_params = [{transform_indices = @transform_0, window_bounds = array<i64: 2, 16, 64>}, {transform_indices = @transform_1, window_bounds = array<i64: 2, 16, 64>}, {pipeline_mode = #tpu.pipeline_mode<synchronous>, transform_indices = @transform_2, window_bounds = array<i64: 10, 64, 48>}, {pipeline_mode = #tpu.pipeline_mode<synchronous>, transform_indices = @transform_3, window_bounds = array<i64: 10, 48, 4>}, {pipeline_mode = #tpu.pipeline_mode<synchronous>, transform_indices = @transform_4, window_bounds = array<i64: 18, 48>}, {transform_indices = @transform_5, window_bounds = array<i64: 2, 4>}]} {
    %c0 = arith.constant 0 : index
    %c0_0 = arith.constant 0 : index
    %0 = vector.load %arg5[%c0, %c0_0] : memref<18x48xf32, #tpu.memory_space<vmem>>, vector<18x48xf32>
    %1 = vector.extract_strided_slice %0 {offsets = [0, 0], sizes = [1, 48], strides = [1, 1]} : vector<18x48xf32> to vector<1x48xf32>
    %2 = vector.extract_strided_slice %0 {offsets = [1, 0], sizes = [1, 48], strides = [1, 1]} : vector<18x48xf32> to vector<1x48xf32>
    %3 = vector.extract_strided_slice %0 {offsets = [2, 0], sizes = [4, 48], strides = [1, 1]} : vector<18x48xf32> to vector<4x48xf32>
    %4 = vector.extract_strided_slice %0 {offsets = [6, 0], sizes = [1, 4], strides = [1, 1]} : vector<18x48xf32> to vector<1x4xf32>
    %5 = vector.extract_strided_slice %0 {offsets = [7, 0], sizes = [1, 4], strides = [1, 1]} : vector<18x48xf32> to vector<1x4xf32>
    %6 = vector.extract_strided_slice %0 {offsets = [8, 0], sizes = [4, 4], strides = [1, 1]} : vector<18x48xf32> to vector<4x4xf32>
    %7 = vector.extract_strided_slice %0 {offsets = [12, 0], sizes = [1, 4], strides = [1, 1]} : vector<18x48xf32> to vector<1x4xf32>
    %8 = vector.extract_strided_slice %0 {offsets = [13, 0], sizes = [4, 4], strides = [1, 1]} : vector<18x48xf32> to vector<4x4xf32>
    %9 = vector.extract_strided_slice %0 {offsets = [17, 0], sizes = [1, 4], strides = [1, 1]} : vector<18x48xf32> to vector<1x4xf32>
    %cst = arith.constant 0.000000e+00 : f32
    %10 = vector.broadcast %cst : f32 to vector<2x16x48xf32>
    %c0_1 = arith.constant 0 : index
    %c0_2 = arith.constant 0 : index
    %c0_3 = arith.constant 0 : index
    %11 = vector.load %arg7[%c0_1, %c0_2, %c0_3] : memref<2x16x48xf32, #tpu.memory_space<vmem>>, vector<2x16x48xf32>
    tpu.vector_store %arg7[%c0_1, %c0_2, %c0_3], %10 {strides = array<i32>} : memref<2x16x48xf32, #tpu.memory_space<vmem>>, vector<2x16x48xf32>,
    %c0_4 = arith.constant 0 : index
    %c0_5 = arith.constant 0 : index
    %c0_6 = arith.constant 0 : index
    %12 = vector.load %arg2[%c0_4, %c0_5, %c0_6] : memref<2x16x64xf32, #tpu.memory_space<vmem>>, vector<2x16x64xf32>
    %13 = vector.shape_cast %12 : vector<2x16x64xf32> to vector<32x64xf32>
    %cst_7 = arith.constant 0.000000e+00 : f32
    %14 = vector.broadcast %cst_7 : f32 to vector<2x12x48xf32>
    %c0_8 = arith.constant 0 : index
    %c0_9 = arith.constant 0 : index
    %c0_10 = arith.constant 0 : index
    %15 = vector.load %arg3[%c0_8, %c0_9, %c0_10] : memref<10x64x48xf32, #tpu.memory_space<vmem>>, vector<1x64x48xf32>
    %16 = vector.shape_cast %15 : vector<1x64x48xf32> to vector<64x48xf32>
    %cst_11 = arith.constant dense<0.000000e+00> : vector<32x48xf32>
    %17 = tpu.matmul %13, %16, %cst_11 {dimension_numbers = #tpu.dot_dimension_numbers<[1], [0], [0], [1], [0, 0, 1, 1], [], []>} : vector<32x64xf32>, vector<64x48xf32>, vector<32x48xf32> -> vector<32x48xf32>
    %18 = vector.shape_cast %17 : vector<32x48xf32> to vector<2x16x48xf32>
    %19 = vector.extract_strided_slice %18 {offsets = [0, 0, 0], sizes = [2, 12, 48], strides = [1, 1, 1]} : vector<2x16x48xf32> to vector<2x12x48xf32>
    %20 = arith.addf %14, %19 : vector<2x12x48xf32>
    %c1 = arith.constant 1 : index
    %c0_12 = arith.constant 0 : index
    %c0_13 = arith.constant 0 : index
    %21 = vector.load %arg3[%c1, %c0_12, %c0_13] : memref<10x64x48xf32, #tpu.memory_space<vmem>>, vector<1x64x48xf32>
    %22 = vector.shape_cast %21 : vector<1x64x48xf32> to vector<64x48xf32>
    %cst_14 = arith.constant dense<0.000000e+00> : vector<32x48xf32>
    %23 = tpu.matmul %13, %22, %cst_14 {dimension_numbers = #tpu.dot_dimension_numbers<[1], [0], [0], [1], [0, 0, 1, 1], [], []>} : vector<32x64xf32>, vector<64x48xf32>, vector<32x48xf32> -> vector<32x48xf32>
    %24 = vector.shape_cast %23 : vector<32x48xf32> to vector<2x16x48xf32>
    %25 = vector.extract_strided_slice %24 {offsets = [0, 1, 0], sizes = [2, 12, 48], strides = [1, 1, 1]} : vector<2x16x48xf32> to vector<2x12x48xf32>
    %26 = arith.addf %20, %25 : vector<2x12x48xf32>
    %c2 = arith.constant 2 : index
    %c0_15 = arith.constant 0 : index
    %c0_16 = arith.constant 0 : index
    %27 = vector.load %arg3[%c2, %c0_15, %c0_16] : memref<10x64x48xf32, #tpu.memory_space<vmem>>, vector<1x64x48xf32>
    %28 = vector.shape_cast %27 : vector<1x64x48xf32> to vector<64x48xf32>
    %cst_17 = arith.constant dense<0.000000e+00> : vector<32x48xf32>
    %29 = tpu.matmul %13, %28, %cst_17 {dimension_numbers = #tpu.dot_dimension_numbers<[1], [0], [0], [1], [0, 0, 1, 1], [], []>} : vector<32x64xf32>, vector<64x48xf32>, vector<32x48xf32> -> vector<32x48xf32>
    %30 = vector.shape_cast %29 : vector<32x48xf32> to vector<2x16x48xf32>
    %31 = vector.extract_strided_slice %30 {offsets = [0, 2, 0], sizes = [2, 12, 48], strides = [1, 1, 1]} : vector<2x16x48xf32> to vector<2x12x48xf32>
    %32 = arith.addf %26, %31 : vector<2x12x48xf32>
    %c3 = arith.constant 3 : index
    %c0_18 = arith.constant 0 : index
    %c0_19 = arith.constant 0 : index
    %33 = vector.load %arg3[%c3, %c0_18, %c0_19] : memref<10x64x48xf32, #tpu.memory_space<vmem>>, vector<1x64x48xf32>
    %34 = vector.shape_cast %33 : vector<1x64x48xf32> to vector<64x48xf32>
    %cst_20 = arith.constant dense<0.000000e+00> : vector<32x48xf32>
    %35 = tpu.matmul %13, %34, %cst_20 {dimension_numbers = #tpu.dot_dimension_numbers<[1], [0], [0], [1], [0, 0, 1, 1], [], []>} : vector<32x64xf32>, vector<64x48xf32>, vector<32x48xf32> -> vector<32x48xf32>
    %36 = vector.shape_cast %35 : vector<32x48xf32> to vector<2x16x48xf32>
    %37 = vector.extract_strided_slice %36 {offsets = [0, 3, 0], sizes = [2, 12, 48], strides = [1, 1, 1]} : vector<2x16x48xf32> to vector<2x12x48xf32>
    %38 = arith.addf %32, %37 : vector<2x12x48xf32>
    %c4 = arith.constant 4 : index
    %c0_21 = arith.constant 0 : index
    %c0_22 = arith.constant 0 : index
    %39 = vector.load %arg3[%c4, %c0_21, %c0_22] : memref<10x64x48xf32, #tpu.memory_space<vmem>>, vector<1x64x48xf32>
    %40 = vector.shape_cast %39 : vector<1x64x48xf32> to vector<64x48xf32>
    %cst_23 = arith.constant dense<0.000000e+00> : vector<32x48xf32>
    %41 = tpu.matmul %13, %40, %cst_23 {dimension_numbers = #tpu.dot_dimension_numbers<[1], [0], [0], [1], [0, 0, 1, 1], [], []>} : vector<32x64xf32>, vector<64x48xf32>, vector<32x48xf32> -> vector<32x48xf32>
    %42 = vector.shape_cast %41 : vector<32x48xf32> to vector<2x16x48xf32>
    %43 = vector.extract_strided_slice %42 {offsets = [0, 4, 0], sizes = [2, 12, 48], strides = [1, 1, 1]} : vector<2x16x48xf32> to vector<2x12x48xf32>
    %44 = arith.addf %38, %43 : vector<2x12x48xf32>
    %45 = vector.shape_cast %1 : vector<1x48xf32> to vector<1x1x48xf32>
    %46 = vector.broadcast %45 : vector<1x1x48xf32> to vector<2x12x48xf32>
    %47 = arith.addf %44, %46 : vector<2x12x48xf32>
    %cst_24 = arith.constant 5.000000e-01 : f32
    %48 = vector.broadcast %cst_24 : f32 to vector<2x12x48xf32>
    %49 = arith.mulf %48, %47 : vector<2x12x48xf32>
    %cst_25 = arith.constant 0.707106769 : f32
    %50 = vector.broadcast %cst_25 : f32 to vector<2x12x48xf32>
    %51 = arith.mulf %47, %50 : vector<2x12x48xf32>
    %52 = math.erf %51 : vector<2x12x48xf32>
    %cst_26 = arith.constant 1.000000e+00 : f32
    %53 = vector.broadcast %cst_26 : f32 to vector<2x12x48xf32>
    %54 = arith.addf %53, %52 : vector<2x12x48xf32>
    %55 = arith.mulf %49, %54 : vector<2x12x48xf32>
    %c0_27 = arith.constant 0 : index
    %c0_28 = arith.constant 0 : index
    %c0_29 = arith.constant 0 : index
    %56 = vector.load %arg7[%c0_27, %c0_28, %c0_29] : memref<2x16x48xf32, #tpu.memory_space<vmem>>, vector<2x12x48xf32>
    tpu.vector_store %arg7[%c0_27, %c0_28, %c0_29], %55 {strides = array<i32>} : memref<2x16x48xf32, #tpu.memory_space<vmem>>, vector<2x12x48xf32>,
    %c0_30 = arith.constant 0 : index
    %c0_31 = arith.constant 0 : index
    %c0_32 = arith.constant 0 : index
    %57 = vector.load %arg7[%c0_30, %c0_31, %c0_32] : memref<2x16x48xf32, #tpu.memory_space<vmem>>, vector<2x16x48xf32>
    %58 = vector.shape_cast %57 : vector<2x16x48xf32> to vector<32x48xf32>
    %cst_33 = arith.constant 0.000000e+00 : f32
    %59 = vector.broadcast %cst_33 : f32 to vector<2x4xf32>
    %c0_34 = arith.constant 0 : index
    %c0_35 = arith.constant 0 : index
    %c0_36 = arith.constant 0 : index
    %60 = vector.load %arg4[%c0_34, %c0_35, %c0_36] : memref<10x48x4xf32, #tpu.memory_space<vmem>>, vector<1x48x4xf32>
    %61 = vector.shape_cast %60 : vector<1x48x4xf32> to vector<48x4xf32>
    %cst_37 = arith.constant dense<0.000000e+00> : vector<32x4xf32>
    %62 = tpu.matmul %58, %61, %cst_37 {dimension_numbers = #tpu.dot_dimension_numbers<[1], [0], [0], [1], [0, 0, 1, 1], [], []>} : vector<32x48xf32>, vector<48x4xf32>, vector<32x4xf32> -> vector<32x4xf32>
    %63 = vector.shape_cast %62 : vector<32x4xf32> to vector<2x16x4xf32>
    %64 = vector.extract_strided_slice %63 {offsets = [0, 0, 0], sizes = [2, 8, 4], strides = [1, 1, 1]} : vector<2x16x4xf32> to vector<2x8x4xf32>
    %cst_38 = arith.constant dense<0.000000e+00> : vector<2x4xf32>
    %65 = vector.multi_reduction <add>, %64, %cst_38 [1] : vector<2x8x4xf32> to vector<2x4xf32>
    %66 = arith.addf %59, %65 : vector<2x4xf32>
    %c1_39 = arith.constant 1 : index
    %c0_40 = arith.constant 0 : index
    %c0_41 = arith.constant 0 : index
    %67 = vector.load %arg4[%c1_39, %c0_40, %c0_41] : memref<10x48x4xf32, #tpu.memory_space<vmem>>, vector<1x48x4xf32>
    %68 = vector.shape_cast %67 : vector<1x48x4xf32> to vector<48x4xf32>
    %cst_42 = arith.constant dense<0.000000e+00> : vector<32x4xf32>
    %69 = tpu.matmul %58, %68, %cst_42 {dimension_numbers = #tpu.dot_dimension_numbers<[1], [0], [0], [1], [0, 0, 1, 1], [], []>} : vector<32x48xf32>, vector<48x4xf32>, vector<32x4xf32> -> vector<32x4xf32>
    %70 = vector.shape_cast %69 : vector<32x4xf32> to vector<2x16x4xf32>
    %71 = vector.extract_strided_slice %70 {offsets = [0, 1, 0], sizes = [2, 8, 4], strides = [1, 1, 1]} : vector<2x16x4xf32> to vector<2x8x4xf32>
    %cst_43 = arith.constant dense<0.000000e+00> : vector<2x4xf32>
    %72 = vector.multi_reduction <add>, %71, %cst_43 [1] : vector<2x8x4xf32> to vector<2x4xf32>
    %73 = arith.addf %66, %72 : vector<2x4xf32>
    %c2_44 = arith.constant 2 : index
    %c0_45 = arith.constant 0 : index
    %c0_46 = arith.constant 0 : index
    %74 = vector.load %arg4[%c2_44, %c0_45, %c0_46] : memref<10x48x4xf32, #tpu.memory_space<vmem>>, vector<1x48x4xf32>
    %75 = vector.shape_cast %74 : vector<1x48x4xf32> to vector<48x4xf32>
    %cst_47 = arith.constant dense<0.000000e+00> : vector<32x4xf32>
    %76 = tpu.matmul %58, %75, %cst_47 {dimension_numbers = #tpu.dot_dimension_numbers<[1], [0], [0], [1], [0, 0, 1, 1], [], []>} : vector<32x48xf32>, vector<48x4xf32>, vector<32x4xf32> -> vector<32x4xf32>
    %77 = vector.shape_cast %76 : vector<32x4xf32> to vector<2x16x4xf32>
    %78 = vector.extract_strided_slice %77 {offsets = [0, 2, 0], sizes = [2, 8, 4], strides = [1, 1, 1]} : vector<2x16x4xf32> to vector<2x8x4xf32>
    %cst_48 = arith.constant dense<0.000000e+00> : vector<2x4xf32>
    %79 = vector.multi_reduction <add>, %78, %cst_48 [1] : vector<2x8x4xf32> to vector<2x4xf32>
    %80 = arith.addf %73, %79 : vector<2x4xf32>
    %c3_49 = arith.constant 3 : index
    %c0_50 = arith.constant 0 : index
    %c0_51 = arith.constant 0 : index
    %81 = vector.load %arg4[%c3_49, %c0_50, %c0_51] : memref<10x48x4xf32, #tpu.memory_space<vmem>>, vector<1x48x4xf32>
    %82 = vector.shape_cast %81 : vector<1x48x4xf32> to vector<48x4xf32>
    %cst_52 = arith.constant dense<0.000000e+00> : vector<32x4xf32>
    %83 = tpu.matmul %58, %82, %cst_52 {dimension_numbers = #tpu.dot_dimension_numbers<[1], [0], [0], [1], [0, 0, 1, 1], [], []>} : vector<32x48xf32>, vector<48x4xf32>, vector<32x4xf32> -> vector<32x4xf32>
    %84 = vector.shape_cast %83 : vector<32x4xf32> to vector<2x16x4xf32>
    %85 = vector.extract_strided_slice %84 {offsets = [0, 3, 0], sizes = [2, 8, 4], strides = [1, 1, 1]} : vector<2x16x4xf32> to vector<2x8x4xf32>
    %cst_53 = arith.constant dense<0.000000e+00> : vector<2x4xf32>
    %86 = vector.multi_reduction <add>, %85, %cst_53 [1] : vector<2x8x4xf32> to vector<2x4xf32>
    %87 = arith.addf %80, %86 : vector<2x4xf32>
    %c4_54 = arith.constant 4 : index
    %c0_55 = arith.constant 0 : index
    %c0_56 = arith.constant 0 : index
    %88 = vector.load %arg4[%c4_54, %c0_55, %c0_56] : memref<10x48x4xf32, #tpu.memory_space<vmem>>, vector<1x48x4xf32>
    %89 = vector.shape_cast %88 : vector<1x48x4xf32> to vector<48x4xf32>
    %cst_57 = arith.constant dense<0.000000e+00> : vector<32x4xf32>
    %90 = tpu.matmul %58, %89, %cst_57 {dimension_numbers = #tpu.dot_dimension_numbers<[1], [0], [0], [1], [0, 0, 1, 1], [], []>} : vector<32x48xf32>, vector<48x4xf32>, vector<32x4xf32> -> vector<32x4xf32>
    %91 = vector.shape_cast %90 : vector<32x4xf32> to vector<2x16x4xf32>
    %92 = vector.extract_strided_slice %91 {offsets = [0, 4, 0], sizes = [2, 8, 4], strides = [1, 1, 1]} : vector<2x16x4xf32> to vector<2x8x4xf32>
    %cst_58 = arith.constant dense<0.000000e+00> : vector<2x4xf32>
    %93 = vector.multi_reduction <add>, %92, %cst_58 [1] : vector<2x8x4xf32> to vector<2x4xf32>
    %94 = arith.addf %87, %93 : vector<2x4xf32>
    %cst_59 = arith.constant 1.562500e-02 : f32
    %95 = vector.broadcast %cst_59 : f32 to vector<2x4xf32>
    %96 = arith.mulf %94, %95 : vector<2x4xf32>
    %97 = vector.broadcast %4 : vector<1x4xf32> to vector<2x4xf32>
    %98 = arith.addf %96, %97 : vector<2x4xf32>
    %c0_60 = arith.constant 0 : index
    %c0_61 = arith.constant 0 : index
    %c0_62 = arith.constant 0 : index
    %99 = vector.load %arg1[%c0_60, %c0_61, %c0_62] : memref<2x16x64xf32, #tpu.memory_space<vmem>>, vector<2x16x64xf32>
    %100 = vector.shape_cast %99 : vector<2x16x64xf32> to vector<32x64xf32>
    %cst_63 = arith.constant dense<0.000000e+00> : vector<2x48xf32>
    %101 = tpu.matmul %98, %3, %cst_63 {dimension_numbers = #tpu.dot_dimension_numbers<[1], [0], [0], [1], [0, 0, 1, 1], [], []>} : vector<2x4xf32>, vector<4x48xf32>, vector<2x48xf32> -> vector<2x48xf32>
    %102 = vector.broadcast %2 : vector<1x48xf32> to vector<2x48xf32>
    %103 = arith.addf %101, %102 : vector<2x48xf32>
    %cst_64 = arith.constant 0.000000e+00 : f32
    %104 = vector.broadcast %cst_64 : f32 to vector<2x12x48xf32>
    %c5 = arith.constant 5 : index
    %c0_65 = arith.constant 0 : index
    %c0_66 = arith.constant 0 : index
    %105 = vector.load %arg3[%c5, %c0_65, %c0_66] : memref<10x64x48xf32, #tpu.memory_space<vmem>>, vector<1x64x48xf32>
    %106 = vector.shape_cast %105 : vector<1x64x48xf32> to vector<64x48xf32>
    %cst_67 = arith.constant dense<0.000000e+00> : vector<32x48xf32>
    %107 = tpu.matmul %100, %106, %cst_67 {dimension_numbers = #tpu.dot_dimension_numbers<[1], [0], [0], [1], [0, 0, 1, 1], [], []>} : vector<32x64xf32>, vector<64x48xf32>, vector<32x48xf32> -> vector<32x48xf32>
    %108 = vector.shape_cast %107 : vector<32x48xf32> to vector<2x16x48xf32>
    %109 = vector.extract_strided_slice %108 {offsets = [0, 0, 0], sizes = [2, 12, 48], strides = [1, 1, 1]} : vector<2x16x48xf32> to vector<2x12x48xf32>
    %110 = arith.addf %104, %109 : vector<2x12x48xf32>
    %c6 = arith.constant 6 : index
    %c0_68 = arith.constant 0 : index
    %c0_69 = arith.constant 0 : index
    %111 = vector.load %arg3[%c6, %c0_68, %c0_69] : memref<10x64x48xf32, #tpu.memory_space<vmem>>, vector<1x64x48xf32>
    %112 = vector.shape_cast %111 : vector<1x64x48xf32> to vector<64x48xf32>
    %cst_70 = arith.constant dense<0.000000e+00> : vector<32x48xf32>
    %113 = tpu.matmul %100, %112, %cst_70 {dimension_numbers = #tpu.dot_dimension_numbers<[1], [0], [0], [1], [0, 0, 1, 1], [], []>} : vector<32x64xf32>, vector<64x48xf32>, vector<32x48xf32> -> vector<32x48xf32>
    %114 = vector.shape_cast %113 : vector<32x48xf32> to vector<2x16x48xf32>
    %115 = vector.extract_strided_slice %114 {offsets = [0, 1, 0], sizes = [2, 12, 48], strides = [1, 1, 1]} : vector<2x16x48xf32> to vector<2x12x48xf32>
    %116 = arith.addf %110, %115 : vector<2x12x48xf32>
    %c7 = arith.constant 7 : index
    %c0_71 = arith.constant 0 : index
    %c0_72 = arith.constant 0 : index
    %117 = vector.load %arg3[%c7, %c0_71, %c0_72] : memref<10x64x48xf32, #tpu.memory_space<vmem>>, vector<1x64x48xf32>
    %118 = vector.shape_cast %117 : vector<1x64x48xf32> to vector<64x48xf32>
    %cst_73 = arith.constant dense<0.000000e+00> : vector<32x48xf32>
    %119 = tpu.matmul %100, %118, %cst_73 {dimension_numbers = #tpu.dot_dimension_numbers<[1], [0], [0], [1], [0, 0, 1, 1], [], []>} : vector<32x64xf32>, vector<64x48xf32>, vector<32x48xf32> -> vector<32x48xf32>
    %120 = vector.shape_cast %119 : vector<32x48xf32> to vector<2x16x48xf32>
    %121 = vector.extract_strided_slice %120 {offsets = [0, 2, 0], sizes = [2, 12, 48], strides = [1, 1, 1]} : vector<2x16x48xf32> to vector<2x12x48xf32>
    %122 = arith.addf %116, %121 : vector<2x12x48xf32>
    %c8 = arith.constant 8 : index
    %c0_74 = arith.constant 0 : index
    %c0_75 = arith.constant 0 : index
    %123 = vector.load %arg3[%c8, %c0_74, %c0_75] : memref<10x64x48xf32, #tpu.memory_space<vmem>>, vector<1x64x48xf32>
    %124 = vector.shape_cast %123 : vector<1x64x48xf32> to vector<64x48xf32>
    %cst_76 = arith.constant dense<0.000000e+00> : vector<32x48xf32>
    %125 = tpu.matmul %100, %124, %cst_76 {dimension_numbers = #tpu.dot_dimension_numbers<[1], [0], [0], [1], [0, 0, 1, 1], [], []>} : vector<32x64xf32>, vector<64x48xf32>, vector<32x48xf32> -> vector<32x48xf32>
    %126 = vector.shape_cast %125 : vector<32x48xf32> to vector<2x16x48xf32>
    %127 = vector.extract_strided_slice %126 {offsets = [0, 3, 0], sizes = [2, 12, 48], strides = [1, 1, 1]} : vector<2x16x48xf32> to vector<2x12x48xf32>
    %128 = arith.addf %122, %127 : vector<2x12x48xf32>
    %c9 = arith.constant 9 : index
    %c0_77 = arith.constant 0 : index
    %c0_78 = arith.constant 0 : index
    %129 = vector.load %arg3[%c9, %c0_77, %c0_78] : memref<10x64x48xf32, #tpu.memory_space<vmem>>, vector<1x64x48xf32>
    %130 = vector.shape_cast %129 : vector<1x64x48xf32> to vector<64x48xf32>
    %cst_79 = arith.constant dense<0.000000e+00> : vector<32x48xf32>
    %131 = tpu.matmul %100, %130, %cst_79 {dimension_numbers = #tpu.dot_dimension_numbers<[1], [0], [0], [1], [0, 0, 1, 1], [], []>} : vector<32x64xf32>, vector<64x48xf32>, vector<32x48xf32> -> vector<32x48xf32>
    %132 = vector.shape_cast %131 : vector<32x48xf32> to vector<2x16x48xf32>
    %133 = vector.extract_strided_slice %132 {offsets = [0, 4, 0], sizes = [2, 12, 48], strides = [1, 1, 1]} : vector<2x16x48xf32> to vector<2x12x48xf32>
    %134 = arith.addf %128, %133 : vector<2x12x48xf32>
    %135 = vector.shape_cast %103 : vector<2x48xf32> to vector<2x1x48xf32>
    %136 = vector.broadcast %135 : vector<2x1x48xf32> to vector<2x12x48xf32>
    %137 = arith.addf %134, %136 : vector<2x12x48xf32>
    %cst_80 = arith.constant 5.000000e-01 : f32
    %138 = vector.broadcast %cst_80 : f32 to vector<2x12x48xf32>
    %139 = arith.mulf %138, %137 : vector<2x12x48xf32>
    %cst_81 = arith.constant 0.707106769 : f32
    %140 = vector.broadcast %cst_81 : f32 to vector<2x12x48xf32>
    %141 = arith.mulf %137, %140 : vector<2x12x48xf32>
    %142 = math.erf %141 : vector<2x12x48xf32>
    %cst_82 = arith.constant 1.000000e+00 : f32
    %143 = vector.broadcast %cst_82 : f32 to vector<2x12x48xf32>
    %144 = arith.addf %143, %142 : vector<2x12x48xf32>
    %145 = arith.mulf %139, %144 : vector<2x12x48xf32>
    %c0_83 = arith.constant 0 : index
    %c0_84 = arith.constant 0 : index
    %c0_85 = arith.constant 0 : index
    %146 = vector.load %arg7[%c0_83, %c0_84, %c0_85] : memref<2x16x48xf32, #tpu.memory_space<vmem>>, vector<2x12x48xf32>
    tpu.vector_store %arg7[%c0_83, %c0_84, %c0_85], %145 {strides = array<i32>} : memref<2x16x48xf32, #tpu.memory_space<vmem>>, vector<2x12x48xf32>,
    %c0_86 = arith.constant 0 : index
    %c0_87 = arith.constant 0 : index
    %c0_88 = arith.constant 0 : index
    %147 = vector.load %arg7[%c0_86, %c0_87, %c0_88] : memref<2x16x48xf32, #tpu.memory_space<vmem>>, vector<2x16x48xf32>
    %148 = vector.shape_cast %147 : vector<2x16x48xf32> to vector<32x48xf32>
    %cst_89 = arith.constant 0.000000e+00 : f32
    %149 = vector.broadcast %cst_89 : f32 to vector<2x4xf32>
    %c5_90 = arith.constant 5 : index
    %c0_91 = arith.constant 0 : index
    %c0_92 = arith.constant 0 : index
    %150 = vector.load %arg4[%c5_90, %c0_91, %c0_92] : memref<10x48x4xf32, #tpu.memory_space<vmem>>, vector<1x48x4xf32>
    %151 = vector.shape_cast %150 : vector<1x48x4xf32> to vector<48x4xf32>
    %cst_93 = arith.constant dense<0.000000e+00> : vector<32x4xf32>
    %152 = tpu.matmul %148, %151, %cst_93 {dimension_numbers = #tpu.dot_dimension_numbers<[1], [0], [0], [1], [0, 0, 1, 1], [], []>} : vector<32x48xf32>, vector<48x4xf32>, vector<32x4xf32> -> vector<32x4xf32>
    %153 = vector.shape_cast %152 : vector<32x4xf32> to vector<2x16x4xf32>
    %154 = vector.extract_strided_slice %153 {offsets = [0, 0, 0], sizes = [2, 8, 4], strides = [1, 1, 1]} : vector<2x16x4xf32> to vector<2x8x4xf32>
    %cst_94 = arith.constant dense<0.000000e+00> : vector<2x4xf32>
    %155 = vector.multi_reduction <add>, %154, %cst_94 [1] : vector<2x8x4xf32> to vector<2x4xf32>
    %156 = arith.addf %149, %155 : vector<2x4xf32>
    %c6_95 = arith.constant 6 : index
    %c0_96 = arith.constant 0 : index
    %c0_97 = arith.constant 0 : index
    %157 = vector.load %arg4[%c6_95, %c0_96, %c0_97] : memref<10x48x4xf32, #tpu.memory_space<vmem>>, vector<1x48x4xf32>
    %158 = vector.shape_cast %157 : vector<1x48x4xf32> to vector<48x4xf32>
    %cst_98 = arith.constant dense<0.000000e+00> : vector<32x4xf32>
    %159 = tpu.matmul %148, %158, %cst_98 {dimension_numbers = #tpu.dot_dimension_numbers<[1], [0], [0], [1], [0, 0, 1, 1], [], []>} : vector<32x48xf32>, vector<48x4xf32>, vector<32x4xf32> -> vector<32x4xf32>
    %160 = vector.shape_cast %159 : vector<32x4xf32> to vector<2x16x4xf32>
    %161 = vector.extract_strided_slice %160 {offsets = [0, 1, 0], sizes = [2, 8, 4], strides = [1, 1, 1]} : vector<2x16x4xf32> to vector<2x8x4xf32>
    %cst_99 = arith.constant dense<0.000000e+00> : vector<2x4xf32>
    %162 = vector.multi_reduction <add>, %161, %cst_99 [1] : vector<2x8x4xf32> to vector<2x4xf32>
    %163 = arith.addf %156, %162 : vector<2x4xf32>
    %c7_100 = arith.constant 7 : index
    %c0_101 = arith.constant 0 : index
    %c0_102 = arith.constant 0 : index
    %164 = vector.load %arg4[%c7_100, %c0_101, %c0_102] : memref<10x48x4xf32, #tpu.memory_space<vmem>>, vector<1x48x4xf32>
    %165 = vector.shape_cast %164 : vector<1x48x4xf32> to vector<48x4xf32>
    %cst_103 = arith.constant dense<0.000000e+00> : vector<32x4xf32>
    %166 = tpu.matmul %148, %165, %cst_103 {dimension_numbers = #tpu.dot_dimension_numbers<[1], [0], [0], [1], [0, 0, 1, 1], [], []>} : vector<32x48xf32>, vector<48x4xf32>, vector<32x4xf32> -> vector<32x4xf32>
    %167 = vector.shape_cast %166 : vector<32x4xf32> to vector<2x16x4xf32>
    %168 = vector.extract_strided_slice %167 {offsets = [0, 2, 0], sizes = [2, 8, 4], strides = [1, 1, 1]} : vector<2x16x4xf32> to vector<2x8x4xf32>
    %cst_104 = arith.constant dense<0.000000e+00> : vector<2x4xf32>
    %169 = vector.multi_reduction <add>, %168, %cst_104 [1] : vector<2x8x4xf32> to vector<2x4xf32>
    %170 = arith.addf %163, %169 : vector<2x4xf32>
    %c8_105 = arith.constant 8 : index
    %c0_106 = arith.constant 0 : index
    %c0_107 = arith.constant 0 : index
    %171 = vector.load %arg4[%c8_105, %c0_106, %c0_107] : memref<10x48x4xf32, #tpu.memory_space<vmem>>, vector<1x48x4xf32>
    %172 = vector.shape_cast %171 : vector<1x48x4xf32> to vector<48x4xf32>
    %cst_108 = arith.constant dense<0.000000e+00> : vector<32x4xf32>
    %173 = tpu.matmul %148, %172, %cst_108 {dimension_numbers = #tpu.dot_dimension_numbers<[1], [0], [0], [1], [0, 0, 1, 1], [], []>} : vector<32x48xf32>, vector<48x4xf32>, vector<32x4xf32> -> vector<32x4xf32>
    %174 = vector.shape_cast %173 : vector<32x4xf32> to vector<2x16x4xf32>
    %175 = vector.extract_strided_slice %174 {offsets = [0, 3, 0], sizes = [2, 8, 4], strides = [1, 1, 1]} : vector<2x16x4xf32> to vector<2x8x4xf32>
    %cst_109 = arith.constant dense<0.000000e+00> : vector<2x4xf32>
    %176 = vector.multi_reduction <add>, %175, %cst_109 [1] : vector<2x8x4xf32> to vector<2x4xf32>
    %177 = arith.addf %170, %176 : vector<2x4xf32>
    %c9_110 = arith.constant 9 : index
    %c0_111 = arith.constant 0 : index
    %c0_112 = arith.constant 0 : index
    %178 = vector.load %arg4[%c9_110, %c0_111, %c0_112] : memref<10x48x4xf32, #tpu.memory_space<vmem>>, vector<1x48x4xf32>
    %179 = vector.shape_cast %178 : vector<1x48x4xf32> to vector<48x4xf32>
    %cst_113 = arith.constant dense<0.000000e+00> : vector<32x4xf32>
    %180 = tpu.matmul %148, %179, %cst_113 {dimension_numbers = #tpu.dot_dimension_numbers<[1], [0], [0], [1], [0, 0, 1, 1], [], []>} : vector<32x48xf32>, vector<48x4xf32>, vector<32x4xf32> -> vector<32x4xf32>
    %181 = vector.shape_cast %180 : vector<32x4xf32> to vector<2x16x4xf32>
    %182 = vector.extract_strided_slice %181 {offsets = [0, 4, 0], sizes = [2, 8, 4], strides = [1, 1, 1]} : vector<2x16x4xf32> to vector<2x8x4xf32>
    %cst_114 = arith.constant dense<0.000000e+00> : vector<2x4xf32>
    %183 = vector.multi_reduction <add>, %182, %cst_114 [1] : vector<2x8x4xf32> to vector<2x4xf32>
    %184 = arith.addf %177, %183 : vector<2x4xf32>
    %cst_115 = arith.constant 1.562500e-02 : f32
    %185 = vector.broadcast %cst_115 : f32 to vector<2x4xf32>
    %186 = arith.mulf %184, %185 : vector<2x4xf32>
    %187 = vector.broadcast %5 : vector<1x4xf32> to vector<2x4xf32>
    %188 = arith.addf %186, %187 : vector<2x4xf32>
    %cst_116 = arith.constant dense<0.000000e+00> : vector<2x4xf32>
    %189 = tpu.matmul %188, %6, %cst_116 {dimension_numbers = #tpu.dot_dimension_numbers<[1], [0], [0], [1], [0, 0, 1, 1], [], []>} : vector<2x4xf32>, vector<4x4xf32>, vector<2x4xf32> -> vector<2x4xf32>
    %190 = vector.broadcast %7 : vector<1x4xf32> to vector<2x4xf32>
    %191 = arith.addf %189, %190 : vector<2x4xf32>
    %cst_117 = arith.constant 5.000000e-01 : f32
    %192 = vector.broadcast %cst_117 : f32 to vector<2x4xf32>
    %193 = arith.mulf %192, %191 : vector<2x4xf32>
    %cst_118 = arith.constant 0.707106769 : f32
    %194 = vector.broadcast %cst_118 : f32 to vector<2x4xf32>
    %195 = arith.mulf %191, %194 : vector<2x4xf32>
    %196 = math.erf %195 : vector<2x4xf32>
    %cst_119 = arith.constant 1.000000e+00 : f32
    %197 = vector.broadcast %cst_119 : f32 to vector<2x4xf32>
    %198 = arith.addf %197, %196 : vector<2x4xf32>
    %199 = arith.mulf %193, %198 : vector<2x4xf32>
    %cst_120 = arith.constant dense<0.000000e+00> : vector<2x4xf32>
    %200 = tpu.matmul %199, %8, %cst_120 {dimension_numbers = #tpu.dot_dimension_numbers<[1], [0], [0], [1], [0, 0, 1, 1], [], []>} : vector<2x4xf32>, vector<4x4xf32>, vector<2x4xf32> -> vector<2x4xf32>
    %201 = vector.broadcast %9 : vector<1x4xf32> to vector<2x4xf32>
    %202 = arith.addf %200, %201 : vector<2x4xf32>
    %203 = arith.negf %202 : vector<2x4xf32>
    %204 = math.exp %203 : vector<2x4xf32>
    %cst_121 = arith.constant 1.000000e+00 : f32
    %205 = vector.broadcast %cst_121 : f32 to vector<2x4xf32>
    %206 = arith.addf %205, %204 : vector<2x4xf32>
    %207 = arith.divf %205, %206 : vector<2x4xf32>
    %c0_122 = arith.constant 0 : index
    %c0_123 = arith.constant 0 : index
    %208 = vector.load %arg6[%c0_122, %c0_123] : memref<2x4xf32, #tpu.memory_space<vmem>>, vector<2x4xf32>
    tpu.vector_store %arg6[%c0_122, %c0_123], %207 {strides = array<i32>} : memref<2x4xf32, #tpu.memory_space<vmem>>, vector<2x4xf32>,
    return
  }
  func.func @transform_0(%arg0: i32) -> (i32, i32, i32) {
    %c0_i32 = arith.constant 0 : i32
    %c0_i32_0 = arith.constant 0 : i32
    %c0_i32_1 = arith.constant 0 : i32
    return %arg0, %c0_i32, %c0_i32_0 : i32, i32, i32
  }
  func.func @transform_1(%arg0: i32) -> (i32, i32, i32) {
    %c0_i32 = arith.constant 0 : i32
    %c0_i32_0 = arith.constant 0 : i32
    %c0_i32_1 = arith.constant 0 : i32
    return %arg0, %c0_i32, %c0_i32_0 : i32, i32, i32
  }
  func.func @transform_2(%arg0: i32) -> (i32, i32, i32) {
    %c0_i32 = arith.constant 0 : i32
    %c0_i32_0 = arith.constant 0 : i32
    %c0_i32_1 = arith.constant 0 : i32
    %c0_i32_2 = arith.constant 0 : i32
    return %c0_i32, %c0_i32_0, %c0_i32_1 : i32, i32, i32
  }
  func.func @transform_3(%arg0: i32) -> (i32, i32, i32) {
    %c0_i32 = arith.constant 0 : i32
    %c0_i32_0 = arith.constant 0 : i32
    %c0_i32_1 = arith.constant 0 : i32
    %c0_i32_2 = arith.constant 0 : i32
    return %c0_i32, %c0_i32_0, %c0_i32_1 : i32, i32, i32
  }
  func.func @transform_4(%arg0: i32) -> (i32, i32) {
    %c0_i32 = arith.constant 0 : i32
    %c0_i32_0 = arith.constant 0 : i32
    %c0_i32_1 = arith.constant 0 : i32
    return %c0_i32, %c0_i32_0 : i32, i32
  }
  func.func @transform_5(%arg0: i32) -> (i32, i32) {
    %c0_i32 = arith.constant 0 : i32
    %c0_i32_0 = arith.constant 0 : i32
    return %arg0, %c0_i32 : i32, i32
  }
}

</mosaic_0001>

<llo_original>
// kernel: tpu_custom_call.1
$region0: #{tpu_custom_call.1}
  #allocation0 [shape = 'u32[]', space=smem, size = 0x4, offset = 0x4, fixed_abs, tag = 'smem constant byte address 0x4 - core index']
  #allocation1 [shape = 'u32[144,128]{1,0:T(1,128)}', space=vmem, size = 0x12000, scoped, tag = 'internal scratch']
  #allocation2 [shape = 'f32[2,16,48]{2,1,0:T(8,128)}', space=vmem, size = 0x4000, scoped, tag = 'scratch operand']
  %s0 = inlined_call_operand.vmem [shape: f32[2,16,64], index: 0, kind: input, shape index: {}]
  %s1 = inlined_call_operand.vmem [shape: f32[2,16,64], index: 1, kind: input, shape index: {}]
  %s2 = inlined_call_operand.vmem [shape: f32[10,64,48], index: 2, kind: input, shape index: {}]
  %s3 = inlined_call_operand.vmem [shape: f32[10,48,4], index: 3, kind: input, shape index: {}]
  %s4 = inlined_call_operand.vmem [shape: f32[18,48], index: 4, kind: input, shape index: {}]
  %s5 = inlined_call_operand.hbm [shape: f32[2,4], index: 5, kind: output, shape index: {}]
  %s6 = sld [smem:[#allocation0]]
  $region30: #{tpu_custom_call.1} parent=0
    _
  %s8 = ssub.s32 1, %s6
  %s9 = scalar_select 0, %s8, %s6
  $region1: #{tpu_custom_call.1} parent=0
    #allocation3 [shape = 'u8[1024]{0}', space=vmem, size = 0x400, scoped, tag = 'output window, operand 0, single buffered']
    #allocation4 [shape = 's32[1]{0}', space=sflag, size = 0x4, scoped, tag = 'scoped memory for tpu_custom_call.1']
    %10 = vsyncpa [#allocation4], 0
    // Predicated region
    $region2: #{tpu_custom_call.1} parent=1 // pred_check
      _
    $region3: #{tpu_custom_call.1} parent=1 // pred_check_branch
      %12 = sbr.rel (0) target = $region5
    $region4: #{tpu_custom_call.1} parent=1 // pred_region
      _
    $region5: #{tpu_custom_call.1} parent=1 // pred_fallthru
      _
    // Predicated region
    $region6: #{tpu_custom_call.1} parent=1 // pred_check
      _
    $region7: #{tpu_custom_call.1} parent=1 // pred_check_branch
      %14 = sbr.rel (0) target = $region9
    $region8: #{tpu_custom_call.1} parent=1 // pred_region
      _
    $region9: #{tpu_custom_call.1} parent=1 // pred_fallthru
      _
    // Predicated region
    $region10: #{tpu_custom_call.1} parent=1 // pred_check
      _
    $region11: #{tpu_custom_call.1} parent=1 // pred_check_branch
      %16 = sbr.rel (0) target = $region13
    $region12: #{tpu_custom_call.1} parent=1 // pred_region
      _
    $region13: #{tpu_custom_call.1} parent=1 // pred_fallthru
      _
    // Predicated region
    $region14: #{tpu_custom_call.1} parent=1 // pred_check
      _
    $region15: #{tpu_custom_call.1} parent=1 // pred_check_branch
      %18 = sbr.rel (0) target = $region17
    $region16: #{tpu_custom_call.1} parent=1 // pred_region
      _
    $region17: #{tpu_custom_call.1} parent=1 // pred_fallthru
      _
    // Predicated region
    $region18: #{tpu_custom_call.1} parent=1 // pred_check
      _
    $region19: #{tpu_custom_call.1} parent=1 // pred_check_branch
      %20 = sbr.rel (0) target = $region21
    $region20: #{tpu_custom_call.1} parent=1 // pred_region
      _
    $region21: #{tpu_custom_call.1} parent=1 // pred_fallthru
      _
    %v21 = vld [vmem:[%s4] sm:$0xff]
    %v22 = vld [vmem:[%s4 + $0x8] sm:$0xff]
    %v23 = vld [vmem:[%s4 + $0x10] sm:$0x3]
    %vm24 = vcmask 392192
    %25 = vst.msk [vmem:[#allocation2] sm:$0xff] %vm24, 0.0
    %26 = vst.msk [vmem:[#allocation2 + $0x8] sm:$0xff] %vm24, 0.0
    %27 = vst.msk [vmem:[#allocation2 + $0x10] sm:$0xff] %vm24, 0.0
    %28 = vst.msk [vmem:[#allocation2 + $0x18] sm:$0xff] %vm24, 0.0
    %v29 = vld [vmem:[%s1] sm:$0xff]
    %v30 = vld [vmem:[%s1 + $0x8] sm:$0xff]
    %v31 = vld [vmem:[%s1 + $0x10] sm:$0xff]
    %v32 = vld [vmem:[%s1 + $0x18] sm:$0xff]
    %v33 = vld [vmem:[%s2] sm:$0xff]
    %v34 = vld [vmem:[%s2 + $0x8] sm:$0xff]
    %v35 = vld [vmem:[%s2 + $0x10] sm:$0xff]
    %v36 = vld [vmem:[%s2 + $0x18] sm:$0xff]
    %v37 = vld [vmem:[%s2 + $0x20] sm:$0xff]
    %v38 = vld [vmem:[%s2 + $0x28] sm:$0xff]
    %v39 = vld [vmem:[%s2 + $0x30] sm:$0xff]
    %v40 = vld [vmem:[%s2 + $0x38] sm:$0xff]
    %vm41 = vcmask 523264
    %v43 = vsel %vm41, %v29, 0
    %v46 = vsel %vm41, %v30, 0
    %v49 = vsel %vm41, %v31, 0
    %v52 = vsel %vm41, %v32, 0
    %54 = vmatprep.subr.mxu0 0.0
    %55 = vmatpush1.msra.mxu0 %v33
    %56 = vmatprep.subr.mxu0 0.0
    %57 = vmatpush1.msra.mxu0 %v34
    %58 = vmatprep.subr.mxu0 0.0
    %59 = vmatpush1.msra.mxu0 %v35
    %60 = vmatprep.subr.mxu0 0.0
    %61 = vmatpush1.msra.mxu0 %v36
    %62 = vmatprep.subr.mxu0 0.0
    %63 = vmatpush1.msra.mxu0 %v37
    %64 = vmatprep.subr.mxu0 0.0
    %65 = vmatpush1.msra.mxu0 %v38
    %66 = vmatprep.subr.mxu0 0.0
    %67 = vmatpush1.msra.mxu0 %v39
    %68 = vmatprep.subr.mxu0 0.0
    %69 = vmatpush1.msra.mxu0 %v40
    %70 = vmatprep.subr.mxu0 0.0
    %71 = vmatpush1.msra.mxu0 0.0
    %72 = vmatprep.subr.mxu0 0.0
    %73 = vmatpush1.msra.mxu0 0.0
    %74 = vmatprep.subr.mxu0 0.0
    %75 = vmatpush1.msra.mxu0 0.0
    %76 = vmatprep.subr.mxu0 0.0
    %77 = vmatpush1.msra.mxu0 0.0
    %78 = vmatprep.subr.mxu0 0.0
    %79 = vmatpush1.msra.mxu0 0.0
    %80 = vmatprep.subr.mxu0 0.0
    %81 = vmatpush1.msra.mxu0 0.0
    %82 = vmatprep.subr.mxu0 0.0
    %83 = vmatpush1.msra.mxu0 0.0
    %84 = vmatprep.subr.mxu0 0.0
    %85 = vmatpush1.msra.mxu0 0.0
    %86 = vmatprep.subr.mxu0 0.0
    %87 = vmatpush1.msra.mxu0 0.0
    %88 = vmatprep.subr.mxu0 0.0
    %89 = vmatpush1.msra.mxu0 0.0
    %90 = vmatprep.subr.mxu0 0.0
    %91 = vmatpush1.msra.mxu0 0.0
    %92 = vmatprep.subr.mxu0 0.0
    %93 = vmatpush1.msra.mxu0 0.0
    %94 = vmatprep.subr.mxu0 0.0
    %95 = vmatpush1.msra.mxu0 0.0
    %96 = vmatprep.subr.mxu0 0.0
    %97 = vmatpush1.msra.mxu0 0.0
    %98 = vmatprep.subr.mxu0 0.0
    %99 = vmatpush1.msra.mxu0 0.0
    %100 = vmatprep.subr.mxu0 0.0
    %101 = vmatpush1.msra.mxu0 0.0
    %102 = vmatprep.subr.mxu0 0.0
    %103 = vmatpush1.msra.mxu0 0.0
    %104 = vmatprep.subr.mxu0 0.0
    %105 = vmatpush1.msra.mxu0 0.0
    %106 = vmatprep.subr.mxu0 0.0
    %107 = vmatpush1.msra.mxu0 0.0
    %108 = vmatprep.subr.mxu0 0.0
    %109 = vmatpush1.msra.mxu0 0.0
    %110 = vmatprep.subr.mxu0 0.0
    %111 = vmatpush1.msra.mxu0 0.0
    %112 = vmatprep.subr.mxu0 0.0
    %113 = vmatpush1.msra.mxu0 0.0
    %114 = vmatprep.subr.mxu0 0.0
    %115 = vmatpush1.msra.mxu0 0.0
    %116 = vmatprep.subr.mxu0 0.0
    %117 = vmatpush1.msra.mxu0 0.0
    %118 = vmatprep.mubr.f32.mxu0 0.0
    %119 = vmatmul.mubr.f32.gmra.mrb[0].mxu0 %v43
    %v120 = vpop.f32.mrb[0].mxu0
    %v121 = vadd.f32 0.0, %v120
    %v122 = vpop.f32.mrb[0].mxu0
    %123 = vmatprep.mubr.f32.mxu0 0.0
    %124 = vmatmul.mubr.f32.gmra.mrb[0].mxu0 %v46
    %v125 = vpop.f32.mrb[0].mxu0
    %v126 = vadd.f32 0.0, %v125
    %v127 = vpop.f32.mrb[0].mxu0
    %128 = vmatprep.mubr.f32.mxu0 0.0
    %129 = vmatmul.mubr.f32.gmra.mrb[0].mxu0 %v49
    %v130 = vpop.f32.mrb[0].mxu0
    %v131 = vadd.f32 0.0, %v130
    %v132 = vpop.f32.mrb[0].mxu0
    %133 = vmatprep.mubr.f32.mxu0 0.0
    %134 = vmatmul.mubr.f32.gmra.mrb[0].mxu0 %v52
    %v135 = vpop.f32.mrb[0].mxu0
    %v136 = vadd.f32 0.0, %v135
    %v137 = vpop.f32.mrb[0].mxu0
    %138 = vdwg.mxu0
    %v139 = vadd.f32 %v121, 0.0
    %v140 = vadd.f32 %v126, 0.0
    %v141 = vadd.f32 %v131, 0.0
    %v142 = vadd.f32 %v136, 0.0
    %s143 = scalar_lea.vmem %s2, 64
    %v144 = vld [vmem:[%s143] sm:$0xff]
    %v145 = vld [vmem:[%s143 + $0x8] sm:$0xff]
    %v146 = vld [vmem:[%s143 + $0x10] sm:$0xff]
    %v147 = vld [vmem:[%s143 + $0x18] sm:$0xff]
    %v148 = vld [vmem:[%s143 + $0x20] sm:$0xff]
    %v149 = vld [vmem:[%s143 + $0x28] sm:$0xff]
    %v150 = vld [vmem:[%s143 + $0x30] sm:$0xff]
    %v151 = vld [vmem:[%s143 + $0x38] sm:$0xff]
    %152 = vmatprep.subr.mxu0 0.0
    %153 = vmatpush1.msra.mxu0 %v144
    %154 = vmatprep.subr.mxu0 0.0
    %155 = vmatpush1.msra.mxu0 %v145
    %156 = vmatprep.subr.mxu0 0.0
    %157 = vmatpush1.msra.mxu0 %v146
    %158 = vmatprep.subr.mxu0 0.0
    %159 = vmatpush1.msra.mxu0 %v147
    %160 = vmatprep.subr.mxu0 0.0
    %161 = vmatpush1.msra.mxu0 %v148
    %162 = vmatprep.subr.mxu0 0.0
    %163 = vmatpush1.msra.mxu0 %v149
    %164 = vmatprep.subr.mxu0 0.0
    %165 = vmatpush1.msra.mxu0 %v150
    %166 = vmatprep.subr.mxu0 0.0
    %167 = vmatpush1.msra.mxu0 %v151
    %168 = vmatprep.subr.mxu0 0.0
    %169 = vmatpush1.msra.mxu0 0.0
    %170 = vmatprep.subr.mxu0 0.0
    %171 = vmatpush1.msra.mxu0 0.0
    %172 = vmatprep.subr.mxu0 0.0
    %173 = vmatpush1.msra.mxu0 0.0
    %174 = vmatprep.subr.mxu0 0.0
    %175 = vmatpush1.msra.mxu0 0.0
    %176 = vmatprep.subr.mxu0 0.0
    %177 = vmatpush1.msra.mxu0 0.0
    %178 = vmatprep.subr.mxu0 0.0
    %179 = vmatpush1.msra.mxu0 0.0
    %180 = vmatprep.subr.mxu0 0.0
    %181 = vmatpush1.msra.mxu0 0.0
    %182 = vmatprep.subr.mxu0 0.0
    %183 = vmatpush1.msra.mxu0 0.0
    %184 = vmatprep.subr.mxu0 0.0
    %185 = vmatpush1.msra.mxu0 0.0
    %186 = vmatprep.subr.mxu0 0.0
    %187 = vmatpush1.msra.mxu0 0.0
    %188 = vmatprep.subr.mxu0 0.0
    %189 = vmatpush1.msra.mxu0 0.0
    %190 = vmatprep.subr.mxu0 0.0
    %191 = vmatpush1.msra.mxu0 0.0
    %192 = vmatprep.subr.mxu0 0.0
    %193 = vmatpush1.msra.mxu0 0.0
    %194 = vmatprep.subr.mxu0 0.0
    %195 = vmatpush1.msra.mxu0 0.0
    %196 = vmatprep.subr.mxu0 0.0
    %197 = vmatpush1.msra.mxu0 0.0
    %198 = vmatprep.subr.mxu0 0.0
    %199 = vmatpush1.msra.mxu0 0.0
    %200 = vmatprep.subr.mxu0 0.0
    %201 = vmatpush1.msra.mxu0 0.0
    %202 = vmatprep.subr.mxu0 0.0
    %203 = vmatpush1.msra.mxu0 0.0
    %204 = vmatprep.subr.mxu0 0.0
    %205 = vmatpush1.msra.mxu0 0.0
    %206 = vmatprep.subr.mxu0 0.0
    %207 = vmatpush1.msra.mxu0 0.0
    %208 = vmatprep.subr.mxu0 0.0
    %209 = vmatpush1.msra.mxu0 0.0
    %210 = vmatprep.subr.mxu0 0.0
    %211 = vmatpush1.msra.mxu0 0.0
    %212 = vmatprep.subr.mxu0 0.0
    %213 = vmatpush1.msra.mxu0 0.0
    %214 = vmatprep.subr.mxu0 0.0
    %215 = vmatpush1.msra.mxu0 0.0
    %216 = vmatprep.mubr.f32.mxu0 0.0
    %217 = vmatmul.mubr.f32.gmra.mrb[0].mxu0 %v43
    %v218 = vpop.f32.mrb[0].mxu0
    %v219 = vadd.f32 0.0, %v218
    %v220 = vpop.f32.mrb[0].mxu0
    %221 = vmatprep.mubr.f32.mxu0 0.0
    %222 = vmatmul.mubr.f32.gmra.mrb[0].mxu0 %v46
    %v223 = vpop.f32.mrb[0].mxu0
    %v224 = vadd.f32 0.0, %v223
    %v225 = vpop.f32.mrb[0].mxu0
    %226 = vmatprep.mubr.f32.mxu0 0.0
    %227 = vmatmul.mubr.f32.gmra.mrb[0].mxu0 %v49
    %v228 = vpop.f32.mrb[0].mxu0
    %v229 = vadd.f32 0.0, %v228
    %v230 = vpop.f32.mrb[0].mxu0
    %231 = vmatprep.mubr.f32.mxu0 0.0
    %232 = vmatmul.mubr.f32.gmra.mrb[0].mxu0 %v52
    %v233 = vpop.f32.mrb[0].mxu0
    %v234 = vadd.f32 0.0, %v233
    %v235 = vpop.f32.mrb[0].mxu0
    %236 = vdwg.mxu0
    %vm241 = vcmask 1046528
    %v242 = vrot.slane %v219, 1
    %v243 = vrot.slane %v224, 1
    %v244 = vsel %vm241, %v242, %v243
    %v245 = vrot.slane %v229, 1
    %v246 = vrot.slane %v234, 1
    %v247 = vsel %vm241, %v245, %v246
    %v252 = vadd.f32 %v139, %v244
    %v253 = vadd.f32 %v140, %v243
    %v254 = vadd.f32 %v141, %v247
    %v255 = vadd.f32 %v142, %v246
    %s256 = scalar_lea.vmem %s2, 128
    %v257 = vld [vmem:[%s256] sm:$0xff]
    %v258 = vld [vmem:[%s256 + $0x8] sm:$0xff]
    %v259 = vld [vmem:[%s256 + $0x10] sm:$0xff]
    %v260 = vld [vmem:[%s256 + $0x18] sm:$0xff]
    %v261 = vld [vmem:[%s256 + $0x20] sm:$0xff]
    %v262 = vld [vmem:[%s256 + $0x28] sm:$0xff]
    %v263 = vld [vmem:[%s256 + $0x30] sm:$0xff]
    %v264 = vld [vmem:[%s256 + $0x38] sm:$0xff]
    %265 = vmatprep.subr.mxu0 0.0
    %266 = vmatpush1.msra.mxu0 %v257
    %267 = vmatprep.subr.mxu0 0.0
    %268 = vmatpush1.msra.mxu0 %v258
    %269 = vmatprep.subr.mxu0 0.0
    %270 = vmatpush1.msra.mxu0 %v259
    %271 = vmatprep.subr.mxu0 0.0
    %272 = vmatpush1.msra.mxu0 %v260
    %273 = vmatprep.subr.mxu0 0.0
    %274 = vmatpush1.msra.mxu0 %v261
    %275 = vmatprep.subr.mxu0 0.0
    %276 = vmatpush1.msra.mxu0 %v262
    %277 = vmatprep.subr.mxu0 0.0
    %278 = vmatpush1.msra.mxu0 %v263
    %279 = vmatprep.subr.mxu0 0.0
    %280 = vmatpush1.msra.mxu0 %v264
    %281 = vmatprep.subr.mxu0 0.0
    %282 = vmatpush1.msra.mxu0 0.0
    %283 = vmatprep.subr.mxu0 0.0
    %284 = vmatpush1.msra.mxu0 0.0
    %285 = vmatprep.subr.mxu0 0.0
    %286 = vmatpush1.msra.mxu0 0.0
    %287 = vmatprep.subr.mxu0 0.0
    %288 = vmatpush1.msra.mxu0 0.0
    %289 = vmatprep.subr.mxu0 0.0
    %290 = vmatpush1.msra.mxu0 0.0
    %291 = vmatprep.subr.mxu0 0.0
    %292 = vmatpush1.msra.mxu0 0.0
    %293 = vmatprep.subr.mxu0 0.0
    %294 = vmatpush1.msra.mxu0 0.0
    %295 = vmatprep.subr.mxu0 0.0
    %296 = vmatpush1.msra.mxu0 0.0
    %297 = vmatprep.subr.mxu0 0.0
    %298 = vmatpush1.msra.mxu0 0.0
    %299 = vmatprep.subr.mxu0 0.0
    %300 = vmatpush1.msra.mxu0 0.0
    %301 = vmatprep.subr.mxu0 0.0
    %302 = vmatpush1.msra.mxu0 0.0
    %303 = vmatprep.subr.mxu0 0.0
    %304 = vmatpush1.msra.mxu0 0.0
    %305 = vmatprep.subr.mxu0 0.0
    %306 = vmatpush1.msra.mxu0 0.0
    %307 = vmatprep.subr.mxu0 0.0
    %308 = vmatpush1.msra.mxu0 0.0
    %309 = vmatprep.subr.mxu0 0.0
    %310 = vmatpush1.msra.mxu0 0.0
    %311 = vmatprep.subr.mxu0 0.0
    %312 = vmatpush1.msra.mxu0 0.0
    %313 = vmatprep.subr.mxu0 0.0
    %314 = vmatpush1.msra.mxu0 0.0
    %315 = vmatprep.subr.mxu0 0.0
    %316 = vmatpush1.msra.mxu0 0.0
    %317 = vmatprep.subr.mxu0 0.0
    %318 = vmatpush1.msra.mxu0 0.0
    %319 = vmatprep.subr.mxu0 0.0
    %320 = vmatpush1.msra.mxu0 0.0
    %321 = vmatprep.subr.mxu0 0.0
    %322 = vmatpush1.msra.mxu0 0.0
    %323 = vmatprep.subr.mxu0 0.0
    %324 = vmatpush1.msra.mxu0 0.0
    %325 = vmatprep.subr.mxu0 0.0
    %326 = vmatpush1.msra.mxu0 0.0
    %327 = vmatprep.subr.mxu0 0.0
    %328 = vmatpush1.msra.mxu0 0.0
    %329 = vmatprep.mubr.f32.mxu0 0.0
    %330 = vmatmul.mubr.f32.gmra.mrb[0].mxu0 %v43
    %v331 = vpop.f32.mrb[0].mxu0
    %v332 = vadd.f32 0.0, %v331
    %v333 = vpop.f32.mrb[0].mxu0
    %334 = vmatprep.mubr.f32.mxu0 0.0
    %335 = vmatmul.mubr.f32.gmra.mrb[0].mxu0 %v46
    %v336 = vpop.f32.mrb[0].mxu0
    %v337 = vadd.f32 0.0, %v336
    %v338 = vpop.f32.mrb[0].mxu0
    %339 = vmatprep.mubr.f32.mxu0 0.0
    %340 = vmatmul.mubr.f32.gmra.mrb[0].mxu0 %v49
    %v341 = vpop.f32.mrb[0].mxu0
    %v342 = vadd.f32 0.0, %v341
    %v343 = vpop.f32.mrb[0].mxu0
    %344 = vmatprep.mubr.f32.mxu0 0.0
    %345 = vmatmul.mubr.f32.gmra.mrb[0].mxu0 %v52
    %v346 = vpop.f32.mrb[0].mxu0
    %v347 = vadd.f32 0.0, %v346
    %v348 = vpop.f32.mrb[0].mxu0
    %349 = vdwg.mxu0
    %vm354 = vcmask 1045504
    %v355 = vrot.slane %v332, 2
    %v356 = vrot.slane %v337, 2
    %v357 = vsel %vm354, %v355, %v356
    %v358 = vrot.slane %v342, 2
    %v359 = vrot.slane %v347, 2
    %v360 = vsel %vm354, %v358, %v359
    %v365 = vadd.f32 %v252, %v357
    %v366 = vadd.f32 %v253, %v356
    %v367 = vadd.f32 %v254, %v360
    %v368 = vadd.f32 %v255, %v359
    %s369 = scalar_lea.vmem %s2, 192
    %v370 = vld [vmem:[%s369] sm:$0xff]
    %v371 = vld [vmem:[%s369 + $0x8] sm:$0xff]
    %v372 = vld [vmem:[%s369 + $0x10] sm:$0xff]
    %v373 = vld [vmem:[%s369 + $0x18] sm:$0xff]
    %v374 = vld [vmem:[%s369 + $0x20] sm:$0xff]
    %v375 = vld [vmem:[%s369 + $0x28] sm:$0xff]
    %v376 = vld [vmem:[%s369 + $0x30] sm:$0xff]
    %v377 = vld [vmem:[%s369 + $0x38] sm:$0xff]
    %378 = vmatprep.subr.mxu0 0.0
    %379 = vmatpush1.msra.mxu0 %v370
    %380 = vmatprep.subr.mxu0 0.0
    %381 = vmatpush1.msra.mxu0 %v371
    %382 = vmatprep.subr.mxu0 0.0
    %383 = vmatpush1.msra.mxu0 %v372
    %384 = vmatprep.subr.mxu0 0.0
    %385 = vmatpush1.msra.mxu0 %v373
    %386 = vmatprep.subr.mxu0 0.0
    %387 = vmatpush1.msra.mxu0 %v374
    %388 = vmatprep.subr.mxu0 0.0
    %389 = vmatpush1.msra.mxu0 %v375
    %390 = vmatprep.subr.mxu0 0.0
    %391 = vmatpush1.msra.mxu0 %v376
    %392 = vmatprep.subr.mxu0 0.0
    %393 = vmatpush1.msra.mxu0 %v377
    %394 = vmatprep.subr.mxu0 0.0
    %395 = vmatpush1.msra.mxu0 0.0
    %396 = vmatprep.subr.mxu0 0.0
    %397 = vmatpush1.msra.mxu0 0.0
    %398 = vmatprep.subr.mxu0 0.0
    %399 = vmatpush1.msra.mxu0 0.0
    %400 = vmatprep.subr.mxu0 0.0
    %401 = vmatpush1.msra.mxu0 0.0
    %402 = vmatprep.subr.mxu0 0.0
    %403 = vmatpush1.msra.mxu0 0.0
    %404 = vmatprep.subr.mxu0 0.0
    %405 = vmatpush1.msra.mxu0 0.0
    %406 = vmatprep.subr.mxu0 0.0
    %407 = vmatpush1.msra.mxu0 0.0
    %408 = vmatprep.subr.mxu0 0.0
    %409 = vmatpush1.msra.mxu0 0.0
    %410 = vmatprep.subr.mxu0 0.0
    %411 = vmatpush1.msra.mxu0 0.0
    %412 = vmatprep.subr.mxu0 0.0
    %413 = vmatpush1.msra.mxu0 0.0
    %414 = vmatprep.subr.mxu0 0.0
    %415 = vmatpush1.msra.mxu0 0.0
    %416 = vmatprep.subr.mxu0 0.0
    %417 = vmatpush1.msra.mxu0 0.0
    %418 = vmatprep.subr.mxu0 0.0
    %419 = vmatpush1.msra.mxu0 0.0
    %420 = vmatprep.subr.mxu0 0.0
    %421 = vmatpush1.msra.mxu0 0.0
    %422 = vmatprep.subr.mxu0 0.0
    %423 = vmatpush1.msra.mxu0 0.0
    %424 = vmatprep.subr.mxu0 0.0
    %425 = vmatpush1.msra.mxu0 0.0
    %426 = vmatprep.subr.mxu0 0.0
    %427 = vmatpush1.msra.mxu0 0.0
    %428 = vmatprep.subr.mxu0 0.0
    %429 = vmatpush1.msra.mxu0 0.0
    %430 = vmatprep.subr.mxu0 0.0
    %431 = vmatpush1.msra.mxu0 0.0
    %432 = vmatprep.subr.mxu0 0.0
    %433 = vmatpush1.msra.mxu0 0.0
    %434 = vmatprep.subr.mxu0 0.0
    %435 = vmatpush1.msra.mxu0 0.0
    %436 = vmatprep.subr.mxu0 0.0
    %437 = vmatpush1.msra.mxu0 0.0
    %438 = vmatprep.subr.mxu0 0.0
    %439 = vmatpush1.msra.mxu0 0.0
    %440 = vmatprep.subr.mxu0 0.0
    %441 = vmatpush1.msra.mxu0 0.0
    %442 = vmatprep.mubr.f32.mxu0 0.0
    %443 = vmatmul.mubr.f32.gmra.mrb[0].mxu0 %v43
    %v444 = vpop.f32.mrb[0].mxu0
    %v445 = vadd.f32 0.0, %v444
    %v446 = vpop.f32.mrb[0].mxu0
    %447 = vmatprep.mubr.f32.mxu0 0.0
    %448 = vmatmul.mubr.f32.gmra.mrb[0].mxu0 %v46
    %v449 = vpop.f32.mrb[0].mxu0
    %v450 = vadd.f32 0.0, %v449
    %v451 = vpop.f32.mrb[0].mxu0
    %452 = vmatprep.mubr.f32.mxu0 0.0
    %453 = vmatmul.mubr.f32.gmra.mrb[0].mxu0 %v49
    %v454 = vpop.f32.mrb[0].mxu0
    %v455 = vadd.f32 0.0, %v454
    %v456 = vpop.f32.mrb[0].mxu0
    %457 = vmatprep.mubr.f32.mxu0 0.0
    %458 = vmatmul.mubr.f32.gmra.mrb[0].mxu0 %v52
    %v459 = vpop.f32.mrb[0].mxu0
    %v460 = vadd.f32 0.0, %v459
    %v461 = vpop.f32.mrb[0].mxu0
    %462 = vdwg.mxu0
    %vm467 = vcmask 1044480
    %v468 = vrot.slane %v445, 3
    %v469 = vrot.slane %v450, 3
    %v470 = vsel %vm467, %v468, %v469
    %v471 = vrot.slane %v455, 3
    %v472 = vrot.slane %v460, 3
    %v473 = vsel %vm467, %v471, %v472
    %v478 = vadd.f32 %v365, %v470
    %v479 = vadd.f32 %v366, %v469
    %v480 = vadd.f32 %v367, %v473
    %v481 = vadd.f32 %v368, %v472
    %s482 = scalar_lea.vmem %s2, 256
    %v483 = vld [vmem:[%s482] sm:$0xff]
    %v484 = vld [vmem:[%s482 + $0x8] sm:$0xff]
    %v485 = vld [vmem:[%s482 + $0x10] sm:$0xff]
    %v486 = vld [vmem:[%s482 + $0x18] sm:$0xff]
    %v487 = vld [vmem:[%s482 + $0x20] sm:$0xff]
    %v488 = vld [vmem:[%s482 + $0x28] sm:$0xff]
    %v489 = vld [vmem:[%s482 + $0x30] sm:$0xff]
    %v490 = vld [vmem:[%s482 + $0x38] sm:$0xff]
    %491 = vmatprep.subr.mxu0 0.0
    %492 = vmatpush1.msra.mxu0 %v483
    %493 = vmatprep.subr.mxu0 0.0
    %494 = vmatpush1.msra.mxu0 %v484
    %495 = vmatprep.subr.mxu0 0.0
    %496 = vmatpush1.msra.mxu0 %v485
    %497 = vmatprep.subr.mxu0 0.0
    %498 = vmatpush1.msra.mxu0 %v486
    %499 = vmatprep.subr.mxu0 0.0
    %500 = vmatpush1.msra.mxu0 %v487
    %501 = vmatprep.subr.mxu0 0.0
    %502 = vmatpush1.msra.mxu0 %v488
    %503 = vmatprep.subr.mxu0 0.0
    %504 = vmatpush1.msra.mxu0 %v489
    %505 = vmatprep.subr.mxu0 0.0
    %506 = vmatpush1.msra.mxu0 %v490
    %507 = vmatprep.subr.mxu0 0.0
    %508 = vmatpush1.msra.mxu0 0.0
    %509 = vmatprep.subr.mxu0 0.0
    %510 = vmatpush1.msra.mxu0 0.0
    %511 = vmatprep.subr.mxu0 0.0
    %512 = vmatpush1.msra.mxu0 0.0
    %513 = vmatprep.subr.mxu0 0.0
    %514 = vmatpush1.msra.mxu0 0.0
    %515 = vmatprep.subr.mxu0 0.0
    %516 = vmatpush1.msra.mxu0 0.0
    %517 = vmatprep.subr.mxu0 0.0
    %518 = vmatpush1.msra.mxu0 0.0
    %519 = vmatprep.subr.mxu0 0.0
    %520 = vmatpush1.msra.mxu0 0.0
    %521 = vmatprep.subr.mxu0 0.0
    %522 = vmatpush1.msra.mxu0 0.0
    %523 = vmatprep.subr.mxu0 0.0
    %524 = vmatpush1.msra.mxu0 0.0
    %525 = vmatprep.subr.mxu0 0.0
    %526 = vmatpush1.msra.mxu0 0.0
    %527 = vmatprep.subr.mxu0 0.0
    %528 = vmatpush1.msra.mxu0 0.0
    %529 = vmatprep.subr.mxu0 0.0
    %530 = vmatpush1.msra.mxu0 0.0
    %531 = vmatprep.subr.mxu0 0.0
    %532 = vmatpush1.msra.mxu0 0.0
    %533 = vmatprep.subr.mxu0 0.0
    %534 = vmatpush1.msra.mxu0 0.0
    %535 = vmatprep.subr.mxu0 0.0
    %536 = vmatpush1.msra.mxu0 0.0
    %537 = vmatprep.subr.mxu0 0.0
    %538 = vmatpush1.msra.mxu0 0.0
    %539 = vmatprep.subr.mxu0 0.0
    %540 = vmatpush1.msra.mxu0 0.0
    %541 = vmatprep.subr.mxu0 0.0
    %542 = vmatpush1.msra.mxu0 0.0
    %543 = vmatprep.subr.mxu0 0.0
    %544 = vmatpush1.msra.mxu0 0.0
    %545 = vmatprep.subr.mxu0 0.0
    %546 = vmatpush1.msra.mxu0 0.0
    %547 = vmatprep.subr.mxu0 0.0
    %548 = vmatpush1.msra.mxu0 0.0
    %549 = vmatprep.subr.mxu0 0.0
    %550 = vmatpush1.msra.mxu0 0.0
    %551 = vmatprep.subr.mxu0 0.0
    %552 = vmatpush1.msra.mxu0 0.0
    %553 = vmatprep.subr.mxu0 0.0
    %554 = vmatpush1.msra.mxu0 0.0
    %555 = vmatprep.mubr.f32.mxu0 0.0
    %556 = vmatmul.mubr.f32.gmra.mrb[0].mxu0 %v43
    %v557 = vpop.f32.mrb[0].mxu0
    %v558 = vadd.f32 0.0, %v557
    %v559 = vpop.f32.mrb[0].mxu0
    %560 = vmatprep.mubr.f32.mxu0 0.0
    %561 = vmatmul.mubr.f32.gmra.mrb[0].mxu0 %v46
    %v562 = vpop.f32.mrb[0].mxu0
    %v563 = vadd.f32 0.0, %v562
    %v564 = vpop.f32.mrb[0].mxu0
    %565 = vmatprep.mubr.f32.mxu0 0.0
    %566 = vmatmul.mubr.f32.gmra.mrb[0].mxu0 %v49
    %v567 = vpop.f32.mrb[0].mxu0
    %v568 = vadd.f32 0.0, %v567
    %v569 = vpop.f32.mrb[0].mxu0
    %570 = vmatprep.mubr.f32.mxu0 0.0
    %571 = vmatmul.mubr.f32.gmra.mrb[0].mxu0 %v52
    %v572 = vpop.f32.mrb[0].mxu0
    %v573 = vadd.f32 0.0, %v572
    %v574 = vpop.f32.mrb[0].mxu0
    %575 = vdwg.mxu0
    %vm580 = vcmask 1043456
    %v581 = vrot.slane %v558, 4
    %v582 = vrot.slane %v563, 4
    %v583 = vsel %vm580, %v581, %v582
    %v584 = vrot.slane %v568, 4
    %v585 = vrot.slane %v573, 4
    %v586 = vsel %vm580, %v584, %v585
    %v591 = vadd.f32 %v478, %v583
    %v592 = vadd.f32 %v479, %v582
    %v593 = vadd.f32 %v480, %v586
    %v594 = vadd.f32 %v481, %v585
    %v595 = vlaneseq
    %v596 = vshrl.u32 %v595, 7
    %v597 = vsub.s32 0, %v596
    %v598 = vrot.slane %v21, %v597
    %v599 = vadd.f32 %v591, %v598
    %v600 = vadd.f32 %v592, %v598
    %v601 = vadd.f32 %v593, %v598
    %v602 = vadd.f32 %v594, %v598
    %v603 = vmul.f32 %v599, 0.5
    %v604 = vmul.f32 %v600, 0.5
    %v605 = vmul.f32 %v601, 0.5
    %v606 = vmul.f32 %v602, 0.5
    %v607 = vmul.f32 %v599, 0.70710677
    %v608 = vmul.f32 %v600, 0.70710677
    %v609 = vmul.f32 %v601, 0.70710677
    %v610 = vmul.f32 %v602, 0.70710677
    %v611 = verf.f32.pop %v607
    %v612 = verf.f32.pop %v608
    %v613 = verf.f32.pop %v609
    %v614 = verf.f32.pop %v610
    %v615 = vadd.f32 %v611, 1.0
    %v616 = vadd.f32 %v612, 1.0
    %v617 = vadd.f32 %v613, 1.0
    %v618 = vadd.f32 %v614, 1.0
    %v619 = vmul.f32 %v603, %v615
    %v620 = vmul.f32 %v604, %v616
    %v621 = vmul.f32 %v605, %v617
    %v622 = vmul.f32 %v606, %v618
    %623 = vst.msk [vmem:[#allocation2] sm:$0xff] %vm24, %v619
    %vm624 = vcmask 388096
    %625 = vst.msk [vmem:[#allocation2 + $0x8] sm:$0xf] %vm624, %v620
    %626 = vst.msk [vmem:[#allocation2 + $0x10] sm:$0xff] %vm24, %v621
    %627 = vst.msk [vmem:[#allocation2 + $0x18] sm:$0xf] %vm624, %v622
    %v628 = vld [vmem:[#allocation2] sm:$0xff]
    %v629 = vld [vmem:[#allocation2 + $0x8] sm:$0xff]
    %v630 = vld [vmem:[#allocation2 + $0x10] sm:$0xff]
    %v631 = vld [vmem:[#allocation2 + $0x18] sm:$0xff]
    %v632 = vld [vmem:[%s3] sm:$0xff]
    %v633 = vld [vmem:[%s3 + $0x8] sm:$0xff]
    %v634 = vld [vmem:[%s3 + $0x10] sm:$0xff]
    %v635 = vld [vmem:[%s3 + $0x18] sm:$0xff]
    %v636 = vld [vmem:[%s3 + $0x20] sm:$0xff]
    %v637 = vld [vmem:[%s3 + $0x28] sm:$0xff]
    %v639 = vsel %vm24, %v628, 0
    %v642 = vsel %vm24, %v629, 0
    %v645 = vsel %vm24, %v630, 0
    %v648 = vsel %vm24, %v631, 0
    %650 = vmatprep.subr.mxu0 0.0
    %651 = vmatpush1.msra.mxu0 %v632
    %652 = vmatprep.subr.mxu0 0.0
    %653 = vmatpush1.msra.mxu0 %v633
    %654 = vmatprep.subr.mxu0 0.0
    %655 = vmatpush1.msra.mxu0 %v634
    %656 = vmatprep.subr.mxu0 0.0
    %657 = vmatpush1.msra.mxu0 %v635
    %658 = vmatprep.subr.mxu0 0.0
    %659 = vmatpush1.msra.mxu0 %v636
    %660 = vmatprep.subr.mxu0 0.0
    %661 = vmatpush1.msra.mxu0 %v637
    %662 = vmatprep.subr.mxu0 0.0
    %663 = vmatpush1.msra.mxu0 0.0
    %664 = vmatprep.subr.mxu0 0.0
    %665 = vmatpush1.msra.mxu0 0.0
    %666 = vmatprep.subr.mxu0 0.0
    %667 = vmatpush1.msra.mxu0 0.0
    %668 = vmatprep.subr.mxu0 0.0
    %669 = vmatpush1.msra.mxu0 0.0
    %670 = vmatprep.subr.mxu0 0.0
    %671 = vmatpush1.msra.mxu0 0.0
    %672 = vmatprep.subr.mxu0 0.0
    %673 = vmatpush1.msra.mxu0 0.0
    %674 = vmatprep.subr.mxu0 0.0
    %675 = vmatpush1.msra.mxu0 0.0
    %676 = vmatprep.subr.mxu0 0.0
    %677 = vmatpush1.msra.mxu0 0.0
    %678 = vmatprep.subr.mxu0 0.0
    %679 = vmatpush1.msra.mxu0 0.0
    %680 = vmatprep.subr.mxu0 0.0
    %681 = vmatpush1.msra.mxu0 0.0
    %682 = vmatprep.subr.mxu0 0.0
    %683 = vmatpush1.msra.mxu0 0.0
    %684 = vmatprep.subr.mxu0 0.0
    %685 = vmatpush1.msra.mxu0 0.0
    %686 = vmatprep.subr.mxu0 0.0
    %687 = vmatpush1.msra.mxu0 0.0
    %688 = vmatprep.subr.mxu0 0.0
    %689 = vmatpush1.msra.mxu0 0.0
    %690 = vmatprep.subr.mxu0 0.0
    %691 = vmatpush1.msra.mxu0 0.0
    %692 = vmatprep.subr.mxu0 0.0
    %693 = vmatpush1.msra.mxu0 0.0
    %694 = vmatprep.subr.mxu0 0.0
    %695 = vmatpush1.msra.mxu0 0.0
    %696 = vmatprep.subr.mxu0 0.0
    %697 = vmatpush1.msra.mxu0 0.0
    %698 = vmatprep.subr.mxu0 0.0
    %699 = vmatpush1.msra.mxu0 0.0
    %700 = vmatprep.subr.mxu0 0.0
    %701 = vmatpush1.msra.mxu0 0.0
    %702 = vmatprep.subr.mxu0 0.0
    %703 = vmatpush1.msra.mxu0 0.0
    %704 = vmatprep.subr.mxu0 0.0
    %705 = vmatpush1.msra.mxu0 0.0
    %706 = vmatprep.subr.mxu0 0.0
    %707 = vmatpush1.msra.mxu0 0.0
    %708 = vmatprep.subr.mxu0 0.0
    %709 = vmatpush1.msra.mxu0 0.0
    %710 = vmatprep.subr.mxu0 0.0
    %711 = vmatpush1.msra.mxu0 0.0
    %712 = vmatprep.subr.mxu0 0.0
    %713 = vmatpush1.msra.mxu0 0.0
    %714 = vmatprep.mubr.f32.mxu0 0.0
    %715 = vmatmul.mubr.f32.gmra.mrb[0].mxu0 %v639
    %v716 = vpop.f32.mrb[0].mxu0
    %v717 = vadd.f32 0.0, %v716
    %v718 = vpop.f32.mrb[0].mxu0
    %719 = vmatprep.mubr.f32.mxu0 0.0
    %720 = vmatmul.mubr.f32.gmra.mrb[0].mxu0 %v642
    %v721 = vpop.f32.mrb[0].mxu0
    %v722 = vpop.f32.mrb[0].mxu0
    %723 = vmatprep.mubr.f32.mxu0 0.0
    %724 = vmatmul.mubr.f32.gmra.mrb[0].mxu0 %v645
    %v725 = vpop.f32.mrb[0].mxu0
    %v726 = vadd.f32 0.0, %v725
    %v727 = vpop.f32.mrb[0].mxu0
    %728 = vmatprep.mubr.f32.mxu0 0.0
    %729 = vmatmul.mubr.f32.gmra.mrb[0].mxu0 %v648
    %v730 = vpop.f32.mrb[0].mxu0
    %v731 = vpop.f32.mrb[0].mxu0
    %732 = vdwg.mxu0
    %vm733 = vcmask 31744
    %v734 = vsel %vm733, %v717, 0.0
    %v735 = vrot.slane %v734, 4
    %v736 = vadd.f32 %v734, %v735
    %v737 = vrot.slane %v736, 2
    %v738 = vadd.f32 %v736, %v737
    %v739 = vrot.slane %v738, 1
    %v740 = vadd.f32 %v738, %v739
    %v741 = vsel %vm733, %v726, 0.0
    %v742 = vrot.slane %v741, 4
    %v743 = vadd.f32 %v741, %v742
    %v744 = vrot.slane %v743, 2
    %v745 = vadd.f32 %v743, %v744
    %v746 = vrot.slane %v745, 1
    %v747 = vadd.f32 %v745, %v746
    %v748 = vadd.f32 %v740, 0.0
    %v749 = vadd.f32 %v747, 0.0
    %s750 = scalar_lea.vmem %s3, 48
    %v751 = vld [vmem:[%s750] sm:$0xff]
    %v752 = vld [vmem:[%s750 + $0x8] sm:$0xff]
    %v753 = vld [vmem:[%s750 + $0x10] sm:$0xff]
    %v754 = vld [vmem:[%s750 + $0x18] sm:$0xff]
    %v755 = vld [vmem:[%s750 + $0x20] sm:$0xff]
    %v756 = vld [vmem:[%s750 + $0x28] sm:$0xff]
    %757 = vmatprep.subr.mxu0 0.0
    %758 = vmatpush1.msra.mxu0 %v751
    %759 = vmatprep.subr.mxu0 0.0
    %760 = vmatpush1.msra.mxu0 %v752
    %761 = vmatprep.subr.mxu0 0.0
    %762 = vmatpush1.msra.mxu0 %v753
    %763 = vmatprep.subr.mxu0 0.0
    %764 = vmatpush1.msra.mxu0 %v754
    %765 = vmatprep.subr.mxu0 0.0
    %766 = vmatpush1.msra.mxu0 %v755
    %767 = vmatprep.subr.mxu0 0.0
    %768 = vmatpush1.msra.mxu0 %v756
    %769 = vmatprep.subr.mxu0 0.0
    %770 = vmatpush1.msra.mxu0 0.0
    %771 = vmatprep.subr.mxu0 0.0
    %772 = vmatpush1.msra.mxu0 0.0
    %773 = vmatprep.subr.mxu0 0.0
    %774 = vmatpush1.msra.mxu0 0.0
    %775 = vmatprep.subr.mxu0 0.0
    %776 = vmatpush1.msra.mxu0 0.0
    %777 = vmatprep.subr.mxu0 0.0
    %778 = vmatpush1.msra.mxu0 0.0
    %779 = vmatprep.subr.mxu0 0.0
    %780 = vmatpush1.msra.mxu0 0.0
    %781 = vmatprep.subr.mxu0 0.0
    %782 = vmatpush1.msra.mxu0 0.0
    %783 = vmatprep.subr.mxu0 0.0
    %784 = vmatpush1.msra.mxu0 0.0
    %785 = vmatprep.subr.mxu0 0.0
    %786 = vmatpush1.msra.mxu0 0.0
    %787 = vmatprep.subr.mxu0 0.0
    %788 = vmatpush1.msra.mxu0 0.0
    %789 = vmatprep.subr.mxu0 0.0
    %790 = vmatpush1.msra.mxu0 0.0
    %791 = vmatprep.subr.mxu0 0.0
    %792 = vmatpush1.msra.mxu0 0.0
    %793 = vmatprep.subr.mxu0 0.0
    %794 = vmatpush1.msra.mxu0 0.0
    %795 = vmatprep.subr.mxu0 0.0
    %796 = vmatpush1.msra.mxu0 0.0
    %797 = vmatprep.subr.mxu0 0.0
    %798 = vmatpush1.msra.mxu0 0.0
    %799 = vmatprep.subr.mxu0 0.0
    %800 = vmatpush1.msra.mxu0 0.0
    %801 = vmatprep.subr.mxu0 0.0
    %802 = vmatpush1.msra.mxu0 0.0
    %803 = vmatprep.subr.mxu0 0.0
    %804 = vmatpush1.msra.mxu0 0.0
    %805 = vmatprep.subr.mxu0 0.0
    %806 = vmatpush1.msra.mxu0 0.0
    %807 = vmatprep.subr.mxu0 0.0
    %808 = vmatpush1.msra.mxu0 0.0
    %809 = vmatprep.subr.mxu0 0.0
    %810 = vmatpush1.msra.mxu0 0.0
    %811 = vmatprep.subr.mxu0 0.0
    %812 = vmatpush1.msra.mxu0 0.0
    %813 = vmatprep.subr.mxu0 0.0
    %814 = vmatpush1.msra.mxu0 0.0
    %815 = vmatprep.subr.mxu0 0.0
    %816 = vmatpush1.msra.mxu0 0.0
    %817 = vmatprep.subr.mxu0 0.0
    %818 = vmatpush1.msra.mxu0 0.0
    %819 = vmatprep.subr.mxu0 0.0
    %820 = vmatpush1.msra.mxu0 0.0
    %821 = vmatprep.mubr.f32.mxu0 0.0
    %822 = vmatmul.mubr.f32.gmra.mrb[0].mxu0 %v639
    %v823 = vpop.f32.mrb[0].mxu0
    %v824 = vadd.f32 0.0, %v823
    %v825 = vpop.f32.mrb[0].mxu0
    %826 = vmatprep.mubr.f32.mxu0 0.0
    %827 = vmatmul.mubr.f32.gmra.mrb[0].mxu0 %v642
    %v828 = vpop.f32.mrb[0].mxu0
    %v829 = vadd.f32 0.0, %v828
    %v830 = vpop.f32.mrb[0].mxu0
    %831 = vmatprep.mubr.f32.mxu0 0.0
    %832 = vmatmul.mubr.f32.gmra.mrb[0].mxu0 %v645
    %v833 = vpop.f32.mrb[0].mxu0
    %v834 = vadd.f32 0.0, %v833
    %v835 = vpop.f32.mrb[0].mxu0
    %836 = vmatprep.mubr.f32.mxu0 0.0
    %837 = vmatmul.mubr.f32.gmra.mrb[0].mxu0 %v648
    %v838 = vpop.f32.mrb[0].mxu0
    %v839 = vadd.f32 0.0, %v838
    %v840 = vpop.f32.mrb[0].mxu0
    %841 = vdwg.mxu0
    %v846 = vrot.slane %v824, 1
    %v847 = vrot.slane %v829, 1
    %v848 = vsel %vm241, %v846, %v847
    %v849 = vrot.slane %v834, 1
    %v850 = vrot.slane %v839, 1
    %v851 = vsel %vm241, %v849, %v850
    %v854 = vsel %vm733, %v848, 0.0
    %v855 = vrot.slane %v854, 4
    %v856 = vadd.f32 %v854, %v855
    %v857 = vrot.slane %v856, 2
    %v858 = vadd.f32 %v856, %v857
    %v859 = vrot.slane %v858, 1
    %v860 = vadd.f32 %v858, %v859
    %v861 = vsel %vm733, %v851, 0.0
    %v862 = vrot.slane %v861, 4
    %v863 = vadd.f32 %v861, %v862
    %v864 = vrot.slane %v863, 2
    %v865 = vadd.f32 %v863, %v864
    %v866 = vrot.slane %v865, 1
    %v867 = vadd.f32 %v865, %v866
    %v868 = vadd.f32 %v748, %v860
    %v869 = vadd.f32 %v749, %v867
    %s870 = scalar_lea.vmem %s3, 96
    %v871 = vld [vmem:[%s870] sm:$0xff]
    %v872 = vld [vmem:[%s870 + $0x8] sm:$0xff]
    %v873 = vld [vmem:[%s870 + $0x10] sm:$0xff]
    %v874 = vld [vmem:[%s870 + $0x18] sm:$0xff]
    %v875 = vld [vmem:[%s870 + $0x20] sm:$0xff]
    %v876 = vld [vmem:[%s870 + $0x28] sm:$0xff]
    %877 = vmatprep.subr.mxu0 0.0
    %878 = vmatpush1.msra.mxu0 %v871
    %879 = vmatprep.subr.mxu0 0.0
    %880 = vmatpush1.msra.mxu0 %v872
    %881 = vmatprep.subr.mxu0 0.0
    %882 = vmatpush1.msra.mxu0 %v873
    %883 = vmatprep.subr.mxu0 0.0
    %884 = vmatpush1.msra.mxu0 %v874
    %885 = vmatprep.subr.mxu0 0.0
    %886 = vmatpush1.msra.mxu0 %v875
    %887 = vmatprep.subr.mxu0 0.0
    %888 = vmatpush1.msra.mxu0 %v876
    %889 = vmatprep.subr.mxu0 0.0
    %890 = vmatpush1.msra.mxu0 0.0
    %891 = vmatprep.subr.mxu0 0.0
    %892 = vmatpush1.msra.mxu0 0.0
    %893 = vmatprep.subr.mxu0 0.0
    %894 = vmatpush1.msra.mxu0 0.0
    %895 = vmatprep.subr.mxu0 0.0
    %896 = vmatpush1.msra.mxu0 0.0
    %897 = vmatprep.subr.mxu0 0.0
    %898 = vmatpush1.msra.mxu0 0.0
    %899 = vmatprep.subr.mxu0 0.0
    %900 = vmatpush1.msra.mxu0 0.0
    %901 = vmatprep.subr.mxu0 0.0
    %902 = vmatpush1.msra.mxu0 0.0
    %903 = vmatprep.subr.mxu0 0.0
    %904 = vmatpush1.msra.mxu0 0.0
    %905 = vmatprep.subr.mxu0 0.0
    %906 = vmatpush1.msra.mxu0 0.0
    %907 = vmatprep.subr.mxu0 0.0
    %908 = vmatpush1.msra.mxu0 0.0
    %909 = vmatprep.subr.mxu0 0.0
    %910 = vmatpush1.msra.mxu0 0.0
    %911 = vmatprep.subr.mxu0 0.0
    %912 = vmatpush1.msra.mxu0 0.0
    %913 = vmatprep.subr.mxu0 0.0
    %914 = vmatpush1.msra.mxu0 0.0
    %915 = vmatprep.subr.mxu0 0.0
    %916 = vmatpush1.msra.mxu0 0.0
    %917 = vmatprep.subr.mxu0 0.0
    %918 = vmatpush1.msra.mxu0 0.0
    %919 = vmatprep.subr.mxu0 0.0
    %920 = vmatpush1.msra.mxu0 0.0
    %921 = vmatprep.subr.mxu0 0.0
    %922 = vmatpush1.msra.mxu0 0.0
    %923 = vmatprep.subr.mxu0 0.0
    %924 = vmatpush1.msra.mxu0 0.0
    %925 = vmatprep.subr.mxu0 0.0
    %926 = vmatpush1.msra.mxu0 0.0
    %927 = vmatprep.subr.mxu0 0.0
    %928 = vmatpush1.msra.mxu0 0.0
    %929 = vmatprep.subr.mxu0 0.0
    %930 = vmatpush1.msra.mxu0 0.0
    %931 = vmatprep.subr.mxu0 0.0
    %932 = vmatpush1.msra.mxu0 0.0
    %933 = vmatprep.subr.mxu0 0.0
    %934 = vmatpush1.msra.mxu0 0.0
    %935 = vmatprep.subr.mxu0 0.0
    %936 = vmatpush1.msra.mxu0 0.0
    %937 = vmatprep.subr.mxu0 0.0
    %938 = vmatpush1.msra.mxu0 0.0
    %939 = vmatprep.subr.mxu0 0.0
    %940 = vmatpush1.msra.mxu0 0.0
    %941 = vmatprep.mubr.f32.mxu0 0.0
    %942 = vmatmul.mubr.f32.gmra.mrb[0].mxu0 %v639
    %v943 = vpop.f32.mrb[0].mxu0
    %v944 = vadd.f32 0.0, %v943
    %v945 = vpop.f32.mrb[0].mxu0
    %946 = vmatprep.mubr.f32.mxu0 0.0
    %947 = vmatmul.mubr.f32.gmra.mrb[0].mxu0 %v642
    %v948 = vpop.f32.mrb[0].mxu0
    %v949 = vadd.f32 0.0, %v948
    %v950 = vpop.f32.mrb[0].mxu0
    %951 = vmatprep.mubr.f32.mxu0 0.0
    %952 = vmatmul.mubr.f32.gmra.mrb[0].mxu0 %v645
    %v953 = vpop.f32.mrb[0].mxu0
    %v954 = vadd.f32 0.0, %v953
    %v955 = vpop.f32.mrb[0].mxu0
    %956 = vmatprep.mubr.f32.mxu0 0.0
    %957 = vmatmul.mubr.f32.gmra.mrb[0].mxu0 %v648
    %v958 = vpop.f32.mrb[0].mxu0
    %v959 = vadd.f32 0.0, %v958
    %v960 = vpop.f32.mrb[0].mxu0
    %961 = vdwg.mxu0
    %v966 = vrot.slane %v944, 2
    %v967 = vrot.slane %v949, 2
    %v968 = vsel %vm354, %v966, %v967
    %v969 = vrot.slane %v954, 2
    %v970 = vrot.slane %v959, 2
    %v971 = vsel %vm354, %v969, %v970
    %v974 = vsel %vm733, %v968, 0.0
    %v975 = vrot.slane %v974, 4
    %v976 = vadd.f32 %v974, %v975
    %v977 = vrot.slane %v976, 2
    %v978 = vadd.f32 %v976, %v977
    %v979 = vrot.slane %v978, 1
    %v980 = vadd.f32 %v978, %v979
    %v981 = vsel %vm733, %v971, 0.0
    %v982 = vrot.slane %v981, 4
    %v983 = vadd.f32 %v981, %v982
    %v984 = vrot.slane %v983, 2
    %v985 = vadd.f32 %v983, %v984
    %v986 = vrot.slane %v985, 1
    %v987 = vadd.f32 %v985, %v986
    %v988 = vadd.f32 %v868, %v980
    %v989 = vadd.f32 %v869, %v987
    %s990 = scalar_lea.vmem %s3, 144
    %v991 = vld [vmem:[%s990] sm:$0xff]
    %v992 = vld [vmem:[%s990 + $0x8] sm:$0xff]
    %v993 = vld [vmem:[%s990 + $0x10] sm:$0xff]
    %v994 = vld [vmem:[%s990 + $0x18] sm:$0xff]
    %v995 = vld [vmem:[%s990 + $0x20] sm:$0xff]
    %v996 = vld [vmem:[%s990 + $0x28] sm:$0xff]
    %997 = vmatprep.subr.mxu0 0.0
    %998 = vmatpush1.msra.mxu0 %v991
    %999 = vmatprep.subr.mxu0 0.0
    %1000 = vmatpush1.msra.mxu0 %v992
    %1001 = vmatprep.subr.mxu0 0.0
    %1002 = vmatpush1.msra.mxu0 %v993
    %1003 = vmatprep.subr.mxu0 0.0
    %1004 = vmatpush1.msra.mxu0 %v994
    %1005 = vmatprep.subr.mxu0 0.0
    %1006 = vmatpush1.msra.mxu0 %v995
    %1007 = vmatprep.subr.mxu0 0.0
    %1008 = vmatpush1.msra.mxu0 %v996
    %1009 = vmatprep.subr.mxu0 0.0
    %1010 = vmatpush1.msra.mxu0 0.0
    %1011 = vmatprep.subr.mxu0 0.0
    %1012 = vmatpush1.msra.mxu0 0.0
    %1013 = vmatprep.subr.mxu0 0.0
    %1014 = vmatpush1.msra.mxu0 0.0
    %1015 = vmatprep.subr.mxu0 0.0
    %1016 = vmatpush1.msra.mxu0 0.0
    %1017 = vmatprep.subr.mxu0 0.0
    %1018 = vmatpush1.msra.mxu0 0.0
    %1019 = vmatprep.subr.mxu0 0.0
    %1020 = vmatpush1.msra.mxu0 0.0
    %1021 = vmatprep.subr.mxu0 0.0
    %1022 = vmatpush1.msra.mxu0 0.0
    %1023 = vmatprep.subr.mxu0 0.0
    %1024 = vmatpush1.msra.mxu0 0.0
    %1025 = vmatprep.subr.mxu0 0.0
    %1026 = vmatpush1.msra.mxu0 0.0
    %1027 = vmatprep.subr.mxu0 0.0
    %1028 = vmatpush1.msra.mxu0 0.0
    %1029 = vmatprep.subr.mxu0 0.0
    %1030 = vmatpush1.msra.mxu0 0.0
    %1031 = vmatprep.subr.mxu0 0.0
    %1032 = vmatpush1.msra.mxu0 0.0
    %1033 = vmatprep.subr.mxu0 0.0
    %1034 = vmatpush1.msra.mxu0 0.0
    %1035 = vmatprep.subr.mxu0 0.0
    %1036 = vmatpush1.msra.mxu0 0.0
    %1037 = vmatprep.subr.mxu0 0.0
    %1038 = vmatpush1.msra.mxu0 0.0
    %1039 = vmatprep.subr.mxu0 0.0
    %1040 = vmatpush1.msra.mxu0 0.0
    %1041 = vmatprep.subr.mxu0 0.0
    %1042 = vmatpush1.msra.mxu0 0.0
    %1043 = vmatprep.subr.mxu0 0.0
    %1044 = vmatpush1.msra.mxu0 0.0
    %1045 = vmatprep.subr.mxu0 0.0
    %1046 = vmatpush1.msra.mxu0 0.0
    %1047 = vmatprep.subr.mxu0 0.0
    %1048 = vmatpush1.msra.mxu0 0.0
    %1049 = vmatprep.subr.mxu0 0.0
    %1050 = vmatpush1.msra.mxu0 0.0
    %1051 = vmatprep.subr.mxu0 0.0
    %1052 = vmatpush1.msra.mxu0 0.0
    %1053 = vmatprep.subr.mxu0 0.0
    %1054 = vmatpush1.msra.mxu0 0.0
    %1055 = vmatprep.subr.mxu0 0.0
    %1056 = vmatpush1.msra.mxu0 0.0
    %1057 = vmatprep.subr.mxu0 0.0
    %1058 = vmatpush1.msra.mxu0 0.0
    %1059 = vmatprep.subr.mxu0 0.0
    %1060 = vmatpush1.msra.mxu0 0.0
    %1061 = vmatprep.mubr.f32.mxu0 0.0
    %1062 = vmatmul.mubr.f32.gmra.mrb[0].mxu0 %v639
    %v1063 = vpop.f32.mrb[0].mxu0
    %v1064 = vadd.f32 0.0, %v1063
    %v1065 = vpop.f32.mrb[0].mxu0
    %1066 = vmatprep.mubr.f32.mxu0 0.0
    %1067 = vmatmul.mubr.f32.gmra.mrb[0].mxu0 %v642
    %v1068 = vpop.f32.mrb[0].mxu0
    %v1069 = vadd.f32 0.0, %v1068
    %v1070 = vpop.f32.mrb[0].mxu0
    %1071 = vmatprep.mubr.f32.mxu0 0.0
    %1072 = vmatmul.mubr.f32.gmra.mrb[0].mxu0 %v645
    %v1073 = vpop.f32.mrb[0].mxu0
    %v1074 = vadd.f32 0.0, %v1073
    %v1075 = vpop.f32.mrb[0].mxu0
    %1076 = vmatprep.mubr.f32.mxu0 0.0
    %1077 = vmatmul.mubr.f32.gmra.mrb[0].mxu0 %v648
    %v1078 = vpop.f32.mrb[0].mxu0
    %v1079 = vadd.f32 0.0, %v1078
    %v1080 = vpop.f32.mrb[0].mxu0
    %1081 = vdwg.mxu0
    %v1086 = vrot.slane %v1064, 3
    %v1087 = vrot.slane %v1069, 3
    %v1088 = vsel %vm467, %v1086, %v1087
    %v1089 = vrot.slane %v1074, 3
    %v1090 = vrot.slane %v1079, 3
    %v1091 = vsel %vm467, %v1089, %v1090
    %v1094 = vsel %vm733, %v1088, 0.0
    %v1095 = vrot.slane %v1094, 4
    %v1096 = vadd.f32 %v1094, %v1095
    %v1097 = vrot.slane %v1096, 2
    %v1098 = vadd.f32 %v1096, %v1097
    %v1099 = vrot.slane %v1098, 1
    %v1100 = vadd.f32 %v1098, %v1099
    %v1101 = vsel %vm733, %v1091, 0.0
    %v1102 = vrot.slane %v1101, 4
    %v1103 = vadd.f32 %v1101, %v1102
    %v1104 = vrot.slane %v1103, 2
    %v1105 = vadd.f32 %v1103, %v1104
    %v1106 = vrot.slane %v1105, 1
    %v1107 = vadd.f32 %v1105, %v1106
    %v1108 = vadd.f32 %v988, %v1100
    %v1109 = vadd.f32 %v989, %v1107
    %s1110 = scalar_lea.vmem %s3, 192
    %v1111 = vld [vmem:[%s1110] sm:$0xff]
    %v1112 = vld [vmem:[%s1110 + $0x8] sm:$0xff]
    %v1113 = vld [vmem:[%s1110 + $0x10] sm:$0xff]
    %v1114 = vld [vmem:[%s1110 + $0x18] sm:$0xff]
    %v1115 = vld [vmem:[%s1110 + $0x20] sm:$0xff]
    %v1116 = vld [vmem:[%s1110 + $0x28] sm:$0xff]
    %1117 = vmatprep.subr.mxu0 0.0
    %1118 = vmatpush1.msra.mxu0 %v1111
    %1119 = vmatprep.subr.mxu0 0.0
    %1120 = vmatpush1.msra.mxu0 %v1112
    %1121 = vmatprep.subr.mxu0 0.0
    %1122 = vmatpush1.msra.mxu0 %v1113
    %1123 = vmatprep.subr.mxu0 0.0
    %1124 = vmatpush1.msra.mxu0 %v1114
    %1125 = vmatprep.subr.mxu0 0.0
    %1126 = vmatpush1.msra.mxu0 %v1115
    %1127 = vmatprep.subr.mxu0 0.0
    %1128 = vmatpush1.msra.mxu0 %v1116
    %1129 = vmatprep.subr.mxu0 0.0
    %1130 = vmatpush1.msra.mxu0 0.0
    %1131 = vmatprep.subr.mxu0 0.0
    %1132 = vmatpush1.msra.mxu0 0.0
    %1133 = vmatprep.subr.mxu0 0.0
    %1134 = vmatpush1.msra.mxu0 0.0
    %1135 = vmatprep.subr.mxu0 0.0
    %1136 = vmatpush1.msra.mxu0 0.0
    %1137 = vmatprep.subr.mxu0 0.0
    %1138 = vmatpush1.msra.mxu0 0.0
    %1139 = vmatprep.subr.mxu0 0.0
    %1140 = vmatpush1.msra.mxu0 0.0
    %1141 = vmatprep.subr.mxu0 0.0
    %1142 = vmatpush1.msra.mxu0 0.0
    %1143 = vmatprep.subr.mxu0 0.0
    %1144 = vmatpush1.msra.mxu0 0.0
    %1145 = vmatprep.subr.mxu0 0.0
    %1146 = vmatpush1.msra.mxu0 0.0
    %1147 = vmatprep.subr.mxu0 0.0
    %1148 = vmatpush1.msra.mxu0 0.0
    %1149 = vmatprep.subr.mxu0 0.0
    %1150 = vmatpush1.msra.mxu0 0.0
    %1151 = vmatprep.subr.mxu0 0.0
    %1152 = vmatpush1.msra.mxu0 0.0
    %1153 = vmatprep.subr.mxu0 0.0
    %1154 = vmatpush1.msra.mxu0 0.0
    %1155 = vmatprep.subr.mxu0 0.0
    %1156 = vmatpush1.msra.mxu0 0.0
    %1157 = vmatprep.subr.mxu0 0.0
    %1158 = vmatpush1.msra.mxu0 0.0
    %1159 = vmatprep.subr.mxu0 0.0
    %1160 = vmatpush1.msra.mxu0 0.0
    %1161 = vmatprep.subr.mxu0 0.0
    %1162 = vmatpush1.msra.mxu0 0.0
    %1163 = vmatprep.subr.mxu0 0.0
    %1164 = vmatpush1.msra.mxu0 0.0
    %1165 = vmatprep.subr.mxu0 0.0
    %1166 = vmatpush1.msra.mxu0 0.0
    %1167 = vmatprep.subr.mxu0 0.0
    %1168 = vmatpush1.msra.mxu0 0.0
    %1169 = vmatprep.subr.mxu0 0.0
    %1170 = vmatpush1.msra.mxu0 0.0
    %1171 = vmatprep.subr.mxu0 0.0
    %1172 = vmatpush1.msra.mxu0 0.0
    %1173 = vmatprep.subr.mxu0 0.0
    %1174 = vmatpush1.msra.mxu0 0.0
    %1175 = vmatprep.subr.mxu0 0.0
    %1176 = vmatpush1.msra.mxu0 0.0
    %1177 = vmatprep.subr.mxu0 0.0
    %1178 = vmatpush1.msra.mxu0 0.0
    %1179 = vmatprep.subr.mxu0 0.0
    %1180 = vmatpush1.msra.mxu0 0.0
    %1181 = vmatprep.mubr.f32.mxu0 0.0
    %1182 = vmatmul.mubr.f32.gmra.mrb[0].mxu0 %v639
    %v1183 = vpop.f32.mrb[0].mxu0
    %v1184 = vadd.f32 0.0, %v1183
    %v1185 = vpop.f32.mrb[0].mxu0
    %1186 = vmatprep.mubr.f32.mxu0 0.0
    %1187 = vmatmul.mubr.f32.gmra.mrb[0].mxu0 %v642
    %v1188 = vpop.f32.mrb[0].mxu0
    %v1189 = vadd.f32 0.0, %v1188
    %v1190 = vpop.f32.mrb[0].mxu0
    %1191 = vmatprep.mubr.f32.mxu0 0.0
    %1192 = vmatmul.mubr.f32.gmra.mrb[0].mxu0 %v645
    %v1193 = vpop.f32.mrb[0].mxu0
    %v1194 = vadd.f32 0.0, %v1193
    %v1195 = vpop.f32.mrb[0].mxu0
    %1196 = vmatprep.mubr.f32.mxu0 0.0
    %1197 = vmatmul.mubr.f32.gmra.mrb[0].mxu0 %v648
    %v1198 = vpop.f32.mrb[0].mxu0
    %v1199 = vadd.f32 0.0, %v1198
    %v1200 = vpop.f32.mrb[0].mxu0
    %1201 = vdwg.mxu0
    %v1206 = vrot.slane %v1184, 4
    %v1207 = vrot.slane %v1189, 4
    %v1208 = vsel %vm580, %v1206, %v1207
    %v1209 = vrot.slane %v1194, 4
    %v1210 = vrot.slane %v1199, 4
    %v1211 = vsel %vm580, %v1209, %v1210
    %v1214 = vsel %vm733, %v1208, 0.0
    %v1215 = vrot.slane %v1214, 4
    %v1216 = vadd.f32 %v1214, %v1215
    %v1217 = vrot.slane %v1216, 2
    %v1218 = vadd.f32 %v1216, %v1217
    %v1219 = vrot.slane %v1218, 1
    %v1220 = vadd.f32 %v1218, %v1219
    %v1221 = vsel %vm733, %v1211, 0.0
    %v1222 = vrot.slane %v1221, 4
    %v1223 = vadd.f32 %v1221, %v1222
    %v1224 = vrot.slane %v1223, 2
    %v1225 = vadd.f32 %v1223, %v1224
    %v1226 = vrot.slane %v1225, 1
    %v1227 = vadd.f32 %v1225, %v1226
    %v1228 = vadd.f32 %v1108, %v1220
    %v1229 = vadd.f32 %v1109, %v1227
    %v1230 = vmul.f32 %v1228, 0.015625
    %v1231 = vmul.f32 %v1229, 0.015625
    %v1232 = vlaneseq
    %v1233 = vshrl.u32 %v1232, 7
    %v1234 = vsub.s32 6, %v1233
    %v1235 = vrot.slane %v21, %v1234
    %v1236 = vadd.f32 %v1230, %v1235
    %v1237 = vadd.f32 %v1231, %v1235
    %v1238 = vld [vmem:[%s0] sm:$0xff]
    %v1239 = vld [vmem:[%s0 + $0x8] sm:$0xff]
    %v1240 = vld [vmem:[%s0 + $0x10] sm:$0xff]
    %v1241 = vld [vmem:[%s0 + $0x18] sm:$0xff]
    %v1242 = vlaneseq
    %v1243 = vshrl.u32 %v1242, 7
    %v1244 = vsub.s32 1, %v1243
    %v1245 = vrot.slane %v21, %v1244
    %v1248 = vrot.slane %v1237, 7
    %vm1249 = vcmask 1041409
    %v1250 = vsel %vm1249, %v1248, %v1236
    %v1252 = vrot.slane %v21, 2
    %v1253 = vsel %vm733, %v1250, 0
    %v1255 = vsel %vm580, %v1252, 0
    %1257 = vmatprep.subr.mxu0 0.0
    %1258 = vmatpush1.msra.mxu0 %v1255
    %1259 = vmatprep.subr.mxu0 0.0
    %1260 = vmatpush1.msra.mxu0 0.0
    %1261 = vmatprep.subr.mxu0 0.0
    %1262 = vmatpush1.msra.mxu0 0.0
    %1263 = vmatprep.subr.mxu0 0.0
    %1264 = vmatpush1.msra.mxu0 0.0
    %1265 = vmatprep.subr.mxu0 0.0
    %1266 = vmatpush1.msra.mxu0 0.0
    %1267 = vmatprep.subr.mxu0 0.0
    %1268 = vmatpush1.msra.mxu0 0.0
    %1269 = vmatprep.subr.mxu0 0.0
    %1270 = vmatpush1.msra.mxu0 0.0
    %1271 = vmatprep.subr.mxu0 0.0
    %1272 = vmatpush1.msra.mxu0 0.0
    %1273 = vmatprep.subr.mxu0 0.0
    %1274 = vmatpush1.msra.mxu0 0.0
    %1275 = vmatprep.subr.mxu0 0.0
    %1276 = vmatpush1.msra.mxu0 0.0
    %1277 = vmatprep.subr.mxu0 0.0
    %1278 = vmatpush1.msra.mxu0 0.0
    %1279 = vmatprep.subr.mxu0 0.0
    %1280 = vmatpush1.msra.mxu0 0.0
    %1281 = vmatprep.subr.mxu0 0.0
    %1282 = vmatpush1.msra.mxu0 0.0
    %1283 = vmatprep.subr.mxu0 0.0
    %1284 = vmatpush1.msra.mxu0 0.0
    %1285 = vmatprep.subr.mxu0 0.0
    %1286 = vmatpush1.msra.mxu0 0.0
    %1287 = vmatprep.subr.mxu0 0.0
    %1288 = vmatpush1.msra.mxu0 0.0
    %1289 = vmatprep.subr.mxu0 0.0
    %1290 = vmatpush1.msra.mxu0 0.0
    %1291 = vmatprep.subr.mxu0 0.0
    %1292 = vmatpush1.msra.mxu0 0.0
    %1293 = vmatprep.subr.mxu0 0.0
    %1294 = vmatpush1.msra.mxu0 0.0
    %1295 = vmatprep.subr.mxu0 0.0
    %1296 = vmatpush1.msra.mxu0 0.0
    %1297 = vmatprep.subr.mxu0 0.0
    %1298 = vmatpush1.msra.mxu0 0.0
    %1299 = vmatprep.subr.mxu0 0.0
    %1300 = vmatpush1.msra.mxu0 0.0
    %1301 = vmatprep.subr.mxu0 0.0
    %1302 = vmatpush1.msra.mxu0 0.0
    %1303 = vmatprep.subr.mxu0 0.0
    %1304 = vmatpush1.msra.mxu0 0.0
    %1305 = vmatprep.subr.mxu0 0.0
    %1306 = vmatpush1.msra.mxu0 0.0
    %1307 = vmatprep.subr.mxu0 0.0
    %1308 = vmatpush1.msra.mxu0 0.0
    %1309 = vmatprep.subr.mxu0 0.0
    %1310 = vmatpush1.msra.mxu0 0.0
    %1311 = vmatprep.subr.mxu0 0.0
    %1312 = vmatpush1.msra.mxu0 0.0
    %1313 = vmatprep.subr.mxu0 0.0
    %1314 = vmatpush1.msra.mxu0 0.0
    %1315 = vmatprep.subr.mxu0 0.0
    %1316 = vmatpush1.msra.mxu0 0.0
    %1317 = vmatprep.subr.mxu0 0.0
    %1318 = vmatpush1.msra.mxu0 0.0
    %1319 = vmatprep.subr.mxu0 0.0
    %1320 = vmatpush1.msra.mxu0 0.0
    %1321 = vmatprep.mubr.f32.mxu0 0.0
    %1322 = vmatmul.mubr.f32.gmra.mrb[0].mxu0 %v1253
    %v1323 = vpop.f32.mrb[0].mxu0
    %v1324 = vadd.f32 %v1245, %v1323
    %v1325 = vpop.f32.mrb[0].mxu0
    %1326 = vdwg.mxu0
    %s1327 = scalar_lea.vmem %s2, 320
    %v1328 = vld [vmem:[%s1327] sm:$0xff]
    %v1329 = vld [vmem:[%s1327 + $0x8] sm:$0xff]
    %v1330 = vld [vmem:[%s1327 + $0x10] sm:$0xff]
    %v1331 = vld [vmem:[%s1327 + $0x18] sm:$0xff]
    %v1332 = vld [vmem:[%s1327 + $0x20] sm:$0xff]
    %v1333 = vld [vmem:[%s1327 + $0x28] sm:$0xff]
    %v1334 = vld [vmem:[%s1327 + $0x30] sm:$0xff]
    %v1335 = vld [vmem:[%s1327 + $0x38] sm:$0xff]
    %v1337 = vsel %vm41, %v1238, 0
    %v1340 = vsel %vm41, %v1239, 0
    %v1343 = vsel %vm41, %v1240, 0
    %v1346 = vsel %vm41, %v1241, 0
    %1348 = vmatprep.subr.mxu0 0.0
    %1349 = vmatpush1.msra.mxu0 %v1328
    %1350 = vmatprep.subr.mxu0 0.0
    %1351 = vmatpush1.msra.mxu0 %v1329
    %1352 = vmatprep.subr.mxu0 0.0
    %1353 = vmatpush1.msra.mxu0 %v1330
    %1354 = vmatprep.subr.mxu0 0.0
    %1355 = vmatpush1.msra.mxu0 %v1331
    %1356 = vmatprep.subr.mxu0 0.0
    %1357 = vmatpush1.msra.mxu0 %v1332
    %1358 = vmatprep.subr.mxu0 0.0
    %1359 = vmatpush1.msra.mxu0 %v1333
    %1360 = vmatprep.subr.mxu0 0.0
    %1361 = vmatpush1.msra.mxu0 %v1334
    %1362 = vmatprep.subr.mxu0 0.0
    %1363 = vmatpush1.msra.mxu0 %v1335
    %1364 = vmatprep.subr.mxu0 0.0
    %1365 = vmatpush1.msra.mxu0 0.0
    %1366 = vmatprep.subr.mxu0 0.0
    %1367 = vmatpush1.msra.mxu0 0.0
    %1368 = vmatprep.subr.mxu0 0.0
    %1369 = vmatpush1.msra.mxu0 0.0
    %1370 = vmatprep.subr.mxu0 0.0
    %1371 = vmatpush1.msra.mxu0 0.0
    %1372 = vmatprep.subr.mxu0 0.0
    %1373 = vmatpush1.msra.mxu0 0.0
    %1374 = vmatprep.subr.mxu0 0.0
    %1375 = vmatpush1.msra.mxu0 0.0
    %1376 = vmatprep.subr.mxu0 0.0
    %1377 = vmatpush1.msra.mxu0 0.0
    %1378 = vmatprep.subr.mxu0 0.0
    %1379 = vmatpush1.msra.mxu0 0.0
    %1380 = vmatprep.subr.mxu0 0.0
    %1381 = vmatpush1.msra.mxu0 0.0
    %1382 = vmatprep.subr.mxu0 0.0
    %1383 = vmatpush1.msra.mxu0 0.0
    %1384 = vmatprep.subr.mxu0 0.0
    %1385 = vmatpush1.msra.mxu0 0.0
    %1386 = vmatprep.subr.mxu0 0.0
    %1387 = vmatpush1.msra.mxu0 0.0
    %1388 = vmatprep.subr.mxu0 0.0
    %1389 = vmatpush1.msra.mxu0 0.0
    %1390 = vmatprep.subr.mxu0 0.0
    %1391 = vmatpush1.msra.mxu0 0.0
    %1392 = vmatprep.subr.mxu0 0.0
    %1393 = vmatpush1.msra.mxu0 0.0
    %1394 = vmatprep.subr.mxu0 0.0
    %1395 = vmatpush1.msra.mxu0 0.0
    %1396 = vmatprep.subr.mxu0 0.0
    %1397 = vmatpush1.msra.mxu0 0.0
    %1398 = vmatprep.subr.mxu0 0.0
    %1399 = vmatpush1.msra.mxu0 0.0
    %1400 = vmatprep.subr.mxu0 0.0
    %1401 = vmatpush1.msra.mxu0 0.0
    %1402 = vmatprep.subr.mxu0 0.0
    %1403 = vmatpush1.msra.mxu0 0.0
    %1404 = vmatprep.subr.mxu0 0.0
    %1405 = vmatpush1.msra.mxu0 0.0
    %1406 = vmatprep.subr.mxu0 0.0
    %1407 = vmatpush1.msra.mxu0 0.0
    %1408 = vmatprep.subr.mxu0 0.0
    %1409 = vmatpush1.msra.mxu0 0.0
    %1410 = vmatprep.subr.mxu0 0.0
    %1411 = vmatpush1.msra.mxu0 0.0
    %1412 = vmatprep.mubr.f32.mxu0 0.0
    %1413 = vmatmul.mubr.f32.gmra.mrb[0].mxu0 %v1337
    %v1414 = vpop.f32.mrb[0].mxu0
    %v1415 = vadd.f32 0.0, %v1414
    %v1416 = vpop.f32.mrb[0].mxu0
    %1417 = vmatprep.mubr.f32.mxu0 0.0
    %1418 = vmatmul.mubr.f32.gmra.mrb[0].mxu0 %v1340
    %v1419 = vpop.f32.mrb[0].mxu0
    %v1420 = vadd.f32 0.0, %v1419
    %v1421 = vpop.f32.mrb[0].mxu0
    %1422 = vmatprep.mubr.f32.mxu0 0.0
    %1423 = vmatmul.mubr.f32.gmra.mrb[0].mxu0 %v1343
    %v1424 = vpop.f32.mrb[0].mxu0
    %v1425 = vadd.f32 0.0, %v1424
    %v1426 = vpop.f32.mrb[0].mxu0
    %1427 = vmatprep.mubr.f32.mxu0 0.0
    %1428 = vmatmul.mubr.f32.gmra.mrb[0].mxu0 %v1346
    %v1429 = vpop.f32.mrb[0].mxu0
    %v1430 = vadd.f32 0.0, %v1429
    %v1431 = vpop.f32.mrb[0].mxu0
    %1432 = vdwg.mxu0
    %v1433 = vadd.f32 %v1415, 0.0
    %v1434 = vadd.f32 %v1420, 0.0
    %v1435 = vadd.f32 %v1425, 0.0
    %v1436 = vadd.f32 %v1430, 0.0
    %s1437 = scalar_lea.vmem %s2, 384
    %v1438 = vld [vmem:[%s1437] sm:$0xff]
    %v1439 = vld [vmem:[%s1437 + $0x8] sm:$0xff]
    %v1440 = vld [vmem:[%s1437 + $0x10] sm:$0xff]
    %v1441 = vld [vmem:[%s1437 + $0x18] sm:$0xff]
    %v1442 = vld [vmem:[%s1437 + $0x20] sm:$0xff]
    %v1443 = vld [vmem:[%s1437 + $0x28] sm:$0xff]
    %v1444 = vld [vmem:[%s1437 + $0x30] sm:$0xff]
    %v1445 = vld [vmem:[%s1437 + $0x38] sm:$0xff]
    %1446 = vmatprep.subr.mxu0 0.0
    %1447 = vmatpush1.msra.mxu0 %v1438
    %1448 = vmatprep.subr.mxu0 0.0
    %1449 = vmatpush1.msra.mxu0 %v1439
    %1450 = vmatprep.subr.mxu0 0.0
    %1451 = vmatpush1.msra.mxu0 %v1440
    %1452 = vmatprep.subr.mxu0 0.0
    %1453 = vmatpush1.msra.mxu0 %v1441
    %1454 = vmatprep.subr.mxu0 0.0
    %1455 = vmatpush1.msra.mxu0 %v1442
    %1456 = vmatprep.subr.mxu0 0.0
    %1457 = vmatpush1.msra.mxu0 %v1443
    %1458 = vmatprep.subr.mxu0 0.0
    %1459 = vmatpush1.msra.mxu0 %v1444
    %1460 = vmatprep.subr.mxu0 0.0
    %1461 = vmatpush1.msra.mxu0 %v1445
    %1462 = vmatprep.subr.mxu0 0.0
    %1463 = vmatpush1.msra.mxu0 0.0
    %1464 = vmatprep.subr.mxu0 0.0
    %1465 = vmatpush1.msra.mxu0 0.0
    %1466 = vmatprep.subr.mxu0 0.0
    %1467 = vmatpush1.msra.mxu0 0.0
    %1468 = vmatprep.subr.mxu0 0.0
    %1469 = vmatpush1.msra.mxu0 0.0
    %1470 = vmatprep.subr.mxu0 0.0
    %1471 = vmatpush1.msra.mxu0 0.0
    %1472 = vmatprep.subr.mxu0 0.0
    %1473 = vmatpush1.msra.mxu0 0.0
    %1474 = vmatprep.subr.mxu0 0.0
    %1475 = vmatpush1.msra.mxu0 0.0
    %1476 = vmatprep.subr.mxu0 0.0
    %1477 = vmatpush1.msra.mxu0 0.0
    %1478 = vmatprep.subr.mxu0 0.0
    %1479 = vmatpush1.msra.mxu0 0.0
    %1480 = vmatprep.subr.mxu0 0.0
    %1481 = vmatpush1.msra.mxu0 0.0
    %1482 = vmatprep.subr.mxu0 0.0
    %1483 = vmatpush1.msra.mxu0 0.0
    %1484 = vmatprep.subr.mxu0 0.0
    %1485 = vmatpush1.msra.mxu0 0.0
    %1486 = vmatprep.subr.mxu0 0.0
    %1487 = vmatpush1.msra.mxu0 0.0
    %1488 = vmatprep.subr.mxu0 0.0
    %1489 = vmatpush1.msra.mxu0 0.0
    %1490 = vmatprep.subr.mxu0 0.0
    %1491 = vmatpush1.msra.mxu0 0.0
    %1492 = vmatprep.subr.mxu0 0.0
    %1493 = vmatpush1.msra.mxu0 0.0
    %1494 = vmatprep.subr.mxu0 0.0
    %1495 = vmatpush1.msra.mxu0 0.0
    %1496 = vmatprep.subr.mxu0 0.0
    %1497 = vmatpush1.msra.mxu0 0.0
    %1498 = vmatprep.subr.mxu0 0.0
    %1499 = vmatpush1.msra.mxu0 0.0
    %1500 = vmatprep.subr.mxu0 0.0
    %1501 = vmatpush1.msra.mxu0 0.0
    %1502 = vmatprep.subr.mxu0 0.0
    %1503 = vmatpush1.msra.mxu0 0.0
    %1504 = vmatprep.subr.mxu0 0.0
    %1505 = vmatpush1.msra.mxu0 0.0
    %1506 = vmatprep.subr.mxu0 0.0
    %1507 = vmatpush1.msra.mxu0 0.0
    %1508 = vmatprep.subr.mxu0 0.0
    %1509 = vmatpush1.msra.mxu0 0.0
    %1510 = vmatprep.mubr.f32.mxu0 0.0
    %1511 = vmatmul.mubr.f32.gmra.mrb[0].mxu0 %v1337
    %v1512 = vpop.f32.mrb[0].mxu0
    %v1513 = vadd.f32 0.0, %v1512
    %v1514 = vpop.f32.mrb[0].mxu0
    %1515 = vmatprep.mubr.f32.mxu0 0.0
    %1516 = vmatmul.mubr.f32.gmra.mrb[0].mxu0 %v1340
    %v1517 = vpop.f32.mrb[0].mxu0
    %v1518 = vadd.f32 0.0, %v1517
    %v1519 = vpop.f32.mrb[0].mxu0
    %1520 = vmatprep.mubr.f32.mxu0 0.0
    %1521 = vmatmul.mubr.f32.gmra.mrb[0].mxu0 %v1343
    %v1522 = vpop.f32.mrb[0].mxu0
    %v1523 = vadd.f32 0.0, %v1522
    %v1524 = vpop.f32.mrb[0].mxu0
    %1525 = vmatprep.mubr.f32.mxu0 0.0
    %1526 = vmatmul.mubr.f32.gmra.mrb[0].mxu0 %v1346
    %v1527 = vpop.f32.mrb[0].mxu0
    %v1528 = vadd.f32 0.0, %v1527
    %v1529 = vpop.f32.mrb[0].mxu0
    %1530 = vdwg.mxu0
    %v1535 = vrot.slane %v1513, 1
    %v1536 = vrot.slane %v1518, 1
    %v1537 = vsel %vm241, %v1535, %v1536
    %v1538 = vrot.slane %v1523, 1
    %v1539 = vrot.slane %v1528, 1
    %v1540 = vsel %vm241, %v1538, %v1539
    %v1545 = vadd.f32 %v1433, %v1537
    %v1546 = vadd.f32 %v1434, %v1536
    %v1547 = vadd.f32 %v1435, %v1540
    %v1548 = vadd.f32 %v1436, %v1539
    %s1549 = scalar_lea.vmem %s2, 448
    %v1550 = vld [vmem:[%s1549] sm:$0xff]
    %v1551 = vld [vmem:[%s1549 + $0x8] sm:$0xff]
    %v1552 = vld [vmem:[%s1549 + $0x10] sm:$0xff]
    %v1553 = vld [vmem:[%s1549 + $0x18] sm:$0xff]
    %v1554 = vld [vmem:[%s1549 + $0x20] sm:$0xff]
    %v1555 = vld [vmem:[%s1549 + $0x28] sm:$0xff]
    %v1556 = vld [vmem:[%s1549 + $0x30] sm:$0xff]
    %v1557 = vld [vmem:[%s1549 + $0x38] sm:$0xff]
    %1558 = vmatprep.subr.mxu0 0.0
    %1559 = vmatpush1.msra.mxu0 %v1550
    %1560 = vmatprep.subr.mxu0 0.0
    %1561 = vmatpush1.msra.mxu0 %v1551
    %1562 = vmatprep.subr.mxu0 0.0
    %1563 = vmatpush1.msra.mxu0 %v1552
    %1564 = vmatprep.subr.mxu0 0.0
    %1565 = vmatpush1.msra.mxu0 %v1553
    %1566 = vmatprep.subr.mxu0 0.0
    %1567 = vmatpush1.msra.mxu0 %v1554
    %1568 = vmatprep.subr.mxu0 0.0
    %1569 = vmatpush1.msra.mxu0 %v1555
    %1570 = vmatprep.subr.mxu0 0.0
    %1571 = vmatpush1.msra.mxu0 %v1556
    %1572 = vmatprep.subr.mxu0 0.0
    %1573 = vmatpush1.msra.mxu0 %v1557
    %1574 = vmatprep.subr.mxu0 0.0
    %1575 = vmatpush1.msra.mxu0 0.0
    %1576 = vmatprep.subr.mxu0 0.0
    %1577 = vmatpush1.msra.mxu0 0.0
    %1578 = vmatprep.subr.mxu0 0.0
    %1579 = vmatpush1.msra.mxu0 0.0
    %1580 = vmatprep.subr.mxu0 0.0
    %1581 = vmatpush1.msra.mxu0 0.0
    %1582 = vmatprep.subr.mxu0 0.0
    %1583 = vmatpush1.msra.mxu0 0.0
    %1584 = vmatprep.subr.mxu0 0.0
    %1585 = vmatpush1.msra.mxu0 0.0
    %1586 = vmatprep.subr.mxu0 0.0
    %1587 = vmatpush1.msra.mxu0 0.0
    %1588 = vmatprep.subr.mxu0 0.0
    %1589 = vmatpush1.msra.mxu0 0.0
    %1590 = vmatprep.subr.mxu0 0.0
    %1591 = vmatpush1.msra.mxu0 0.0
    %1592 = vmatprep.subr.mxu0 0.0
    %1593 = vmatpush1.msra.mxu0 0.0
    %1594 = vmatprep.subr.mxu0 0.0
    %1595 = vmatpush1.msra.mxu0 0.0
    %1596 = vmatprep.subr.mxu0 0.0
    %1597 = vmatpush1.msra.mxu0 0.0
    %1598 = vmatprep.subr.mxu0 0.0
    %1599 = vmatpush1.msra.mxu0 0.0
    %1600 = vmatprep.subr.mxu0 0.0
    %1601 = vmatpush1.msra.mxu0 0.0
    %1602 = vmatprep.subr.mxu0 0.0
    %1603 = vmatpush1.msra.mxu0 0.0
    %1604 = vmatprep.subr.mxu0 0.0
    %1605 = vmatpush1.msra.mxu0 0.0
    %1606 = vmatprep.subr.mxu0 0.0
    %1607 = vmatpush1.msra.mxu0 0.0
    %1608 = vmatprep.subr.mxu0 0.0
    %1609 = vmatpush1.msra.mxu0 0.0
    %1610 = vmatprep.subr.mxu0 0.0
    %1611 = vmatpush1.msra.mxu0 0.0
    %1612 = vmatprep.subr.mxu0 0.0
    %1613 = vmatpush1.msra.mxu0 0.0
    %1614 = vmatprep.subr.mxu0 0.0
    %1615 = vmatpush1.msra.mxu0 0.0
    %1616 = vmatprep.subr.mxu0 0.0
    %1617 = vmatpush1.msra.mxu0 0.0
    %1618 = vmatprep.subr.mxu0 0.0
    %1619 = vmatpush1.msra.mxu0 0.0
    %1620 = vmatprep.subr.mxu0 0.0
    %1621 = vmatpush1.msra.mxu0 0.0
    %1622 = vmatprep.mubr.f32.mxu0 0.0
    %1623 = vmatmul.mubr.f32.gmra.mrb[0].mxu0 %v1337
    %v1624 = vpop.f32.mrb[0].mxu0
    %v1625 = vadd.f32 0.0, %v1624
    %v1626 = vpop.f32.mrb[0].mxu0
    %1627 = vmatprep.mubr.f32.mxu0 0.0
    %1628 = vmatmul.mubr.f32.gmra.mrb[0].mxu0 %v1340
    %v1629 = vpop.f32.mrb[0].mxu0
    %v1630 = vadd.f32 0.0, %v1629
    %v1631 = vpop.f32.mrb[0].mxu0
    %1632 = vmatprep.mubr.f32.mxu0 0.0
    %1633 = vmatmul.mubr.f32.gmra.mrb[0].mxu0 %v1343
    %v1634 = vpop.f32.mrb[0].mxu0
    %v1635 = vadd.f32 0.0, %v1634
    %v1636 = vpop.f32.mrb[0].mxu0
    %1637 = vmatprep.mubr.f32.mxu0 0.0
    %1638 = vmatmul.mubr.f32.gmra.mrb[0].mxu0 %v1346
    %v1639 = vpop.f32.mrb[0].mxu0
    %v1640 = vadd.f32 0.0, %v1639
    %v1641 = vpop.f32.mrb[0].mxu0
    %1642 = vdwg.mxu0
    %v1647 = vrot.slane %v1625, 2
    %v1648 = vrot.slane %v1630, 2
    %v1649 = vsel %vm354, %v1647, %v1648
    %v1650 = vrot.slane %v1635, 2
    %v1651 = vrot.slane %v1640, 2
    %v1652 = vsel %vm354, %v1650, %v1651
    %v1657 = vadd.f32 %v1545, %v1649
    %v1658 = vadd.f32 %v1546, %v1648
    %v1659 = vadd.f32 %v1547, %v1652
    %v1660 = vadd.f32 %v1548, %v1651
    %s1661 = scalar_lea.vmem %s2, 512
    %v1662 = vld [vmem:[%s1661] sm:$0xff]
    %v1663 = vld [vmem:[%s1661 + $0x8] sm:$0xff]
    %v1664 = vld [vmem:[%s1661 + $0x10] sm:$0xff]
    %v1665 = vld [vmem:[%s1661 + $0x18] sm:$0xff]
    %v1666 = vld [vmem:[%s1661 + $0x20] sm:$0xff]
    %v1667 = vld [vmem:[%s1661 + $0x28] sm:$0xff]
    %v1668 = vld [vmem:[%s1661 + $0x30] sm:$0xff]
    %v1669 = vld [vmem:[%s1661 + $0x38] sm:$0xff]
    %1670 = vmatprep.subr.mxu0 0.0
    %1671 = vmatpush1.msra.mxu0 %v1662
    %1672 = vmatprep.subr.mxu0 0.0
    %1673 = vmatpush1.msra.mxu0 %v1663
    %1674 = vmatprep.subr.mxu0 0.0
    %1675 = vmatpush1.msra.mxu0 %v1664
    %1676 = vmatprep.subr.mxu0 0.0
    %1677 = vmatpush1.msra.mxu0 %v1665
    %1678 = vmatprep.subr.mxu0 0.0
    %1679 = vmatpush1.msra.mxu0 %v1666
    %1680 = vmatprep.subr.mxu0 0.0
    %1681 = vmatpush1.msra.mxu0 %v1667
    %1682 = vmatprep.subr.mxu0 0.0
    %1683 = vmatpush1.msra.mxu0 %v1668
    %1684 = vmatprep.subr.mxu0 0.0
    %1685 = vmatpush1.msra.mxu0 %v1669
    %1686 = vmatprep.subr.mxu0 0.0
    %1687 = vmatpush1.msra.mxu0 0.0
    %1688 = vmatprep.subr.mxu0 0.0
    %1689 = vmatpush1.msra.mxu0 0.0
    %1690 = vmatprep.subr.mxu0 0.0
    %1691 = vmatpush1.msra.mxu0 0.0
    %1692 = vmatprep.subr.mxu0 0.0
    %1693 = vmatpush1.msra.mxu0 0.0
    %1694 = vmatprep.subr.mxu0 0.0
    %1695 = vmatpush1.msra.mxu0 0.0
    %1696 = vmatprep.subr.mxu0 0.0
    %1697 = vmatpush1.msra.mxu0 0.0
    %1698 = vmatprep.subr.mxu0 0.0
    %1699 = vmatpush1.msra.mxu0 0.0
    %1700 = vmatprep.subr.mxu0 0.0
    %1701 = vmatpush1.msra.mxu0 0.0
    %1702 = vmatprep.subr.mxu0 0.0
    %1703 = vmatpush1.msra.mxu0 0.0
    %1704 = vmatprep.subr.mxu0 0.0
    %1705 = vmatpush1.msra.mxu0 0.0
    %1706 = vmatprep.subr.mxu0 0.0
    %1707 = vmatpush1.msra.mxu0 0.0
    %1708 = vmatprep.subr.mxu0 0.0
    %1709 = vmatpush1.msra.mxu0 0.0
    %1710 = vmatprep.subr.mxu0 0.0
    %1711 = vmatpush1.msra.mxu0 0.0
    %1712 = vmatprep.subr.mxu0 0.0
    %1713 = vmatpush1.msra.mxu0 0.0
    %1714 = vmatprep.subr.mxu0 0.0
    %1715 = vmatpush1.msra.mxu0 0.0
    %1716 = vmatprep.subr.mxu0 0.0
    %1717 = vmatpush1.msra.mxu0 0.0
    %1718 = vmatprep.subr.mxu0 0.0
    %1719 = vmatpush1.msra.mxu0 0.0
    %1720 = vmatprep.subr.mxu0 0.0
    %1721 = vmatpush1.msra.mxu0 0.0
    %1722 = vmatprep.subr.mxu0 0.0
    %1723 = vmatpush1.msra.mxu0 0.0
    %1724 = vmatprep.subr.mxu0 0.0
    %1725 = vmatpush1.msra.mxu0 0.0
    %1726 = vmatprep.subr.mxu0 0.0
    %1727 = vmatpush1.msra.mxu0 0.0
    %1728 = vmatprep.subr.mxu0 0.0
    %1729 = vmatpush1.msra.mxu0 0.0
    %1730 = vmatprep.subr.mxu0 0.0
    %1731 = vmatpush1.msra.mxu0 0.0
    %1732 = vmatprep.subr.mxu0 0.0
    %1733 = vmatpush1.msra.mxu0 0.0
    %1734 = vmatprep.mubr.f32.mxu0 0.0
    %1735 = vmatmul.mubr.f32.gmra.mrb[0].mxu0 %v1337
    %v1736 = vpop.f32.mrb[0].mxu0
    %v1737 = vadd.f32 0.0, %v1736
    %v1738 = vpop.f32.mrb[0].mxu0
    %1739 = vmatprep.mubr.f32.mxu0 0.0
    %1740 = vmatmul.mubr.f32.gmra.mrb[0].mxu0 %v1340
    %v1741 = vpop.f32.mrb[0].mxu0
    %v1742 = vadd.f32 0.0, %v1741
    %v1743 = vpop.f32.mrb[0].mxu0
    %1744 = vmatprep.mubr.f32.mxu0 0.0
    %1745 = vmatmul.mubr.f32.gmra.mrb[0].mxu0 %v1343
    %v1746 = vpop.f32.mrb[0].mxu0
    %v1747 = vadd.f32 0.0, %v1746
    %v1748 = vpop.f32.mrb[0].mxu0
    %1749 = vmatprep.mubr.f32.mxu0 0.0
    %1750 = vmatmul.mubr.f32.gmra.mrb[0].mxu0 %v1346
    %v1751 = vpop.f32.mrb[0].mxu0
    %v1752 = vadd.f32 0.0, %v1751
    %v1753 = vpop.f32.mrb[0].mxu0
    %1754 = vdwg.mxu0
    %v1759 = vrot.slane %v1737, 3
    %v1760 = vrot.slane %v1742, 3
    %v1761 = vsel %vm467, %v1759, %v1760
    %v1762 = vrot.slane %v1747, 3
    %v1763 = vrot.slane %v1752, 3
    %v1764 = vsel %vm467, %v1762, %v1763
    %v1769 = vadd.f32 %v1657, %v1761
    %v1770 = vadd.f32 %v1658, %v1760
    %v1771 = vadd.f32 %v1659, %v1764
    %v1772 = vadd.f32 %v1660, %v1763
    %s1773 = scalar_lea.vmem %s2, 576
    %v1774 = vld [vmem:[%s1773] sm:$0xff]
    %v1775 = vld [vmem:[%s1773 + $0x8] sm:$0xff]
    %v1776 = vld [vmem:[%s1773 + $0x10] sm:$0xff]
    %v1777 = vld [vmem:[%s1773 + $0x18] sm:$0xff]
    %v1778 = vld [vmem:[%s1773 + $0x20] sm:$0xff]
    %v1779 = vld [vmem:[%s1773 + $0x28] sm:$0xff]
    %v1780 = vld [vmem:[%s1773 + $0x30] sm:$0xff]
    %v1781 = vld [vmem:[%s1773 + $0x38] sm:$0xff]
    %1782 = vmatprep.subr.mxu0 0.0
    %1783 = vmatpush1.msra.mxu0 %v1774
    %1784 = vmatprep.subr.mxu0 0.0
    %1785 = vmatpush1.msra.mxu0 %v1775
    %1786 = vmatprep.subr.mxu0 0.0
    %1787 = vmatpush1.msra.mxu0 %v1776
    %1788 = vmatprep.subr.mxu0 0.0
    %1789 = vmatpush1.msra.mxu0 %v1777
    %1790 = vmatprep.subr.mxu0 0.0
    %1791 = vmatpush1.msra.mxu0 %v1778
    %1792 = vmatprep.subr.mxu0 0.0
    %1793 = vmatpush1.msra.mxu0 %v1779
    %1794 = vmatprep.subr.mxu0 0.0
    %1795 = vmatpush1.msra.mxu0 %v1780
    %1796 = vmatprep.subr.mxu0 0.0
    %1797 = vmatpush1.msra.mxu0 %v1781
    %1798 = vmatprep.subr.mxu0 0.0
    %1799 = vmatpush1.msra.mxu0 0.0
    %1800 = vmatprep.subr.mxu0 0.0
    %1801 = vmatpush1.msra.mxu0 0.0
    %1802 = vmatprep.subr.mxu0 0.0
    %1803 = vmatpush1.msra.mxu0 0.0
    %1804 = vmatprep.subr.mxu0 0.0
    %1805 = vmatpush1.msra.mxu0 0.0
    %1806 = vmatprep.subr.mxu0 0.0
    %1807 = vmatpush1.msra.mxu0 0.0
    %1808 = vmatprep.subr.mxu0 0.0
    %1809 = vmatpush1.msra.mxu0 0.0
    %1810 = vmatprep.subr.mxu0 0.0
    %1811 = vmatpush1.msra.mxu0 0.0
    %1812 = vmatprep.subr.mxu0 0.0
    %1813 = vmatpush1.msra.mxu0 0.0
    %1814 = vmatprep.subr.mxu0 0.0
    %1815 = vmatpush1.msra.mxu0 0.0
    %1816 = vmatprep.subr.mxu0 0.0
    %1817 = vmatpush1.msra.mxu0 0.0
    %1818 = vmatprep.subr.mxu0 0.0
    %1819 = vmatpush1.msra.mxu0 0.0
    %1820 = vmatprep.subr.mxu0 0.0
    %1821 = vmatpush1.msra.mxu0 0.0
    %1822 = vmatprep.subr.mxu0 0.0
    %1823 = vmatpush1.msra.mxu0 0.0
    %1824 = vmatprep.subr.mxu0 0.0
    %1825 = vmatpush1.msra.mxu0 0.0
    %1826 = vmatprep.subr.mxu0 0.0
    %1827 = vmatpush1.msra.mxu0 0.0
    %1828 = vmatprep.subr.mxu0 0.0
    %1829 = vmatpush1.msra.mxu0 0.0
    %1830 = vmatprep.subr.mxu0 0.0
    %1831 = vmatpush1.msra.mxu0 0.0
    %1832 = vmatprep.subr.mxu0 0.0
    %1833 = vmatpush1.msra.mxu0 0.0
    %1834 = vmatprep.subr.mxu0 0.0
    %1835 = vmatpush1.msra.mxu0 0.0
    %1836 = vmatprep.subr.mxu0 0.0
    %1837 = vmatpush1.msra.mxu0 0.0
    %1838 = vmatprep.subr.mxu0 0.0
    %1839 = vmatpush1.msra.mxu0 0.0
    %1840 = vmatprep.subr.mxu0 0.0
    %1841 = vmatpush1.msra.mxu0 0.0
    %1842 = vmatprep.subr.mxu0 0.0
    %1843 = vmatpush1.msra.mxu0 0.0
    %1844 = vmatprep.subr.mxu0 0.0
    %1845 = vmatpush1.msra.mxu0 0.0
    %1846 = vmatprep.mubr.f32.mxu0 0.0
    %1847 = vmatmul.mubr.f32.gmra.mrb[0].mxu0 %v1337
    %v1848 = vpop.f32.mrb[0].mxu0
    %v1849 = vadd.f32 0.0, %v1848
    %v1850 = vpop.f32.mrb[0].mxu0
    %1851 = vmatprep.mubr.f32.mxu0 0.0
    %1852 = vmatmul.mubr.f32.gmra.mrb[0].mxu0 %v1340
    %v1853 = vpop.f32.mrb[0].mxu0
    %v1854 = vadd.f32 0.0, %v1853
    %v1855 = vpop.f32.mrb[0].mxu0
    %1856 = vmatprep.mubr.f32.mxu0 0.0
    %1857 = vmatmul.mubr.f32.gmra.mrb[0].mxu0 %v1343
    %v1858 = vpop.f32.mrb[0].mxu0
    %v1859 = vadd.f32 0.0, %v1858
    %v1860 = vpop.f32.mrb[0].mxu0
    %1861 = vmatprep.mubr.f32.mxu0 0.0
    %1862 = vmatmul.mubr.f32.gmra.mrb[0].mxu0 %v1346
    %v1863 = vpop.f32.mrb[0].mxu0
    %v1864 = vadd.f32 0.0, %v1863
    %v1865 = vpop.f32.mrb[0].mxu0
    %1866 = vdwg.mxu0
    %v1871 = vrot.slane %v1849, 4
    %v1872 = vrot.slane %v1854, 4
    %v1873 = vsel %vm580, %v1871, %v1872
    %v1874 = vrot.slane %v1859, 4
    %v1875 = vrot.slane %v1864, 4
    %v1876 = vsel %vm580, %v1874, %v1875
    %v1881 = vadd.f32 %v1769, %v1873
    %v1882 = vadd.f32 %v1770, %v1872
    %v1883 = vadd.f32 %v1771, %v1876
    %v1884 = vadd.f32 %v1772, %v1875
    %v1887 = vunpack.c.l.s4 1966171168
    %v1888 = vunpack.c.0.s8 %v1887
    %v1889 = vlaneseq
    %v1890 = vshrl.u32 %v1889, 7
    %v1891 = vsub.s32 %v1888, %v1890
    %v1892 = vrot.slane %v1324, %v1891
    %v1893 = vcombine.high %v1892, %v1892
    %v1895 = vunpack.c.l.s4 1966171168
    %v1896 = vunpack.c.0.s8 %v1895
    %v1897 = vlaneseq
    %v1898 = vshrl.u32 %v1897, 7
    %v1899 = vsub.s32 %v1896, %v1898
    %v1900 = vrot.slane %v1892, %v1899
    %v1902 = vunpack.c.l.s4 1966171168
    %v1903 = vunpack.c.0.s8 %v1902
    %v1904 = vlaneseq
    %v1905 = vshrl.u32 %v1904, 7
    %v1906 = vsub.s32 %v1903, %v1905
    %v1907 = vrot.slane %v1893, %v1906
    %v1908 = vlaneseq
    %v1909 = vshrl.u32 %v1908, 7
    %v1910 = vsub.s32 0, %v1909
    %v1911 = vrot.slane %v1900, %v1910
    %v1912 = vlaneseq
    %v1913 = vshrl.u32 %v1912, 7
    %v1914 = vsub.s32 0, %v1913
    %v1915 = vrot.slane %v1907, %v1914
    %v1918 = vadd.f32 %v1881, %v1911
    %v1919 = vadd.f32 %v1882, %v1911
    %v1920 = vadd.f32 %v1883, %v1915
    %v1921 = vadd.f32 %v1884, %v1915
    %v1922 = vmul.f32 %v1918, 0.5
    %v1923 = vmul.f32 %v1919, 0.5
    %v1924 = vmul.f32 %v1920, 0.5
    %v1925 = vmul.f32 %v1921, 0.5
    %v1926 = vmul.f32 %v1918, 0.70710677
    %v1927 = vmul.f32 %v1919, 0.70710677
    %v1928 = vmul.f32 %v1920, 0.70710677
    %v1929 = vmul.f32 %v1921, 0.70710677
    %v1930 = verf.f32.pop %v1926
    %v1931 = verf.f32.pop %v1927
    %v1932 = verf.f32.pop %v1928
    %v1933 = verf.f32.pop %v1929
    %v1934 = vadd.f32 %v1930, 1.0
    %v1935 = vadd.f32 %v1931, 1.0
    %v1936 = vadd.f32 %v1932, 1.0
    %v1937 = vadd.f32 %v1933, 1.0
    %v1938 = vmul.f32 %v1922, %v1934
    %v1939 = vmul.f32 %v1923, %v1935
    %v1940 = vmul.f32 %v1924, %v1936
    %v1941 = vmul.f32 %v1925, %v1937
    %1942 = vst.msk [vmem:[#allocation2] sm:$0xff] %vm24, %v1938
    %1943 = vst.msk [vmem:[#allocation2 + $0x8] sm:$0xf] %vm624, %v1939
    %1944 = vst.msk [vmem:[#allocation2 + $0x10] sm:$0xff] %vm24, %v1940
    %1945 = vst.msk [vmem:[#allocation2 + $0x18] sm:$0xf] %vm624, %v1941
    %v1946 = vld [vmem:[#allocation2] sm:$0xff]
    %v1947 = vld [vmem:[#allocation2 + $0x8] sm:$0xff]
    %v1948 = vld [vmem:[#allocation2 + $0x10] sm:$0xff]
    %v1949 = vld [vmem:[#allocation2 + $0x18] sm:$0xff]
    %s1950 = scalar_lea.vmem %s3, 240
    %v1951 = vld [vmem:[%s1950] sm:$0xff]
    %v1952 = vld [vmem:[%s1950 + $0x8] sm:$0xff]
    %v1953 = vld [vmem:[%s1950 + $0x10] sm:$0xff]
    %v1954 = vld [vmem:[%s1950 + $0x18] sm:$0xff]
    %v1955 = vld [vmem:[%s1950 + $0x20] sm:$0xff]
    %v1956 = vld [vmem:[%s1950 + $0x28] sm:$0xff]
    %v1958 = vsel %vm24, %v1946, 0
    %v1961 = vsel %vm24, %v1947, 0
    %v1964 = vsel %vm24, %v1948, 0
    %v1967 = vsel %vm24, %v1949, 0
    %1969 = vmatprep.subr.mxu0 0.0
    %1970 = vmatpush1.msra.mxu0 %v1951
    %1971 = vmatprep.subr.mxu0 0.0
    %1972 = vmatpush1.msra.mxu0 %v1952
    %1973 = vmatprep.subr.mxu0 0.0
    %1974 = vmatpush1.msra.mxu0 %v1953
    %1975 = vmatprep.subr.mxu0 0.0
    %1976 = vmatpush1.msra.mxu0 %v1954
    %1977 = vmatprep.subr.mxu0 0.0
    %1978 = vmatpush1.msra.mxu0 %v1955
    %1979 = vmatprep.subr.mxu0 0.0
    %1980 = vmatpush1.msra.mxu0 %v1956
    %1981 = vmatprep.subr.mxu0 0.0
    %1982 = vmatpush1.msra.mxu0 0.0
    %1983 = vmatprep.subr.mxu0 0.0
    %1984 = vmatpush1.msra.mxu0 0.0
    %1985 = vmatprep.subr.mxu0 0.0
    %1986 = vmatpush1.msra.mxu0 0.0
    %1987 = vmatprep.subr.mxu0 0.0
    %1988 = vmatpush1.msra.mxu0 0.0
    %1989 = vmatprep.subr.mxu0 0.0
    %1990 = vmatpush1.msra.mxu0 0.0
    %1991 = vmatprep.subr.mxu0 0.0
    %1992 = vmatpush1.msra.mxu0 0.0
    %1993 = vmatprep.subr.mxu0 0.0
    %1994 = vmatpush1.msra.mxu0 0.0
    %1995 = vmatprep.subr.mxu0 0.0
    %1996 = vmatpush1.msra.mxu0 0.0
    %1997 = vmatprep.subr.mxu0 0.0
    %1998 = vmatpush1.msra.mxu0 0.0
    %1999 = vmatprep.subr.mxu0 0.0
    %2000 = vmatpush1.msra.mxu0 0.0
    %2001 = vmatprep.subr.mxu0 0.0
    %2002 = vmatpush1.msra.mxu0 0.0
    %2003 = vmatprep.subr.mxu0 0.0
    %2004 = vmatpush1.msra.mxu0 0.0
    %2005 = vmatprep.subr.mxu0 0.0
    %2006 = vmatpush1.msra.mxu0 0.0
    %2007 = vmatprep.subr.mxu0 0.0
    %2008 = vmatpush1.msra.mxu0 0.0
    %2009 = vmatprep.subr.mxu0 0.0
    %2010 = vmatpush1.msra.mxu0 0.0
    %2011 = vmatprep.subr.mxu0 0.0
    %2012 = vmatpush1.msra.mxu0 0.0
    %2013 = vmatprep.subr.mxu0 0.0
    %2014 = vmatpush1.msra.mxu0 0.0
    %2015 = vmatprep.subr.mxu0 0.0
    %2016 = vmatpush1.msra.mxu0 0.0
    %2017 = vmatprep.subr.mxu0 0.0
    %2018 = vmatpush1.msra.mxu0 0.0
    %2019 = vmatprep.subr.mxu0 0.0
    %2020 = vmatpush1.msra.mxu0 0.0
    %2021 = vmatprep.subr.mxu0 0.0
    %2022 = vmatpush1.msra.mxu0 0.0
    %2023 = vmatprep.subr.mxu0 0.0
    %2024 = vmatpush1.msra.mxu0 0.0
    %2025 = vmatprep.subr.mxu0 0.0
    %2026 = vmatpush1.msra.mxu0 0.0
    %2027 = vmatprep.subr.mxu0 0.0
    %2028 = vmatpush1.msra.mxu0 0.0
    %2029 = vmatprep.subr.mxu0 0.0
    %2030 = vmatpush1.msra.mxu0 0.0
    %2031 = vmatprep.subr.mxu0 0.0
    %2032 = vmatpush1.msra.mxu0 0.0
    %2033 = vmatprep.mubr.f32.mxu0 0.0
    %2034 = vmatmul.mubr.f32.gmra.mrb[0].mxu0 %v1958
    %v2035 = vpop.f32.mrb[0].mxu0
    %v2036 = vadd.f32 0.0, %v2035
    %v2037 = vpop.f32.mrb[0].mxu0
    %2038 = vmatprep.mubr.f32.mxu0 0.0
    %2039 = vmatmul.mubr.f32.gmra.mrb[0].mxu0 %v1961
    %v2040 = vpop.f32.mrb[0].mxu0
    %v2041 = vpop.f32.mrb[0].mxu0
    %2042 = vmatprep.mubr.f32.mxu0 0.0
    %2043 = vmatmul.mubr.f32.gmra.mrb[0].mxu0 %v1964
    %v2044 = vpop.f32.mrb[0].mxu0
    %v2045 = vadd.f32 0.0, %v2044
    %v2046 = vpop.f32.mrb[0].mxu0
    %2047 = vmatprep.mubr.f32.mxu0 0.0
    %2048 = vmatmul.mubr.f32.gmra.mrb[0].mxu0 %v1967
    %v2049 = vpop.f32.mrb[0].mxu0
    %v2050 = vpop.f32.mrb[0].mxu0
    %2051 = vdwg.mxu0
    %v2052 = vsel %vm733, %v2036, 0.0
    %v2053 = vrot.slane %v2052, 4
    %v2054 = vadd.f32 %v2052, %v2053
    %v2055 = vrot.slane %v2054, 2
    %v2056 = vadd.f32 %v2054, %v2055
    %v2057 = vrot.slane %v2056, 1
    %v2058 = vadd.f32 %v2056, %v2057
    %v2059 = vsel %vm733, %v2045, 0.0
    %v2060 = vrot.slane %v2059, 4
    %v2061 = vadd.f32 %v2059, %v2060
    %v2062 = vrot.slane %v2061, 2
    %v2063 = vadd.f32 %v2061, %v2062
    %v2064 = vrot.slane %v2063, 1
    %v2065 = vadd.f32 %v2063, %v2064
    %v2066 = vadd.f32 %v2058, 0.0
    %v2067 = vadd.f32 %v2065, 0.0
    %s2068 = scalar_lea.vmem %s3, 288
    %v2069 = vld [vmem:[%s2068] sm:$0xff]
    %v2070 = vld [vmem:[%s2068 + $0x8] sm:$0xff]
    %v2071 = vld [vmem:[%s2068 + $0x10] sm:$0xff]
    %v2072 = vld [vmem:[%s2068 + $0x18] sm:$0xff]
    %v2073 = vld [vmem:[%s2068 + $0x20] sm:$0xff]
    %v2074 = vld [vmem:[%s2068 + $0x28] sm:$0xff]
    %2075 = vmatprep.subr.mxu0 0.0
    %2076 = vmatpush1.msra.mxu0 %v2069
    %2077 = vmatprep.subr.mxu0 0.0
    %2078 = vmatpush1.msra.mxu0 %v2070
    %2079 = vmatprep.subr.mxu0 0.0
    %2080 = vmatpush1.msra.mxu0 %v2071
    %2081 = vmatprep.subr.mxu0 0.0
    %2082 = vmatpush1.msra.mxu0 %v2072
    %2083 = vmatprep.subr.mxu0 0.0
    %2084 = vmatpush1.msra.mxu0 %v2073
    %2085 = vmatprep.subr.mxu0 0.0
    %2086 = vmatpush1.msra.mxu0 %v2074
    %2087 = vmatprep.subr.mxu0 0.0
    %2088 = vmatpush1.msra.mxu0 0.0
    %2089 = vmatprep.subr.mxu0 0.0
    %2090 = vmatpush1.msra.mxu0 0.0
    %2091 = vmatprep.subr.mxu0 0.0
    %2092 = vmatpush1.msra.mxu0 0.0
    %2093 = vmatprep.subr.mxu0 0.0
    %2094 = vmatpush1.msra.mxu0 0.0
    %2095 = vmatprep.subr.mxu0 0.0
    %2096 = vmatpush1.msra.mxu0 0.0
    %2097 = vmatprep.subr.mxu0 0.0
    %2098 = vmatpush1.msra.mxu0 0.0
    %2099 = vmatprep.subr.mxu0 0.0
    %2100 = vmatpush1.msra.mxu0 0.0
    %2101 = vmatprep.subr.mxu0 0.0
    %2102 = vmatpush1.msra.mxu0 0.0
    %2103 = vmatprep.subr.mxu0 0.0
    %2104 = vmatpush1.msra.mxu0 0.0
    %2105 = vmatprep.subr.mxu0 0.0
    %2106 = vmatpush1.msra.mxu0 0.0
    %2107 = vmatprep.subr.mxu0 0.0
    %2108 = vmatpush1.msra.mxu0 0.0
    %2109 = vmatprep.subr.mxu0 0.0
    %2110 = vmatpush1.msra.mxu0 0.0
    %2111 = vmatprep.subr.mxu0 0.0
    %2112 = vmatpush1.msra.mxu0 0.0
    %2113 = vmatprep.subr.mxu0 0.0
    %2114 = vmatpush1.msra.mxu0 0.0
    %2115 = vmatprep.subr.mxu0 0.0
    %2116 = vmatpush1.msra.mxu0 0.0
    %2117 = vmatprep.subr.mxu0 0.0
    %2118 = vmatpush1.msra.mxu0 0.0
    %2119 = vmatprep.subr.mxu0 0.0
    %2120 = vmatpush1.msra.mxu0 0.0
    %2121 = vmatprep.subr.mxu0 0.0
    %2122 = vmatpush1.msra.mxu0 0.0
    %2123 = vmatprep.subr.mxu0 0.0
    %2124 = vmatpush1.msra.mxu0 0.0
    %2125 = vmatprep.subr.mxu0 0.0
    %2126 = vmatpush1.msra.mxu0 0.0
    %2127 = vmatprep.subr.mxu0 0.0
    %2128 = vmatpush1.msra.mxu0 0.0
    %2129 = vmatprep.subr.mxu0 0.0
    %2130 = vmatpush1.msra.mxu0 0.0
    %2131 = vmatprep.subr.mxu0 0.0
    %2132 = vmatpush1.msra.mxu0 0.0
    %2133 = vmatprep.subr.mxu0 0.0
    %2134 = vmatpush1.msra.mxu0 0.0
    %2135 = vmatprep.subr.mxu0 0.0
    %2136 = vmatpush1.msra.mxu0 0.0
    %2137 = vmatprep.subr.mxu0 0.0
    %2138 = vmatpush1.msra.mxu0 0.0
    %2139 = vmatprep.mubr.f32.mxu0 0.0
    %2140 = vmatmul.mubr.f32.gmra.mrb[0].mxu0 %v1958
    %v2141 = vpop.f32.mrb[0].mxu0
    %v2142 = vadd.f32 0.0, %v2141
    %v2143 = vpop.f32.mrb[0].mxu0
    %2144 = vmatprep.mubr.f32.mxu0 0.0
    %2145 = vmatmul.mubr.f32.gmra.mrb[0].mxu0 %v1961
    %v2146 = vpop.f32.mrb[0].mxu0
    %v2147 = vadd.f32 0.0, %v2146
    %v2148 = vpop.f32.mrb[0].mxu0
    %2149 = vmatprep.mubr.f32.mxu0 0.0
    %2150 = vmatmul.mubr.f32.gmra.mrb[0].mxu0 %v1964
    %v2151 = vpop.f32.mrb[0].mxu0
    %v2152 = vadd.f32 0.0, %v2151
    %v2153 = vpop.f32.mrb[0].mxu0
    %2154 = vmatprep.mubr.f32.mxu0 0.0
    %2155 = vmatmul.mubr.f32.gmra.mrb[0].mxu0 %v1967
    %v2156 = vpop.f32.mrb[0].mxu0
    %v2157 = vadd.f32 0.0, %v2156
    %v2158 = vpop.f32.mrb[0].mxu0
    %2159 = vdwg.mxu0
    %v2164 = vrot.slane %v2142, 1
    %v2165 = vrot.slane %v2147, 1
    %v2166 = vsel %vm241, %v2164, %v2165
    %v2167 = vrot.slane %v2152, 1
    %v2168 = vrot.slane %v2157, 1
    %v2169 = vsel %vm241, %v2167, %v2168
    %v2172 = vsel %vm733, %v2166, 0.0
    %v2173 = vrot.slane %v2172, 4
    %v2174 = vadd.f32 %v2172, %v2173
    %v2175 = vrot.slane %v2174, 2
    %v2176 = vadd.f32 %v2174, %v2175
    %v2177 = vrot.slane %v2176, 1
    %v2178 = vadd.f32 %v2176, %v2177
    %v2179 = vsel %vm733, %v2169, 0.0
    %v2180 = vrot.slane %v2179, 4
    %v2181 = vadd.f32 %v2179, %v2180
    %v2182 = vrot.slane %v2181, 2
    %v2183 = vadd.f32 %v2181, %v2182
    %v2184 = vrot.slane %v2183, 1
    %v2185 = vadd.f32 %v2183, %v2184
    %v2186 = vadd.f32 %v2066, %v2178
    %v2187 = vadd.f32 %v2067, %v2185
    %s2188 = scalar_lea.vmem %s3, 336
    %v2189 = vld [vmem:[%s2188] sm:$0xff]
    %v2190 = vld [vmem:[%s2188 + $0x8] sm:$0xff]
    %v2191 = vld [vmem:[%s2188 + $0x10] sm:$0xff]
    %v2192 = vld [vmem:[%s2188 + $0x18] sm:$0xff]
    %v2193 = vld [vmem:[%s2188 + $0x20] sm:$0xff]
    %v2194 = vld [vmem:[%s2188 + $0x28] sm:$0xff]
    %2195 = vmatprep.subr.mxu0 0.0
    %2196 = vmatpush1.msra.mxu0 %v2189
    %2197 = vmatprep.subr.mxu0 0.0
    %2198 = vmatpush1.msra.mxu0 %v2190
    %2199 = vmatprep.subr.mxu0 0.0
    %2200 = vmatpush1.msra.mxu0 %v2191
    %2201 = vmatprep.subr.mxu0 0.0
    %2202 = vmatpush1.msra.mxu0 %v2192
    %2203 = vmatprep.subr.mxu0 0.0
    %2204 = vmatpush1.msra.mxu0 %v2193
    %2205 = vmatprep.subr.mxu0 0.0
    %2206 = vmatpush1.msra.mxu0 %v2194
    %2207 = vmatprep.subr.mxu0 0.0
    %2208 = vmatpush1.msra.mxu0 0.0
    %2209 = vmatprep.subr.mxu0 0.0
    %2210 = vmatpush1.msra.mxu0 0.0
    %2211 = vmatprep.subr.mxu0 0.0
    %2212 = vmatpush1.msra.mxu0 0.0
    %2213 = vmatprep.subr.mxu0 0.0
    %2214 = vmatpush1.msra.mxu0 0.0
    %2215 = vmatprep.subr.mxu0 0.0
    %2216 = vmatpush1.msra.mxu0 0.0
    %2217 = vmatprep.subr.mxu0 0.0
    %2218 = vmatpush1.msra.mxu0 0.0
    %2219 = vmatprep.subr.mxu0 0.0
    %2220 = vmatpush1.msra.mxu0 0.0
    %2221 = vmatprep.subr.mxu0 0.0
    %2222 = vmatpush1.msra.mxu0 0.0
    %2223 = vmatprep.subr.mxu0 0.0
    %2224 = vmatpush1.msra.mxu0 0.0
    %2225 = vmatprep.subr.mxu0 0.0
    %2226 = vmatpush1.msra.mxu0 0.0
    %2227 = vmatprep.subr.mxu0 0.0
    %2228 = vmatpush1.msra.mxu0 0.0
    %2229 = vmatprep.subr.mxu0 0.0
    %2230 = vmatpush1.msra.mxu0 0.0
    %2231 = vmatprep.subr.mxu0 0.0
    %2232 = vmatpush1.msra.mxu0 0.0
    %2233 = vmatprep.subr.mxu0 0.0
    %2234 = vmatpush1.msra.mxu0 0.0
    %2235 = vmatprep.subr.mxu0 0.0
    %2236 = vmatpush1.msra.mxu0 0.0
    %2237 = vmatprep.subr.mxu0 0.0
    %2238 = vmatpush1.msra.mxu0 0.0
    %2239 = vmatprep.subr.mxu0 0.0
    %2240 = vmatpush1.msra.mxu0 0.0
    %2241 = vmatprep.subr.mxu0 0.0
    %2242 = vmatpush1.msra.mxu0 0.0
    %2243 = vmatprep.subr.mxu0 0.0
    %2244 = vmatpush1.msra.mxu0 0.0
    %2245 = vmatprep.subr.mxu0 0.0
    %2246 = vmatpush1.msra.mxu0 0.0
    %2247 = vmatprep.subr.mxu0 0.0
    %2248 = vmatpush1.msra.mxu0 0.0
    %2249 = vmatprep.subr.mxu0 0.0
    %2250 = vmatpush1.msra.mxu0 0.0
    %2251 = vmatprep.subr.mxu0 0.0
    %2252 = vmatpush1.msra.mxu0 0.0
    %2253 = vmatprep.subr.mxu0 0.0
    %2254 = vmatpush1.msra.mxu0 0.0
    %2255 = vmatprep.subr.mxu0 0.0
    %2256 = vmatpush1.msra.mxu0 0.0
    %2257 = vmatprep.subr.mxu0 0.0
    %2258 = vmatpush1.msra.mxu0 0.0
    %2259 = vmatprep.mubr.f32.mxu0 0.0
    %2260 = vmatmul.mubr.f32.gmra.mrb[0].mxu0 %v1958
    %v2261 = vpop.f32.mrb[0].mxu0
    %v2262 = vadd.f32 0.0, %v2261
    %v2263 = vpop.f32.mrb[0].mxu0
    %2264 = vmatprep.mubr.f32.mxu0 0.0
    %2265 = vmatmul.mubr.f32.gmra.mrb[0].mxu0 %v1961
    %v2266 = vpop.f32.mrb[0].mxu0
    %v2267 = vadd.f32 0.0, %v2266
    %v2268 = vpop.f32.mrb[0].mxu0
    %2269 = vmatprep.mubr.f32.mxu0 0.0
    %2270 = vmatmul.mubr.f32.gmra.mrb[0].mxu0 %v1964
    %v2271 = vpop.f32.mrb[0].mxu0
    %v2272 = vadd.f32 0.0, %v2271
    %v2273 = vpop.f32.mrb[0].mxu0
    %2274 = vmatprep.mubr.f32.mxu0 0.0
    %2275 = vmatmul.mubr.f32.gmra.mrb[0].mxu0 %v1967
    %v2276 = vpop.f32.mrb[0].mxu0
    %v2277 = vadd.f32 0.0, %v2276
    %v2278 = vpop.f32.mrb[0].mxu0
    %2279 = vdwg.mxu0
    %v2284 = vrot.slane %v2262, 2
    %v2285 = vrot.slane %v2267, 2
    %v2286 = vsel %vm354, %v2284, %v2285
    %v2287 = vrot.slane %v2272, 2
    %v2288 = vrot.slane %v2277, 2
    %v2289 = vsel %vm354, %v2287, %v2288
    %v2292 = vsel %vm733, %v2286, 0.0
    %v2293 = vrot.slane %v2292, 4
    %v2294 = vadd.f32 %v2292, %v2293
    %v2295 = vrot.slane %v2294, 2
    %v2296 = vadd.f32 %v2294, %v2295
    %v2297 = vrot.slane %v2296, 1
    %v2298 = vadd.f32 %v2296, %v2297
    %v2299 = vsel %vm733, %v2289, 0.0
    %v2300 = vrot.slane %v2299, 4
    %v2301 = vadd.f32 %v2299, %v2300
    %v2302 = vrot.slane %v2301, 2
    %v2303 = vadd.f32 %v2301, %v2302
    %v2304 = vrot.slane %v2303, 1
    %v2305 = vadd.f32 %v2303, %v2304
    %v2306 = vadd.f32 %v2186, %v2298
    %v2307 = vadd.f32 %v2187, %v2305
    %s2308 = scalar_lea.vmem %s3, 384
    %v2309 = vld [vmem:[%s2308] sm:$0xff]
    %v2310 = vld [vmem:[%s2308 + $0x8] sm:$0xff]
    %v2311 = vld [vmem:[%s2308 + $0x10] sm:$0xff]
    %v2312 = vld [vmem:[%s2308 + $0x18] sm:$0xff]
    %v2313 = vld [vmem:[%s2308 + $0x20] sm:$0xff]
    %v2314 = vld [vmem:[%s2308 + $0x28] sm:$0xff]
    %2315 = vmatprep.subr.mxu0 0.0
    %2316 = vmatpush1.msra.mxu0 %v2309
    %2317 = vmatprep.subr.mxu0 0.0
    %2318 = vmatpush1.msra.mxu0 %v2310
    %2319 = vmatprep.subr.mxu0 0.0
    %2320 = vmatpush1.msra.mxu0 %v2311
    %2321 = vmatprep.subr.mxu0 0.0
    %2322 = vmatpush1.msra.mxu0 %v2312
    %2323 = vmatprep.subr.mxu0 0.0
    %2324 = vmatpush1.msra.mxu0 %v2313
    %2325 = vmatprep.subr.mxu0 0.0
    %2326 = vmatpush1.msra.mxu0 %v2314
    %2327 = vmatprep.subr.mxu0 0.0
    %2328 = vmatpush1.msra.mxu0 0.0
    %2329 = vmatprep.subr.mxu0 0.0
    %2330 = vmatpush1.msra.mxu0 0.0
    %2331 = vmatprep.subr.mxu0 0.0
    %2332 = vmatpush1.msra.mxu0 0.0
    %2333 = vmatprep.subr.mxu0 0.0
    %2334 = vmatpush1.msra.mxu0 0.0
    %2335 = vmatprep.subr.mxu0 0.0
    %2336 = vmatpush1.msra.mxu0 0.0
    %2337 = vmatprep.subr.mxu0 0.0
    %2338 = vmatpush1.msra.mxu0 0.0
    %2339 = vmatprep.subr.mxu0 0.0
    %2340 = vmatpush1.msra.mxu0 0.0
    %2341 = vmatprep.subr.mxu0 0.0
    %2342 = vmatpush1.msra.mxu0 0.0
    %2343 = vmatprep.subr.mxu0 0.0
    %2344 = vmatpush1.msra.mxu0 0.0
    %2345 = vmatprep.subr.mxu0 0.0
    %2346 = vmatpush1.msra.mxu0 0.0
    %2347 = vmatprep.subr.mxu0 0.0
    %2348 = vmatpush1.msra.mxu0 0.0
    %2349 = vmatprep.subr.mxu0 0.0
    %2350 = vmatpush1.msra.mxu0 0.0
    %2351 = vmatprep.subr.mxu0 0.0
    %2352 = vmatpush1.msra.mxu0 0.0
    %2353 = vmatprep.subr.mxu0 0.0
    %2354 = vmatpush1.msra.mxu0 0.0
    %2355 = vmatprep.subr.mxu0 0.0
    %2356 = vmatpush1.msra.mxu0 0.0
    %2357 = vmatprep.subr.mxu0 0.0
    %2358 = vmatpush1.msra.mxu0 0.0
    %2359 = vmatprep.subr.mxu0 0.0
    %2360 = vmatpush1.msra.mxu0 0.0
    %2361 = vmatprep.subr.mxu0 0.0
    %2362 = vmatpush1.msra.mxu0 0.0
    %2363 = vmatprep.subr.mxu0 0.0
    %2364 = vmatpush1.msra.mxu0 0.0
    %2365 = vmatprep.subr.mxu0 0.0
    %2366 = vmatpush1.msra.mxu0 0.0
    %2367 = vmatprep.subr.mxu0 0.0
    %2368 = vmatpush1.msra.mxu0 0.0
    %2369 = vmatprep.subr.mxu0 0.0
    %2370 = vmatpush1.msra.mxu0 0.0
    %2371 = vmatprep.subr.mxu0 0.0
    %2372 = vmatpush1.msra.mxu0 0.0
    %2373 = vmatprep.subr.mxu0 0.0
    %2374 = vmatpush1.msra.mxu0 0.0
    %2375 = vmatprep.subr.mxu0 0.0
    %2376 = vmatpush1.msra.mxu0 0.0
    %2377 = vmatprep.subr.mxu0 0.0
    %2378 = vmatpush1.msra.mxu0 0.0
    %2379 = vmatprep.mubr.f32.mxu0 0.0
    %2380 = vmatmul.mubr.f32.gmra.mrb[0].mxu0 %v1958
    %v2381 = vpop.f32.mrb[0].mxu0
    %v2382 = vadd.f32 0.0, %v2381
    %v2383 = vpop.f32.mrb[0].mxu0
    %2384 = vmatprep.mubr.f32.mxu0 0.0
    %2385 = vmatmul.mubr.f32.gmra.mrb[0].mxu0 %v1961
    %v2386 = vpop.f32.mrb[0].mxu0
    %v2387 = vadd.f32 0.0, %v2386
    %v2388 = vpop.f32.mrb[0].mxu0
    %2389 = vmatprep.mubr.f32.mxu0 0.0
    %2390 = vmatmul.mubr.f32.gmra.mrb[0].mxu0 %v1964
    %v2391 = vpop.f32.mrb[0].mxu0
    %v2392 = vadd.f32 0.0, %v2391
    %v2393 = vpop.f32.mrb[0].mxu0
    %2394 = vmatprep.mubr.f32.mxu0 0.0
    %2395 = vmatmul.mubr.f32.gmra.mrb[0].mxu0 %v1967
    %v2396 = vpop.f32.mrb[0].mxu0
    %v2397 = vadd.f32 0.0, %v2396
    %v2398 = vpop.f32.mrb[0].mxu0
    %2399 = vdwg.mxu0
    %v2404 = vrot.slane %v2382, 3
    %v2405 = vrot.slane %v2387, 3
    %v2406 = vsel %vm467, %v2404, %v2405
    %v2407 = vrot.slane %v2392, 3
    %v2408 = vrot.slane %v2397, 3
    %v2409 = vsel %vm467, %v2407, %v2408
    %v2412 = vsel %vm733, %v2406, 0.0
    %v2413 = vrot.slane %v2412, 4
    %v2414 = vadd.f32 %v2412, %v2413
    %v2415 = vrot.slane %v2414, 2
    %v2416 = vadd.f32 %v2414, %v2415
    %v2417 = vrot.slane %v2416, 1
    %v2418 = vadd.f32 %v2416, %v2417
    %v2419 = vsel %vm733, %v2409, 0.0
    %v2420 = vrot.slane %v2419, 4
    %v2421 = vadd.f32 %v2419, %v2420
    %v2422 = vrot.slane %v2421, 2
    %v2423 = vadd.f32 %v2421, %v2422
    %v2424 = vrot.slane %v2423, 1
    %v2425 = vadd.f32 %v2423, %v2424
    %v2426 = vadd.f32 %v2306, %v2418
    %v2427 = vadd.f32 %v2307, %v2425
    %s2428 = scalar_lea.vmem %s3, 432
    %v2429 = vld [vmem:[%s2428] sm:$0xff]
    %v2430 = vld [vmem:[%s2428 + $0x8] sm:$0xff]
    %v2431 = vld [vmem:[%s2428 + $0x10] sm:$0xff]
    %v2432 = vld [vmem:[%s2428 + $0x18] sm:$0xff]
    %v2433 = vld [vmem:[%s2428 + $0x20] sm:$0xff]
    %v2434 = vld [vmem:[%s2428 + $0x28] sm:$0xff]
    %2435 = vmatprep.subr.mxu0 0.0
    %2436 = vmatpush1.msra.mxu0 %v2429
    %2437 = vmatprep.subr.mxu0 0.0
    %2438 = vmatpush1.msra.mxu0 %v2430
    %2439 = vmatprep.subr.mxu0 0.0
    %2440 = vmatpush1.msra.mxu0 %v2431
    %2441 = vmatprep.subr.mxu0 0.0
    %2442 = vmatpush1.msra.mxu0 %v2432
    %2443 = vmatprep.subr.mxu0 0.0
    %2444 = vmatpush1.msra.mxu0 %v2433
    %2445 = vmatprep.subr.mxu0 0.0
    %2446 = vmatpush1.msra.mxu0 %v2434
    %2447 = vmatprep.subr.mxu0 0.0
    %2448 = vmatpush1.msra.mxu0 0.0
    %2449 = vmatprep.subr.mxu0 0.0
    %2450 = vmatpush1.msra.mxu0 0.0
    %2451 = vmatprep.subr.mxu0 0.0
    %2452 = vmatpush1.msra.mxu0 0.0
    %2453 = vmatprep.subr.mxu0 0.0
    %2454 = vmatpush1.msra.mxu0 0.0
    %2455 = vmatprep.subr.mxu0 0.0
    %2456 = vmatpush1.msra.mxu0 0.0
    %2457 = vmatprep.subr.mxu0 0.0
    %2458 = vmatpush1.msra.mxu0 0.0
    %2459 = vmatprep.subr.mxu0 0.0
    %2460 = vmatpush1.msra.mxu0 0.0
    %2461 = vmatprep.subr.mxu0 0.0
    %2462 = vmatpush1.msra.mxu0 0.0
    %2463 = vmatprep.subr.mxu0 0.0
    %2464 = vmatpush1.msra.mxu0 0.0
    %2465 = vmatprep.subr.mxu0 0.0
    %2466 = vmatpush1.msra.mxu0 0.0
    %2467 = vmatprep.subr.mxu0 0.0
    %2468 = vmatpush1.msra.mxu0 0.0
    %2469 = vmatprep.subr.mxu0 0.0
    %2470 = vmatpush1.msra.mxu0 0.0
    %2471 = vmatprep.subr.mxu0 0.0
    %2472 = vmatpush1.msra.mxu0 0.0
    %2473 = vmatprep.subr.mxu0 0.0
    %2474 = vmatpush1.msra.mxu0 0.0
    %2475 = vmatprep.subr.mxu0 0.0
    %2476 = vmatpush1.msra.mxu0 0.0
    %2477 = vmatprep.subr.mxu0 0.0
    %2478 = vmatpush1.msra.mxu0 0.0
    %2479 = vmatprep.subr.mxu0 0.0
    %2480 = vmatpush1.msra.mxu0 0.0
    %2481 = vmatprep.subr.mxu0 0.0
    %2482 = vmatpush1.msra.mxu0 0.0
    %2483 = vmatprep.subr.mxu0 0.0
    %2484 = vmatpush1.msra.mxu0 0.0
    %2485 = vmatprep.subr.mxu0 0.0
    %2486 = vmatpush1.msra.mxu0 0.0
    %2487 = vmatprep.subr.mxu0 0.0
    %2488 = vmatpush1.msra.mxu0 0.0
    %2489 = vmatprep.subr.mxu0 0.0
    %2490 = vmatpush1.msra.mxu0 0.0
    %2491 = vmatprep.subr.mxu0 0.0
    %2492 = vmatpush1.msra.mxu0 0.0
    %2493 = vmatprep.subr.mxu0 0.0
    %2494 = vmatpush1.msra.mxu0 0.0
    %2495 = vmatprep.subr.mxu0 0.0
    %2496 = vmatpush1.msra.mxu0 0.0
    %2497 = vmatprep.subr.mxu0 0.0
    %2498 = vmatpush1.msra.mxu0 0.0
    %2499 = vmatprep.mubr.f32.mxu0 0.0
    %2500 = vmatmul.mubr.f32.gmra.mrb[0].mxu0 %v1958
    %v2501 = vpop.f32.mrb[0].mxu0
    %v2502 = vadd.f32 0.0, %v2501
    %v2503 = vpop.f32.mrb[0].mxu0
    %2504 = vmatprep.mubr.f32.mxu0 0.0
    %2505 = vmatmul.mubr.f32.gmra.mrb[0].mxu0 %v1961
    %v2506 = vpop.f32.mrb[0].mxu0
    %v2507 = vadd.f32 0.0, %v2506
    %v2508 = vpop.f32.mrb[0].mxu0
    %2509 = vmatprep.mubr.f32.mxu0 0.0
    %2510 = vmatmul.mubr.f32.gmra.mrb[0].mxu0 %v1964
    %v2511 = vpop.f32.mrb[0].mxu0
    %v2512 = vadd.f32 0.0, %v2511
    %v2513 = vpop.f32.mrb[0].mxu0
    %2514 = vmatprep.mubr.f32.mxu0 0.0
    %2515 = vmatmul.mubr.f32.gmra.mrb[0].mxu0 %v1967
    %v2516 = vpop.f32.mrb[0].mxu0
    %v2517 = vadd.f32 0.0, %v2516
    %v2518 = vpop.f32.mrb[0].mxu0
    %2519 = vdwg.mxu0
    %v2524 = vrot.slane %v2502, 4
    %v2525 = vrot.slane %v2507, 4
    %v2526 = vsel %vm580, %v2524, %v2525
    %v2527 = vrot.slane %v2512, 4
    %v2528 = vrot.slane %v2517, 4
    %v2529 = vsel %vm580, %v2527, %v2528
    %v2532 = vsel %vm733, %v2526, 0.0
    %v2533 = vrot.slane %v2532, 4
    %v2534 = vadd.f32 %v2532, %v2533
    %v2535 = vrot.slane %v2534, 2
    %v2536 = vadd.f32 %v2534, %v2535
    %v2537 = vrot.slane %v2536, 1
    %v2538 = vadd.f32 %v2536, %v2537
    %v2539 = vsel %vm733, %v2529, 0.0
    %v2540 = vrot.slane %v2539, 4
    %v2541 = vadd.f32 %v2539, %v2540
    %v2542 = vrot.slane %v2541, 2
    %v2543 = vadd.f32 %v2541, %v2542
    %v2544 = vrot.slane %v2543, 1
    %v2545 = vadd.f32 %v2543, %v2544
    %v2546 = vadd.f32 %v2426, %v2538
    %v2547 = vadd.f32 %v2427, %v2545
    %v2548 = vmul.f32 %v2546, 0.015625
    %v2549 = vmul.f32 %v2547, 0.015625
    %v2550 = vlaneseq
    %v2551 = vshrl.u32 %v2550, 7
    %v2552 = vsub.s32 7, %v2551
    %v2553 = vrot.slane %v21, %v2552
    %v2554 = vadd.f32 %v2548, %v2553
    %v2555 = vadd.f32 %v2549, %v2553
    %v2556 = vlaneseq
    %v2557 = vshrl.u32 %v2556, 7
    %v2558 = vsub.s32 4, %v2557
    %v2559 = vrot.slane %v22, %v2558
    %v2562 = vrot.slane %v2555, 7
    %v2563 = vsel %vm1249, %v2562, %v2554
    %v2564 = vsel %vm733, %v2563, 0
    %v2567 = vsel %vm580, %v22, 0
    %2569 = vmatprep.subr.mxu0 0.0
    %2570 = vmatpush1.msra.mxu0 %v2567
    %2571 = vmatprep.subr.mxu0 0.0
    %2572 = vmatpush1.msra.mxu0 0.0
    %2573 = vmatprep.subr.mxu0 0.0
    %2574 = vmatpush1.msra.mxu0 0.0
    %2575 = vmatprep.subr.mxu0 0.0
    %2576 = vmatpush1.msra.mxu0 0.0
    %2577 = vmatprep.subr.mxu0 0.0
    %2578 = vmatpush1.msra.mxu0 0.0
    %2579 = vmatprep.subr.mxu0 0.0
    %2580 = vmatpush1.msra.mxu0 0.0
    %2581 = vmatprep.subr.mxu0 0.0
    %2582 = vmatpush1.msra.mxu0 0.0
    %2583 = vmatprep.subr.mxu0 0.0
    %2584 = vmatpush1.msra.mxu0 0.0
    %2585 = vmatprep.subr.mxu0 0.0
    %2586 = vmatpush1.msra.mxu0 0.0
    %2587 = vmatprep.subr.mxu0 0.0
    %2588 = vmatpush1.msra.mxu0 0.0
    %2589 = vmatprep.subr.mxu0 0.0
    %2590 = vmatpush1.msra.mxu0 0.0
    %2591 = vmatprep.subr.mxu0 0.0
    %2592 = vmatpush1.msra.mxu0 0.0
    %2593 = vmatprep.subr.mxu0 0.0
    %2594 = vmatpush1.msra.mxu0 0.0
    %2595 = vmatprep.subr.mxu0 0.0
    %2596 = vmatpush1.msra.mxu0 0.0
    %2597 = vmatprep.subr.mxu0 0.0
    %2598 = vmatpush1.msra.mxu0 0.0
    %2599 = vmatprep.subr.mxu0 0.0
    %2600 = vmatpush1.msra.mxu0 0.0
    %2601 = vmatprep.subr.mxu0 0.0
    %2602 = vmatpush1.msra.mxu0 0.0
    %2603 = vmatprep.subr.mxu0 0.0
    %2604 = vmatpush1.msra.mxu0 0.0
    %2605 = vmatprep.subr.mxu0 0.0
    %2606 = vmatpush1.msra.mxu0 0.0
    %2607 = vmatprep.subr.mxu0 0.0
    %2608 = vmatpush1.msra.mxu0 0.0
    %2609 = vmatprep.subr.mxu0 0.0
    %2610 = vmatpush1.msra.mxu0 0.0
    %2611 = vmatprep.subr.mxu0 0.0
    %2612 = vmatpush1.msra.mxu0 0.0
    %2613 = vmatprep.subr.mxu0 0.0
    %2614 = vmatpush1.msra.mxu0 0.0
    %2615 = vmatprep.subr.mxu0 0.0
    %2616 = vmatpush1.msra.mxu0 0.0
    %2617 = vmatprep.subr.mxu0 0.0
    %2618 = vmatpush1.msra.mxu0 0.0
    %2619 = vmatprep.subr.mxu0 0.0
    %2620 = vmatpush1.msra.mxu0 0.0
    %2621 = vmatprep.subr.mxu0 0.0
    %2622 = vmatpush1.msra.mxu0 0.0
    %2623 = vmatprep.subr.mxu0 0.0
    %2624 = vmatpush1.msra.mxu0 0.0
    %2625 = vmatprep.subr.mxu0 0.0
    %2626 = vmatpush1.msra.mxu0 0.0
    %2627 = vmatprep.subr.mxu0 0.0
    %2628 = vmatpush1.msra.mxu0 0.0
    %2629 = vmatprep.subr.mxu0 0.0
    %2630 = vmatpush1.msra.mxu0 0.0
    %2631 = vmatprep.subr.mxu0 0.0
    %2632 = vmatpush1.msra.mxu0 0.0
    %2633 = vmatprep.mubr.f32.mxu0 0.0
    %2634 = vmatmul.mubr.f32.gmra.mrb[0].mxu0 %v2564
    %v2635 = vpop.f32.mrb[0].mxu0
    %v2636 = vadd.f32 %v2559, %v2635
    %v2637 = vpop.f32.mrb[0].mxu0
    %2638 = vdwg.mxu0
    %v2639 = vmul.f32 %v2636, 0.5
    %v2640 = vmul.f32 %v2636, 0.70710677
    %v2641 = verf.f32.pop %v2640
    %v2642 = vadd.f32 %v2641, 1.0
    %v2643 = vmul.f32 %v2639, %v2642
    %v2644 = vlaneseq
    %v2645 = vshrl.u32 %v2644, 7
    %v2646 = vsub.s32 1, %v2645
    %v2647 = vrot.slane %v23, %v2646
    %vm2649 = vcmask 1042432
    %v2650 = vrot.slane %v22, 5
    %v2651 = vrot.slane %v23, 5
    %v2652 = vsel %vm2649, %v2650, %v2651
    %v2654 = vsel %vm733, %v2643, 0
    %v2656 = vsel %vm580, %v2652, 0
    %2658 = vmatprep.subr.mxu0 0.0
    %2659 = vmatpush1.msra.mxu0 %v2656
    %2660 = vmatprep.subr.mxu0 0.0
    %2661 = vmatpush1.msra.mxu0 0.0
    %2662 = vmatprep.subr.mxu0 0.0
    %2663 = vmatpush1.msra.mxu0 0.0
    %2664 = vmatprep.subr.mxu0 0.0
    %2665 = vmatpush1.msra.mxu0 0.0
    %2666 = vmatprep.subr.mxu0 0.0
    %2667 = vmatpush1.msra.mxu0 0.0
    %2668 = vmatprep.subr.mxu0 0.0
    %2669 = vmatpush1.msra.mxu0 0.0
    %2670 = vmatprep.subr.mxu0 0.0
    %2671 = vmatpush1.msra.mxu0 0.0
    %2672 = vmatprep.subr.mxu0 0.0
    %2673 = vmatpush1.msra.mxu0 0.0
    %2674 = vmatprep.subr.mxu0 0.0
    %2675 = vmatpush1.msra.mxu0 0.0
    %2676 = vmatprep.subr.mxu0 0.0
    %2677 = vmatpush1.msra.mxu0 0.0
    %2678 = vmatprep.subr.mxu0 0.0
    %2679 = vmatpush1.msra.mxu0 0.0
    %2680 = vmatprep.subr.mxu0 0.0
    %2681 = vmatpush1.msra.mxu0 0.0
    %2682 = vmatprep.subr.mxu0 0.0
    %2683 = vmatpush1.msra.mxu0 0.0
    %2684 = vmatprep.subr.mxu0 0.0
    %2685 = vmatpush1.msra.mxu0 0.0
    %2686 = vmatprep.subr.mxu0 0.0
    %2687 = vmatpush1.msra.mxu0 0.0
    %2688 = vmatprep.subr.mxu0 0.0
    %2689 = vmatpush1.msra.mxu0 0.0
    %2690 = vmatprep.subr.mxu0 0.0
    %2691 = vmatpush1.msra.mxu0 0.0
    %2692 = vmatprep.subr.mxu0 0.0
    %2693 = vmatpush1.msra.mxu0 0.0
    %2694 = vmatprep.subr.mxu0 0.0
    %2695 = vmatpush1.msra.mxu0 0.0
    %2696 = vmatprep.subr.mxu0 0.0
    %2697 = vmatpush1.msra.mxu0 0.0
    %2698 = vmatprep.subr.mxu0 0.0
    %2699 = vmatpush1.msra.mxu0 0.0
    %2700 = vmatprep.subr.mxu0 0.0
    %2701 = vmatpush1.msra.mxu0 0.0
    %2702 = vmatprep.subr.mxu0 0.0
    %2703 = vmatpush1.msra.mxu0 0.0
    %2704 = vmatprep.subr.mxu0 0.0
    %2705 = vmatpush1.msra.mxu0 0.0
    %2706 = vmatprep.subr.mxu0 0.0
    %2707 = vmatpush1.msra.mxu0 0.0
    %2708 = vmatprep.subr.mxu0 0.0
    %2709 = vmatpush1.msra.mxu0 0.0
    %2710 = vmatprep.subr.mxu0 0.0
    %2711 = vmatpush1.msra.mxu0 0.0
    %2712 = vmatprep.subr.mxu0 0.0
    %2713 = vmatpush1.msra.mxu0 0.0
    %2714 = vmatprep.subr.mxu0 0.0
    %2715 = vmatpush1.msra.mxu0 0.0
    %2716 = vmatprep.subr.mxu0 0.0
    %2717 = vmatpush1.msra.mxu0 0.0
    %2718 = vmatprep.subr.mxu0 0.0
    %2719 = vmatpush1.msra.mxu0 0.0
    %2720 = vmatprep.subr.mxu0 0.0
    %2721 = vmatpush1.msra.mxu0 0.0
    %2722 = vmatprep.mubr.f32.mxu0 0.0
    %2723 = vmatmul.mubr.f32.gmra.mrb[0].mxu0 %v2654
    %v2724 = vpop.f32.mrb[0].mxu0
    %v2725 = vadd.f32 %v2647, %v2724
    %v2726 = vpop.f32.mrb[0].mxu0
    %2727 = vdwg.mxu0
    %v2728 = vxor.u32 %v2725, 2147483648
    %v2729 = vmul.f32 %v2728, 1.442695
    %v2730 = vpow.pop %v2729
    %v2731 = vadd.f32 %v2730, 1.0
    %v2732 = vrcp.pop %v2731
    %v2733 = vmul.f32 1.0, %v2732
    %vm2734 = vcmask 25600
    %2735 = vst.msk [vmem:[#allocation3] sm:$0x3] %vm2734, %v2733
    // Predicated region
    $region22: #{tpu_custom_call.1} parent=1 // pred_check
      _
    $region23: #{tpu_custom_call.1} parent=1 // pred_check_branch
      %2737 = sbr.rel (0) target = $region25
    $region24: #{tpu_custom_call.1} parent=1 // pred_region
      %s2739 = ssub.s32 32, 32
      %2740 = vsyncadd [#allocation4], %s2739
      %s2742 = sshll.u32 [#allocation3], 4
      %s2743 = int_to_ptr.vmem [resolvable:$true] %s2742
      %2745 = dma.vmem_to_hbm [thread:$0]  %s2743, 32, %s5, [#allocation4]
    $region25: #{tpu_custom_call.1} parent=1 // pred_fallthru
      _
    // Predicated region
    $region26: #{tpu_custom_call.1} parent=1 // pred_check
      _
    $region27: #{tpu_custom_call.1} parent=1 // pred_check_branch
      %2747 = sbr.rel (0) target = $region29
    $region28: #{tpu_custom_call.1} parent=1 // pred_region
      %2748 = dma.done [#allocation4], 32
    $region29: #{tpu_custom_call.1} parent=1 // pred_fallthru
      _
    %2749 = vsyncpa [#allocation4], 1

</llo_original>
